<compile_context>
chip_gen: v7x
topology: tpu7x:2x2x1
jax: 0.10.0
libtpu: 0.0.40
codegen_flags: <defaults>
</compile_context>

<pallas_src>
import jax
import jax.numpy as jnp
import numpy as np
from jax.experimental import pallas as pl
from jax.experimental.pallas import tpu as pltpu

EPS = 1e-5


# ---------------------------------------------------------------------------
# In-kernel helpers
# ---------------------------------------------------------------------------
def _pad_hw1(x):
    """Zero-pad an (H, W, C) value by 1 on both spatial dims (value-level;
    no scratch zero-fill / store / re-read round trip)."""
    H, W, C = x.shape
    zrow = jnp.zeros((1, W, C), x.dtype)
    x = jnp.concatenate([zrow, x, zrow], axis=0)            # (H+2, W, C)
    zcol = jnp.zeros((H + 2, 1, C), x.dtype)
    return jnp.concatenate([zcol, x, zcol], axis=1)          # (H+2, W+2, C)


def _im2col_3x3(xpad, H, W, C):
    """(H+2, W+2, C) -> (H*W, 9C) patch slab.  Tap order (dh, dw, cin) matches
    an HWIO weight reshaped to (9C, C)."""
    taps = [xpad[dh:dh + H, dw:dw + W, :] for dh in range(3) for dw in range(3)]
    return jnp.concatenate(taps, axis=-1).reshape(H * W, 9 * C)


def _partial_stats(y2d):
    """(rows, C) -> (2, C): [sum; sum of squares] for one-pass BN statistics."""
    s = jnp.sum(y2d, axis=0, keepdims=True)
    ss = jnp.sum(y2d * y2d, axis=0, keepdims=True)
    return jnp.concatenate([s, ss], axis=0)


# ---------------------------------------------------------------------------
# Kernels (grid over batch; each step handles one batch element)
# ---------------------------------------------------------------------------
def conv1_stats_kernel(x_ref, w_ref, c1_ref, st_ref):
    """conv1 (im2col, no bias) + partial BN1 statistics."""
    _, H, W, C = x_ref.shape
    xpad = _pad_hw1(x_ref[0].astype(jnp.float32))
    patches = _im2col_3x3(xpad, H, W, C)
    y = jnp.dot(patches, w_ref[...], preferred_element_type=jnp.float32)
    c1_ref[0] = y.reshape(H, W, C)
    st_ref[0] = _partial_stats(y)


def bn1_relu_conv2_stats_kernel(c1_ref, sc_ref, sh_ref, w_ref, c2_ref, st_ref):
    """Fused BN1 scale/shift + ReLU, then conv2 (im2col, no bias) + partial
    BN2 statistics."""
    _, H, W, C = c1_ref.shape
    scale = sc_ref[...].reshape(1, 1, C)
    shift = sh_ref[...].reshape(1, 1, C)
    y = jnp.maximum(c1_ref[0] * scale + shift, 0.0)
    patches = _im2col_3x3(_pad_hw1(y), H, W, C)
    z = jnp.dot(patches, w_ref[...], preferred_element_type=jnp.float32)
    c2_ref[0] = z.reshape(H, W, C)
    st_ref[0] = _partial_stats(z)


def bn2_residual_relu_kernel(c2_ref, x_ref, sc_ref, sh_ref, out_ref):
    """Fused BN2 scale/shift + residual add + final ReLU."""
    _, H, W, C = c2_ref.shape
    scale = sc_ref[...].reshape(1, 1, C)
    shift = sh_ref[...].reshape(1, 1, C)
    out_ref[0] = jnp.maximum(c2_ref[0] * scale + shift + x_ref[0], 0.0)


# ---------------------------------------------------------------------------
# Wrapper
# ---------------------------------------------------------------------------
def _fuse_bn(partial_stats, gamma, beta, count):
    """Fold global (all N,H,W) batch statistics + BN affine params into a
    single per-channel scale/shift."""
    s = jnp.sum(partial_stats[:, 0, :], axis=0)
    ss = jnp.sum(partial_stats[:, 1, :], axis=0)
    mean = s / count
    var = ss / count - mean * mean            # biased variance (train-mode BN)
    scale = gamma.reshape(-1) * jax.lax.rsqrt(var + EPS)
    shift = beta.reshape(-1) - mean * scale
    return scale.reshape(1, -1), shift.reshape(1, -1)


def residual_block(x_nchw, params):
    """params = (w1, b1, g1, be1, w2, b2, g2, be2); w* are HWIO (3,3,C,C),
    the rest (1, C).  Conv biases are accepted but unused: they are exactly
    cancelled by the train-mode BN mean subtraction following each conv."""
    w1, _b1, g1, be1, w2, _b2, g2, be2 = params
    N, C, H, W = x_nchw.shape
    x = jnp.transpose(x_nchw, (0, 2, 3, 1)).astype(jnp.float32)    # NHWC
    w1m = w1.astype(jnp.float32).reshape(9 * C, C)                 # im2col weights
    w2m = w2.astype(jnp.float32).reshape(9 * C, C)

    grid = (N,)
    blk_img = pl.BlockSpec((1, H, W, C), lambda n: (n, 0, 0, 0))
    blk_stat = pl.BlockSpec((1, 2, C), lambda n: (n, 0, 0))
    blk_w = pl.BlockSpec((9 * C, C), lambda n: (0, 0))
    blk_vec = pl.BlockSpec((1, C), lambda n: (0, 0))
    cparams = pltpu.CompilerParams(dimension_semantics=("parallel",))

    img_shape = jax.ShapeDtypeStruct((N, H, W, C), jnp.float32)
    stat_shape = jax.ShapeDtypeStruct((N, 2, C), jnp.float32)

    # Pass 1: conv1 + partial BN1 stats.
    c1, st1 = pl.pallas_call(
        conv1_stats_kernel,
        grid=grid,
        in_specs=[blk_img, blk_w],
        out_specs=[blk_img, blk_stat],
        out_shape=[img_shape, stat_shape],
        compiler_params=cparams,
    )(x, w1m)
    scale1, shift1 = _fuse_bn(st1, g1, be1, N * H * W)

    # Pass 2: BN1(+ReLU) applied on the fly + conv2 + partial BN2 stats.
    c2, st2 = pl.pallas_call(
        bn1_relu_conv2_stats_kernel,
        grid=grid,
        in_specs=[blk_img, blk_vec, blk_vec, blk_w],
        out_specs=[blk_img, blk_stat],
        out_shape=[img_shape, stat_shape],
        compiler_params=cparams,
    )(c1, scale1, shift1, w2m)
    scale2, shift2 = _fuse_bn(st2, g2, be2, N * H * W)

    # Pass 3: BN2 + residual add + final ReLU.
    out_nhwc = pl.pallas_call(
        bn2_residual_relu_kernel,
        grid=grid,
        in_specs=[blk_img, blk_img, blk_vec, blk_vec],
        out_specs=blk_img,
        out_shape=img_shape,
        compiler_params=cparams,
    )(c2, x, scale2, shift2)

    return jnp.transpose(out_nhwc, (0, 3, 1, 2))                    # back to NCHW


# ---------------------------------------------------------------------------
# Pure-JAX reference (same semantics as the PyTorch module in .train() mode)
# ---------------------------------------------------------------------------
def residual_block_ref(x_nchw, params):
    w1, b1, g1, be1, w2, b2, g2, be2 = params

    def conv(x, w, b):
        y = jax.lax.conv_general_dilated(
            x, w, window_strides=(1, 1), padding="SAME",
            dimension_numbers=("NHWC", "HWIO", "NHWC"))
        return y + b.reshape(1, 1, 1, -1)

    def bn(x, g, be):
        mean = jnp.mean(x, axis=(0, 1, 2), keepdims=True)
        var = jnp.mean((x - mean) ** 2, axis=(0, 1, 2), keepdims=True)
        return ((x - mean) * jax.lax.rsqrt(var + EPS)
                * g.reshape(1, 1, 1, -1) + be.reshape(1, 1, 1, -1))

    x = jnp.transpose(x_nchw, (0, 2, 3, 1)).astype(jnp.float32)
    y = jax.nn.relu(bn(conv(x, w1, b1), g1, be1))
    z = bn(conv(y, w2, b2), g2, be2)
    out = jax.nn.relu(z + x)
    return jnp.transpose(out, (0, 3, 1, 2))


def init_params(key, channels):
    ks = jax.random.split(key, 6)
    scale = 1.0 / np.sqrt(channels * 9)
    w1 = jax.random.uniform(ks[0], (3, 3, channels, channels), jnp.float32,
                            -scale, scale)
    b1 = jax.random.uniform(ks[1], (1, channels), jnp.float32, -scale, scale)
    w2 = jax.random.uniform(ks[2], (3, 3, channels, channels), jnp.float32,
                            -scale, scale)
    b2 = jax.random.uniform(ks[3], (1, channels), jnp.float32, -scale, scale)
    # BN affine params (non-trivial gamma to exercise the affine path).
    g1 = 1.0 + 0.1 * jax.random.normal(ks[4], (1, channels), jnp.float32)
    be1 = jnp.zeros((1, channels), jnp.float32)
    g2 = 1.0 + 0.1 * jax.random.normal(ks[5], (1, channels), jnp.float32)
    be2 = jnp.zeros((1, channels), jnp.float32)
    return (w1, b1, g1, be1, w2, b2, g2, be2)


if __name__ == "__main__":
    key = jax.random.PRNGKey(0)
    k_x, k_p = jax.random.split(key)

    N, C, H, W = 2, 4, 16, 16
    x = jax.random.normal(k_x, (N, C, H, W), jnp.float32)
    params = init_params(k_p, C)

    out = jax.block_until_ready(jax.jit(residual_block)(x, params))
    ref = jax.block_until_ready(residual_block_ref(x, params))
    np.testing.assert_allclose(np.asarray(out), np.asarray(ref),
                               rtol=1e-3, atol=1e-3)

    print("KERNEL_OK")
</pallas_src>

<mosaic_0001>
module attributes {stable_mosaic.version = 11 : i64} {
  func.func @conv1_stats_kernel(%arg0: i32, %arg1: memref<1x16x16x4xf32, #tpu.memory_space<vmem>>, %arg2: memref<36x4xf32, #tpu.memory_space<vmem>>, %arg3: memref<1x16x16x4xf32, #tpu.memory_space<vmem>>, %arg4: memref<1x2x4xf32, #tpu.memory_space<vmem>>) attributes {dimension_semantics = [#tpu.dimension_semantics<parallel>], iteration_bounds = array<i64: 2>, scalar_prefetch = 0 : i64, scratch_operands = 0 : i64, tpu.core_type = #tpu.core_type<tc>, window_params = [{transform_indices = @transform_0, window_bounds = array<i64: 1, 16, 16, 4>}, {pipeline_mode = #tpu.pipeline_mode<synchronous>, transform_indices = @transform_1, window_bounds = array<i64: 36, 4>}, {transform_indices = @transform_2, window_bounds = array<i64: 1, 16, 16, 4>}, {transform_indices = @transform_3, window_bounds = array<i64: 1, 2, 4>}]} {
    %c0 = arith.constant 0 : index
    %c0_0 = arith.constant 0 : index
    %c0_1 = arith.constant 0 : index
    %c0_2 = arith.constant 0 : index
    %0 = vector.load %arg1[%c0, %c0_0, %c0_1, %c0_2] : memref<1x16x16x4xf32, #tpu.memory_space<vmem>>, vector<1x16x16x4xf32>
    %1 = vector.shape_cast %0 : vector<1x16x16x4xf32> to vector<16x16x4xf32>
    %cst = arith.constant 0.000000e+00 : f32
    %2 = vector.broadcast %cst : f32 to vector<1x16x4xf32>
    %3 = tpu.concatenate %2, %1, %2 in 0 : vector<1x16x4xf32>, vector<16x16x4xf32>, vector<1x16x4xf32> -> vector<18x16x4xf32>
    %cst_3 = arith.constant 0.000000e+00 : f32
    %4 = vector.broadcast %cst_3 : f32 to vector<18x1x4xf32>
    %5 = tpu.concatenate %4, %3, %4 in 1 : vector<18x1x4xf32>, vector<18x16x4xf32>, vector<18x1x4xf32> -> vector<18x18x4xf32>
    %6 = vector.extract_strided_slice %5 {offsets = [0, 0, 0], sizes = [16, 16, 4], strides = [1, 1, 1]} : vector<18x18x4xf32> to vector<16x16x4xf32>
    %7 = vector.extract_strided_slice %5 {offsets = [0, 1, 0], sizes = [16, 16, 4], strides = [1, 1, 1]} : vector<18x18x4xf32> to vector<16x16x4xf32>
    %8 = vector.extract_strided_slice %5 {offsets = [0, 2, 0], sizes = [16, 16, 4], strides = [1, 1, 1]} : vector<18x18x4xf32> to vector<16x16x4xf32>
    %9 = vector.extract_strided_slice %5 {offsets = [1, 0, 0], sizes = [16, 16, 4], strides = [1, 1, 1]} : vector<18x18x4xf32> to vector<16x16x4xf32>
    %10 = vector.extract_strided_slice %5 {offsets = [1, 1, 0], sizes = [16, 16, 4], strides = [1, 1, 1]} : vector<18x18x4xf32> to vector<16x16x4xf32>
    %11 = vector.extract_strided_slice %5 {offsets = [1, 2, 0], sizes = [16, 16, 4], strides = [1, 1, 1]} : vector<18x18x4xf32> to vector<16x16x4xf32>
    %12 = vector.extract_strided_slice %5 {offsets = [2, 0, 0], sizes = [16, 16, 4], strides = [1, 1, 1]} : vector<18x18x4xf32> to vector<16x16x4xf32>
    %13 = vector.extract_strided_slice %5 {offsets = [2, 1, 0], sizes = [16, 16, 4], strides = [1, 1, 1]} : vector<18x18x4xf32> to vector<16x16x4xf32>
    %14 = vector.extract_strided_slice %5 {offsets = [2, 2, 0], sizes = [16, 16, 4], strides = [1, 1, 1]} : vector<18x18x4xf32> to vector<16x16x4xf32>
    %15 = tpu.concatenate %6, %7, %8, %9, %10, %11, %12, %13, %14 in 2 : vector<16x16x4xf32>, vector<16x16x4xf32>, vector<16x16x4xf32>, vector<16x16x4xf32>, vector<16x16x4xf32>, vector<16x16x4xf32>, vector<16x16x4xf32>, vector<16x16x4xf32>, vector<16x16x4xf32> -> vector<16x16x36xf32>
    %16 = vector.shape_cast %15 : vector<16x16x36xf32> to vector<256x36xf32>
    %c0_4 = arith.constant 0 : index
    %c0_5 = arith.constant 0 : index
    %17 = vector.load %arg2[%c0_4, %c0_5] : memref<36x4xf32, #tpu.memory_space<vmem>>, vector<36x4xf32>
    %cst_6 = arith.constant dense<0.000000e+00> : vector<256x4xf32>
    %18 = tpu.matmul %16, %17, %cst_6 {dimension_numbers = #tpu.dot_dimension_numbers<[1], [0], [0], [1], [0, 0, 1, 1], [], []>} : vector<256x36xf32>, vector<36x4xf32>, vector<256x4xf32> -> vector<256x4xf32>
    %19 = vector.shape_cast %18 : vector<256x4xf32> to vector<16x16x4xf32>
    %c0_7 = arith.constant 0 : index
    %c0_8 = arith.constant 0 : index
    %c0_9 = arith.constant 0 : index
    %c0_10 = arith.constant 0 : index
    %20 = vector.load %arg3[%c0_7, %c0_8, %c0_9, %c0_10] : memref<1x16x16x4xf32, #tpu.memory_space<vmem>>, vector<1x16x16x4xf32>
    %21 = vector.shape_cast %20 : vector<1x16x16x4xf32> to vector<16x16x4xf32>
    %22 = vector.shape_cast %19 : vector<16x16x4xf32> to vector<1x16x16x4xf32>
    tpu.vector_store %arg3[%c0_7, %c0_8, %c0_9, %c0_10], %22 {strides = array<i32>} : memref<1x16x16x4xf32, #tpu.memory_space<vmem>>, vector<1x16x16x4xf32>,
    %cst_11 = arith.constant dense<0.000000e+00> : vector<4xf32>
    %23 = vector.multi_reduction <add>, %18, %cst_11 [0] : vector<256x4xf32> to vector<4xf32>
    %24 = vector.shape_cast %23 : vector<4xf32> to vector<1x4xf32>
    %25 = arith.mulf %18, %18 : vector<256x4xf32>
    %cst_12 = arith.constant dense<0.000000e+00> : vector<4xf32>
    %26 = vector.multi_reduction <add>, %25, %cst_12 [0] : vector<256x4xf32> to vector<4xf32>
    %27 = vector.shape_cast %26 : vector<4xf32> to vector<1x4xf32>
    %28 = tpu.concatenate %24, %27 in 0 : vector<1x4xf32>, vector<1x4xf32> -> vector<2x4xf32>
    %c0_13 = arith.constant 0 : index
    %c0_14 = arith.constant 0 : index
    %c0_15 = arith.constant 0 : index
    %29 = vector.load %arg4[%c0_13, %c0_14, %c0_15] : memref<1x2x4xf32, #tpu.memory_space<vmem>>, vector<1x2x4xf32>
    %30 = vector.shape_cast %29 : vector<1x2x4xf32> to vector<2x4xf32>
    %31 = vector.shape_cast %28 : vector<2x4xf32> to vector<1x2x4xf32>
    tpu.vector_store %arg4[%c0_13, %c0_14, %c0_15], %31 {strides = array<i32>} : memref<1x2x4xf32, #tpu.memory_space<vmem>>, vector<1x2x4xf32>,
    return
  }
  func.func @transform_0(%arg0: i32) -> (i32, i32, i32, i32) {
    %c0_i32 = arith.constant 0 : i32
    %c0_i32_0 = arith.constant 0 : i32
    %c0_i32_1 = arith.constant 0 : i32
    %c0_i32_2 = arith.constant 0 : i32
    return %arg0, %c0_i32, %c0_i32_0, %c0_i32_1 : i32, i32, i32, i32
  }
  func.func @transform_1(%arg0: i32) -> (i32, i32) {
    %c0_i32 = arith.constant 0 : i32
    %c0_i32_0 = arith.constant 0 : i32
    %c0_i32_1 = arith.constant 0 : i32
    return %c0_i32, %c0_i32_0 : i32, i32
  }
  func.func @transform_2(%arg0: i32) -> (i32, i32, i32, i32) {
    %c0_i32 = arith.constant 0 : i32
    %c0_i32_0 = arith.constant 0 : i32
    %c0_i32_1 = arith.constant 0 : i32
    %c0_i32_2 = arith.constant 0 : i32
    return %arg0, %c0_i32, %c0_i32_0, %c0_i32_1 : i32, i32, i32, i32
  }
  func.func @transform_3(%arg0: i32) -> (i32, i32, i32) {
    %c0_i32 = arith.constant 0 : i32
    %c0_i32_0 = arith.constant 0 : i32
    %c0_i32_1 = arith.constant 0 : i32
    return %arg0, %c0_i32, %c0_i32_0 : i32, i32, i32
  }
}

module attributes {stable_mosaic.version = 11 : i64} {
  func.func @bn2_residual_relu_kernel(%arg0: i32, %arg1: memref<1x16x16x4xf32, #tpu.memory_space<vmem>>, %arg2: memref<1x16x16x4xf32, #tpu.memory_space<vmem>>, %arg3: memref<1x4xf32, #tpu.memory_space<vmem>>, %arg4: memref<1x4xf32, #tpu.memory_space<vmem>>, %arg5: memref<1x16x16x4xf32, #tpu.memory_space<vmem>>) attributes {dimension_semantics = [#tpu.dimension_semantics<parallel>], iteration_bounds = array<i64: 2>, scalar_prefetch = 0 : i64, scratch_operands = 0 : i64, tpu.core_type = #tpu.core_type<tc>, window_params = [{transform_indices = @transform_0, window_bounds = array<i64: 1, 16, 16, 4>}, {transform_indices = @transform_1, window_bounds = array<i64: 1, 16, 16, 4>}, {pipeline_mode = #tpu.pipeline_mode<synchronous>, transform_indices = @transform_2, window_bounds = array<i64: 1, 4>}, {pipeline_mode = #tpu.pipeline_mode<synchronous>, transform_indices = @transform_3, window_bounds = array<i64: 1, 4>}, {transform_indices = @transform_4, window_bounds = array<i64: 1, 16, 16, 4>}]} {
    %c0 = arith.constant 0 : index
    %c0_0 = arith.constant 0 : index
    %0 = vector.load %arg3[%c0, %c0_0] : memref<1x4xf32, #tpu.memory_space<vmem>>, vector<1x4xf32>
    %1 = vector.shape_cast %0 : vector<1x4xf32> to vector<1x1x4xf32>
    %c0_1 = arith.constant 0 : index
    %c0_2 = arith.constant 0 : index
    %2 = vector.load %arg4[%c0_1, %c0_2] : memref<1x4xf32, #tpu.memory_space<vmem>>, vector<1x4xf32>
    %3 = vector.shape_cast %2 : vector<1x4xf32> to vector<1x1x4xf32>
    %c0_3 = arith.constant 0 : index
    %c0_4 = arith.constant 0 : index
    %c0_5 = arith.constant 0 : index
    %c0_6 = arith.constant 0 : index
    %4 = vector.load %arg1[%c0_3, %c0_4, %c0_5, %c0_6] : memref<1x16x16x4xf32, #tpu.memory_space<vmem>>, vector<1x16x16x4xf32>
    %5 = vector.shape_cast %4 : vector<1x16x16x4xf32> to vector<16x16x4xf32>
    %6 = vector.broadcast %1 : vector<1x1x4xf32> to vector<16x16x4xf32>
    %7 = arith.mulf %5, %6 : vector<16x16x4xf32>
    %8 = vector.broadcast %3 : vector<1x1x4xf32> to vector<16x16x4xf32>
    %9 = arith.addf %7, %8 : vector<16x16x4xf32>
    %c0_7 = arith.constant 0 : index
    %c0_8 = arith.constant 0 : index
    %c0_9 = arith.constant 0 : index
    %c0_10 = arith.constant 0 : index
    %10 = vector.load %arg2[%c0_7, %c0_8, %c0_9, %c0_10] : memref<1x16x16x4xf32, #tpu.memory_space<vmem>>, vector<1x16x16x4xf32>
    %11 = vector.shape_cast %10 : vector<1x16x16x4xf32> to vector<16x16x4xf32>
    %12 = arith.addf %9, %11 : vector<16x16x4xf32>
    %cst = arith.constant 0.000000e+00 : f32
    %13 = vector.broadcast %cst : f32 to vector<16x16x4xf32>
    %14 = arith.maximumf %12, %13 : vector<16x16x4xf32>
    %c0_11 = arith.constant 0 : index
    %c0_12 = arith.constant 0 : index
    %c0_13 = arith.constant 0 : index
    %c0_14 = arith.constant 0 : index
    %15 = vector.load %arg5[%c0_11, %c0_12, %c0_13, %c0_14] : memref<1x16x16x4xf32, #tpu.memory_space<vmem>>, vector<1x16x16x4xf32>
    %16 = vector.shape_cast %15 : vector<1x16x16x4xf32> to vector<16x16x4xf32>
    %17 = vector.shape_cast %14 : vector<16x16x4xf32> to vector<1x16x16x4xf32>
    tpu.vector_store %arg5[%c0_11, %c0_12, %c0_13, %c0_14], %17 {strides = array<i32>} : memref<1x16x16x4xf32, #tpu.memory_space<vmem>>, vector<1x16x16x4xf32>,
    return
  }
  func.func @transform_0(%arg0: i32) -> (i32, i32, i32, i32) {
    %c0_i32 = arith.constant 0 : i32
    %c0_i32_0 = arith.constant 0 : i32
    %c0_i32_1 = arith.constant 0 : i32
    %c0_i32_2 = arith.constant 0 : i32
    return %arg0, %c0_i32, %c0_i32_0, %c0_i32_1 : i32, i32, i32, i32
  }
  func.func @transform_1(%arg0: i32) -> (i32, i32, i32, i32) {
    %c0_i32 = arith.constant 0 : i32
    %c0_i32_0 = arith.constant 0 : i32
    %c0_i32_1 = arith.constant 0 : i32
    %c0_i32_2 = arith.constant 0 : i32
    return %arg0, %c0_i32, %c0_i32_0, %c0_i32_1 : i32, i32, i32, i32
  }
  func.func @transform_2(%arg0: i32) -> (i32, i32) {
    %c0_i32 = arith.constant 0 : i32
    %c0_i32_0 = arith.constant 0 : i32
    %c0_i32_1 = arith.constant 0 : i32
    return %c0_i32, %c0_i32_0 : i32, i32
  }
  func.func @transform_3(%arg0: i32) -> (i32, i32) {
    %c0_i32 = arith.constant 0 : i32
    %c0_i32_0 = arith.constant 0 : i32
    %c0_i32_1 = arith.constant 0 : i32
    return %c0_i32, %c0_i32_0 : i32, i32
  }
  func.func @transform_4(%arg0: i32) -> (i32, i32, i32, i32) {
    %c0_i32 = arith.constant 0 : i32
    %c0_i32_0 = arith.constant 0 : i32
    %c0_i32_1 = arith.constant 0 : i32
    %c0_i32_2 = arith.constant 0 : i32
    return %arg0, %c0_i32, %c0_i32_0, %c0_i32_1 : i32, i32, i32, i32
  }
}

module attributes {stable_mosaic.version = 11 : i64} {
  func.func @bn1_relu_conv2_stats_kernel(%arg0: i32, %arg1: memref<1x16x16x4xf32, #tpu.memory_space<vmem>>, %arg2: memref<1x4xf32, #tpu.memory_space<vmem>>, %arg3: memref<1x4xf32, #tpu.memory_space<vmem>>, %arg4: memref<36x4xf32, #tpu.memory_space<vmem>>, %arg5: memref<1x16x16x4xf32, #tpu.memory_space<vmem>>, %arg6: memref<1x2x4xf32, #tpu.memory_space<vmem>>) attributes {dimension_semantics = [#tpu.dimension_semantics<parallel>], iteration_bounds = array<i64: 2>, scalar_prefetch = 0 : i64, scratch_operands = 0 : i64, tpu.core_type = #tpu.core_type<tc>, window_params = [{transform_indices = @transform_0, window_bounds = array<i64: 1, 16, 16, 4>}, {pipeline_mode = #tpu.pipeline_mode<synchronous>, transform_indices = @transform_1, window_bounds = array<i64: 1, 4>}, {pipeline_mode = #tpu.pipeline_mode<synchronous>, transform_indices = @transform_2, window_bounds = array<i64: 1, 4>}, {pipeline_mode = #tpu.pipeline_mode<synchronous>, transform_indices = @transform_3, window_bounds = array<i64: 36, 4>}, {transform_indices = @transform_4, window_bounds = array<i64: 1, 16, 16, 4>}, {transform_indices = @transform_5, window_bounds = array<i64: 1, 2, 4>}]} {
    %c0 = arith.constant 0 : index
    %c0_0 = arith.constant 0 : index
    %0 = vector.load %arg2[%c0, %c0_0] : memref<1x4xf32, #tpu.memory_space<vmem>>, vector<1x4xf32>
    %1 = vector.shape_cast %0 : vector<1x4xf32> to vector<1x1x4xf32>
    %c0_1 = arith.constant 0 : index
    %c0_2 = arith.constant 0 : index
    %2 = vector.load %arg3[%c0_1, %c0_2] : memref<1x4xf32, #tpu.memory_space<vmem>>, vector<1x4xf32>
    %3 = vector.shape_cast %2 : vector<1x4xf32> to vector<1x1x4xf32>
    %c0_3 = arith.constant 0 : index
    %c0_4 = arith.constant 0 : index
    %c0_5 = arith.constant 0 : index
    %c0_6 = arith.constant 0 : index
    %4 = vector.load %arg1[%c0_3, %c0_4, %c0_5, %c0_6] : memref<1x16x16x4xf32, #tpu.memory_space<vmem>>, vector<1x16x16x4xf32>
    %5 = vector.shape_cast %4 : vector<1x16x16x4xf32> to vector<16x16x4xf32>
    %6 = vector.broadcast %1 : vector<1x1x4xf32> to vector<16x16x4xf32>
    %7 = arith.mulf %5, %6 : vector<16x16x4xf32>
    %8 = vector.broadcast %3 : vector<1x1x4xf32> to vector<16x16x4xf32>
    %9 = arith.addf %7, %8 : vector<16x16x4xf32>
    %cst = arith.constant 0.000000e+00 : f32
    %10 = vector.broadcast %cst : f32 to vector<16x16x4xf32>
    %11 = arith.maximumf %9, %10 : vector<16x16x4xf32>
    %cst_7 = arith.constant 0.000000e+00 : f32
    %12 = vector.broadcast %cst_7 : f32 to vector<1x16x4xf32>
    %13 = tpu.concatenate %12, %11, %12 in 0 : vector<1x16x4xf32>, vector<16x16x4xf32>, vector<1x16x4xf32> -> vector<18x16x4xf32>
    %cst_8 = arith.constant 0.000000e+00 : f32
    %14 = vector.broadcast %cst_8 : f32 to vector<18x1x4xf32>
    %15 = tpu.concatenate %14, %13, %14 in 1 : vector<18x1x4xf32>, vector<18x16x4xf32>, vector<18x1x4xf32> -> vector<18x18x4xf32>
    %16 = vector.extract_strided_slice %15 {offsets = [0, 0, 0], sizes = [16, 16, 4], strides = [1, 1, 1]} : vector<18x18x4xf32> to vector<16x16x4xf32>
    %17 = vector.extract_strided_slice %15 {offsets = [0, 1, 0], sizes = [16, 16, 4], strides = [1, 1, 1]} : vector<18x18x4xf32> to vector<16x16x4xf32>
    %18 = vector.extract_strided_slice %15 {offsets = [0, 2, 0], sizes = [16, 16, 4], strides = [1, 1, 1]} : vector<18x18x4xf32> to vector<16x16x4xf32>
    %19 = vector.extract_strided_slice %15 {offsets = [1, 0, 0], sizes = [16, 16, 4], strides = [1, 1, 1]} : vector<18x18x4xf32> to vector<16x16x4xf32>
    %20 = vector.extract_strided_slice %15 {offsets = [1, 1, 0], sizes = [16, 16, 4], strides = [1, 1, 1]} : vector<18x18x4xf32> to vector<16x16x4xf32>
    %21 = vector.extract_strided_slice %15 {offsets = [1, 2, 0], sizes = [16, 16, 4], strides = [1, 1, 1]} : vector<18x18x4xf32> to vector<16x16x4xf32>
    %22 = vector.extract_strided_slice %15 {offsets = [2, 0, 0], sizes = [16, 16, 4], strides = [1, 1, 1]} : vector<18x18x4xf32> to vector<16x16x4xf32>
    %23 = vector.extract_strided_slice %15 {offsets = [2, 1, 0], sizes = [16, 16, 4], strides = [1, 1, 1]} : vector<18x18x4xf32> to vector<16x16x4xf32>
    %24 = vector.extract_strided_slice %15 {offsets = [2, 2, 0], sizes = [16, 16, 4], strides = [1, 1, 1]} : vector<18x18x4xf32> to vector<16x16x4xf32>
    %25 = tpu.concatenate %16, %17, %18, %19, %20, %21, %22, %23, %24 in 2 : vector<16x16x4xf32>, vector<16x16x4xf32>, vector<16x16x4xf32>, vector<16x16x4xf32>, vector<16x16x4xf32>, vector<16x16x4xf32>, vector<16x16x4xf32>, vector<16x16x4xf32>, vector<16x16x4xf32> -> vector<16x16x36xf32>
    %26 = vector.shape_cast %25 : vector<16x16x36xf32> to vector<256x36xf32>
    %c0_9 = arith.constant 0 : index
    %c0_10 = arith.constant 0 : index
    %27 = vector.load %arg4[%c0_9, %c0_10] : memref<36x4xf32, #tpu.memory_space<vmem>>, vector<36x4xf32>
    %cst_11 = arith.constant dense<0.000000e+00> : vector<256x4xf32>
    %28 = tpu.matmul %26, %27, %cst_11 {dimension_numbers = #tpu.dot_dimension_numbers<[1], [0], [0], [1], [0, 0, 1, 1], [], []>} : vector<256x36xf32>, vector<36x4xf32>, vector<256x4xf32> -> vector<256x4xf32>
    %29 = vector.shape_cast %28 : vector<256x4xf32> to vector<16x16x4xf32>
    %c0_12 = arith.constant 0 : index
    %c0_13 = arith.constant 0 : index
    %c0_14 = arith.constant 0 : index
    %c0_15 = arith.constant 0 : index
    %30 = vector.load %arg5[%c0_12, %c0_13, %c0_14, %c0_15] : memref<1x16x16x4xf32, #tpu.memory_space<vmem>>, vector<1x16x16x4xf32>
    %31 = vector.shape_cast %30 : vector<1x16x16x4xf32> to vector<16x16x4xf32>
    %32 = vector.shape_cast %29 : vector<16x16x4xf32> to vector<1x16x16x4xf32>
    tpu.vector_store %arg5[%c0_12, %c0_13, %c0_14, %c0_15], %32 {strides = array<i32>} : memref<1x16x16x4xf32, #tpu.memory_space<vmem>>, vector<1x16x16x4xf32>,
    %cst_16 = arith.constant dense<0.000000e+00> : vector<4xf32>
    %33 = vector.multi_reduction <add>, %28, %cst_16 [0] : vector<256x4xf32> to vector<4xf32>
    %34 = vector.shape_cast %33 : vector<4xf32> to vector<1x4xf32>
    %35 = arith.mulf %28, %28 : vector<256x4xf32>
    %cst_17 = arith.constant dense<0.000000e+00> : vector<4xf32>
    %36 = vector.multi_reduction <add>, %35, %cst_17 [0] : vector<256x4xf32> to vector<4xf32>
    %37 = vector.shape_cast %36 : vector<4xf32> to vector<1x4xf32>
    %38 = tpu.concatenate %34, %37 in 0 : vector<1x4xf32>, vector<1x4xf32> -> vector<2x4xf32>
    %c0_18 = arith.constant 0 : index
    %c0_19 = arith.constant 0 : index
    %c0_20 = arith.constant 0 : index
    %39 = vector.load %arg6[%c0_18, %c0_19, %c0_20] : memref<1x2x4xf32, #tpu.memory_space<vmem>>, vector<1x2x4xf32>
    %40 = vector.shape_cast %39 : vector<1x2x4xf32> to vector<2x4xf32>
    %41 = vector.shape_cast %38 : vector<2x4xf32> to vector<1x2x4xf32>
    tpu.vector_store %arg6[%c0_18, %c0_19, %c0_20], %41 {strides = array<i32>} : memref<1x2x4xf32, #tpu.memory_space<vmem>>, vector<1x2x4xf32>,
    return
  }
  func.func @transform_0(%arg0: i32) -> (i32, i32, i32, i32) {
    %c0_i32 = arith.constant 0 : i32
    %c0_i32_0 = arith.constant 0 : i32
    %c0_i32_1 = arith.constant 0 : i32
    %c0_i32_2 = arith.constant 0 : i32
    return %arg0, %c0_i32, %c0_i32_0, %c0_i32_1 : i32, i32, i32, i32
  }
  func.func @transform_1(%arg0: i32) -> (i32, i32) {
    %c0_i32 = arith.constant 0 : i32
    %c0_i32_0 = arith.constant 0 : i32
    %c0_i32_1 = arith.constant 0 : i32
    return %c0_i32, %c0_i32_0 : i32, i32
  }
  func.func @transform_2(%arg0: i32) -> (i32, i32) {
    %c0_i32 = arith.constant 0 : i32
    %c0_i32_0 = arith.constant 0 : i32
    %c0_i32_1 = arith.constant 0 : i32
    return %c0_i32, %c0_i32_0 : i32, i32
  }
  func.func @transform_3(%arg0: i32) -> (i32, i32) {
    %c0_i32 = arith.constant 0 : i32
    %c0_i32_0 = arith.constant 0 : i32
    %c0_i32_1 = arith.constant 0 : i32
    return %c0_i32, %c0_i32_0 : i32, i32
  }
  func.func @transform_4(%arg0: i32) -> (i32, i32, i32, i32) {
    %c0_i32 = arith.constant 0 : i32
    %c0_i32_0 = arith.constant 0 : i32
    %c0_i32_1 = arith.constant 0 : i32
    %c0_i32_2 = arith.constant 0 : i32
    return %arg0, %c0_i32, %c0_i32_0, %c0_i32_1 : i32, i32, i32, i32
  }
  func.func @transform_5(%arg0: i32) -> (i32, i32, i32) {
    %c0_i32 = arith.constant 0 : i32
    %c0_i32_0 = arith.constant 0 : i32
    %c0_i32_1 = arith.constant 0 : i32
    return %arg0, %c0_i32, %c0_i32_0 : i32, i32, i32
  }
}

</mosaic_0001>

<llo_original>
// kernel: residual_block.5
$region0: #{residual_block.5}
  #allocation0 [shape = 'u32[]', space=smem, size = 0x4, offset = 0x4, fixed_abs, tag = 'smem constant byte address 0x4 - core index']
  #allocation1 [shape = 'u32[144,128]{1,0:T(1,128)}', space=vmem, size = 0x12000, scoped, tag = 'internal scratch']
  %s0 = inlined_call_operand.vmem [shape: f32[2,16,16,4], index: 0, kind: input, shape index: {}]
  %s1 = inlined_call_operand.vmem [shape: f32[2,16,16,4], index: 1, kind: input, shape index: {}]
  %s2 = inlined_call_operand.vmem [shape: f32[1,4], index: 2, kind: input, shape index: {}]
  %s3 = inlined_call_operand.vmem [shape: f32[1,4], index: 3, kind: input, shape index: {}]
  %s4 = inlined_call_operand.vmem [shape: f32[2,16,16,4], index: 4, kind: output, shape index: {}]
  %s5 = sld [smem:[#allocation0]]
  $region49: #{residual_block.5} parent=0
    _
  %s7 = ssub.s32 1, %s5
  %s8 = scalar_select 0, %s7, %s5
  loop: start=0, step=1, limit=4
  $region2: #{residual_block.5} parent=0 // loop_pre_header
    _
  $region3: #{residual_block.5} parent=0 // loop_header
    %s10 = sphi 0, %s14
    %p11 = scmp.ge.s32.totalorder %s10, 4
    %s20 = sphi 0, %s22
    %s23 = sphi 0, %s20
    %s24 = sphi 0, %s23
    %s40 = sphi 0, %s24
    %s46 = sphi 0, %s48
    %s49 = sphi 0, %s46
    %s50 = sphi 0, %s49
    %s66 = sphi 0, %s50
    %s70 = sphi 0, %s70
    %s72 = sphi 0, %s70
    %s73 = sphi 0, %s72
    %s87 = sphi 0, %s73
    %s91 = sphi 0, %s91
    %s93 = sphi 0, %s91
    %s94 = sphi 0, %s93
    %s108 = sphi 0, %s94
    %s114 = sphi 0, %s116
    %s117 = sphi 0, %s114
    %s118 = sphi 0, %s117
    %s134 = sphi 0, %s118
  $region4: #{residual_block.5} parent=0 // loop_header_branch
    %13 = sbr.rel (%p11) target = $region8
  $region5: #{residual_block.5} parent=0 // loop_body
    %s15 = ssub.s32 %s10, 1
    %s16 = ssub.s32 %s10, 2
    %s17 = sadd.s32 %s10, 1
    %s18 = ssub.s32 %s10, %s17
    %p19 = scmp.eq.s32.totalorder %s18, 0
    %s21 = sadd.s32 %s20, 1
    %s22 = scalar_select %p19, %s20, %s21
    %p25 = pneg %p19
    %p26 = scmp.eq.s32.totalorder %s10, 1
    %p27 = por %p25, %p26
    %p28 = scmp.ne.s32.totalorder %s20, %s23
    %p29 = scmp.eq.s32.totalorder %s10, 0
    %p30 = por %p28, %p29
    %p31 = scmp.ne.s32.totalorder %s20, %s23
    %p32 = scmp.eq.s32.totalorder %s15, 1
    %p33 = por %p31, %p32
    %p34 = scmp.ne.s32.totalorder %s23, %s24
    %p35 = scmp.eq.s32.totalorder %s15, 0
    %p36 = por %p34, %p35
    %p37 = scmp.ne.s32.totalorder %s23, %s24
    %p38 = scmp.eq.s32.totalorder %s16, 1
    %p39 = por %p37, %p38
    %p41 = scmp.ne.s32.totalorder %s24, %s40
    %p42 = scmp.eq.s32.totalorder %s16, 0
    %p43 = por %p41, %p42
    %s44 = ssub.s32 %s10, %s17
    %p45 = scmp.eq.s32.totalorder %s44, 0
    %s47 = sadd.s32 %s46, 1
    %s48 = scalar_select %p45, %s46, %s47
    %p51 = pneg %p45
    %p52 = scmp.eq.s32.totalorder %s10, 1
    %p53 = por %p51, %p52
    %p54 = scmp.ne.s32.totalorder %s46, %s49
    %p55 = scmp.eq.s32.totalorder %s10, 0
    %p56 = por %p54, %p55
    %p57 = scmp.ne.s32.totalorder %s46, %s49
    %p58 = scmp.eq.s32.totalorder %s15, 1
    %p59 = por %p57, %p58
    %p60 = scmp.ne.s32.totalorder %s49, %s50
    %p61 = scmp.eq.s32.totalorder %s15, 0
    %p62 = por %p60, %p61
    %p63 = scmp.ne.s32.totalorder %s49, %s50
    %p64 = scmp.eq.s32.totalorder %s16, 1
    %p65 = por %p63, %p64
    %p67 = scmp.ne.s32.totalorder %s50, %s66
    %p68 = scmp.eq.s32.totalorder %s16, 0
    %p69 = por %p67, %p68
    %s71 = sadd.s32 %s70, 1
    %p74 = scmp.eq.s32.totalorder %s10, 1
    %p75 = scmp.ne.s32.totalorder %s70, %s72
    %p76 = scmp.eq.s32.totalorder %s10, 0
    %p77 = por %p75, %p76
    %p78 = scmp.ne.s32.totalorder %s70, %s72
    %p79 = scmp.eq.s32.totalorder %s15, 1
    %p80 = por %p78, %p79
    %p81 = scmp.ne.s32.totalorder %s72, %s73
    %p82 = scmp.eq.s32.totalorder %s15, 0
    %p83 = por %p81, %p82
    %p84 = scmp.ne.s32.totalorder %s72, %s73
    %p85 = scmp.eq.s32.totalorder %s16, 1
    %p86 = por %p84, %p85
    %p88 = scmp.ne.s32.totalorder %s73, %s87
    %p89 = scmp.eq.s32.totalorder %s16, 0
    %p90 = por %p88, %p89
    %s92 = sadd.s32 %s91, 1
    %p95 = scmp.eq.s32.totalorder %s10, 1
    %p96 = scmp.ne.s32.totalorder %s91, %s93
    %p97 = scmp.eq.s32.totalorder %s10, 0
    %p98 = por %p96, %p97
    %p99 = scmp.ne.s32.totalorder %s91, %s93
    %p100 = scmp.eq.s32.totalorder %s15, 1
    %p101 = por %p99, %p100
    %p102 = scmp.ne.s32.totalorder %s93, %s94
    %p103 = scmp.eq.s32.totalorder %s15, 0
    %p104 = por %p102, %p103
    %p105 = scmp.ne.s32.totalorder %s93, %s94
    %p106 = scmp.eq.s32.totalorder %s16, 1
    %p107 = por %p105, %p106
    %p109 = scmp.ne.s32.totalorder %s94, %s108
    %p110 = scmp.eq.s32.totalorder %s16, 0
    %p111 = por %p109, %p110
    %s112 = ssub.s32 %s10, %s17
    %p113 = scmp.eq.s32.totalorder %s112, 0
    %s115 = sadd.s32 %s114, 1
    %s116 = scalar_select %p113, %s114, %s115
    %p119 = pneg %p113
    %p120 = scmp.eq.s32.totalorder %s10, 1
    %p121 = por %p119, %p120
    %p122 = scmp.ne.s32.totalorder %s114, %s117
    %p123 = scmp.eq.s32.totalorder %s10, 0
    %p124 = por %p122, %p123
    %p125 = scmp.ne.s32.totalorder %s114, %s117
    %p126 = scmp.eq.s32.totalorder %s15, 1
    %p127 = por %p125, %p126
    %p128 = scmp.ne.s32.totalorder %s117, %s118
    %p129 = scmp.eq.s32.totalorder %s15, 0
    %p130 = por %p128, %p129
    %p131 = scmp.ne.s32.totalorder %s117, %s118
    %p132 = scmp.eq.s32.totalorder %s16, 1
    %p133 = por %p131, %p132
    %p135 = scmp.ne.s32.totalorder %s118, %s134
    %p136 = scmp.eq.s32.totalorder %s16, 0
    %p137 = por %p135, %p136
    %p138 = scmp.le.s32.totalorder 1, %s10
    %p139 = scmp.lt.s32.totalorder %s10, 3
    %p140 = pnand %p138, %p139
    %p141 = pneg %p140
    // Predicated region
    $region9: #{residual_block.5} parent=5 // pred_check
      _
    $region10: #{residual_block.5} parent=5 // pred_check_branch
      %143 = sbr.rel (%p140) target = $region12
    $region11: #{residual_block.5} parent=5 // pred_region
      %s144 = ssub.s32 %s10, 1
      // Predicated region
      $region13: #{residual_block.5} parent=11 // pred_check
        %p145 = pneg %p83
      $region14: #{residual_block.5} parent=11 // pred_check_branch
        %147 = sbr.rel (%p145) target = $region16
      $region15: #{residual_block.5} parent=11 // pred_region
        _
      $region16: #{residual_block.5} parent=11 // pred_fallthru
        _
      // Predicated region
      $region17: #{residual_block.5} parent=11 // pred_check
        %p148 = pneg %p104
      $region18: #{residual_block.5} parent=11 // pred_check_branch
        %150 = sbr.rel (%p148) target = $region20
      $region19: #{residual_block.5} parent=11 // pred_region
        _
      $region20: #{residual_block.5} parent=11 // pred_fallthru
        _
    $region12: #{residual_block.5} parent=5 // pred_fallthru
      _
    %p151 = scmp.lt.s32.totalorder %s10, 2
    // Predicated region
    $region21: #{residual_block.5} parent=5 // pred_check
      %p152 = pneg %p151
    $region22: #{residual_block.5} parent=5 // pred_check_branch
      %154 = sbr.rel (%p152) target = $region24
    $region23: #{residual_block.5} parent=5 // pred_region
      // Predicated region
      $region25: #{residual_block.5} parent=23 // pred_check
        %p155 = pneg %p30
      $region26: #{residual_block.5} parent=23 // pred_check_branch
        %157 = sbr.rel (%p155) target = $region28
      $region27: #{residual_block.5} parent=23 // pred_region
        %p158 = scmp.lt.s32.totalorder %s10, 1
        %s159 = scalar_select %p158, %s10, 1
        %s160 = smul.addr %s159, 32
        %s161 = smul.addr %s160, 8
        %s162 = scalar_lea.vmem %s0, %s161
      $region28: #{residual_block.5} parent=23 // pred_fallthru
        _
      // Predicated region
      $region29: #{residual_block.5} parent=23 // pred_check
        %p163 = pneg %p56
      $region30: #{residual_block.5} parent=23 // pred_check_branch
        %165 = sbr.rel (%p163) target = $region32
      $region31: #{residual_block.5} parent=23 // pred_region
        %p166 = scmp.lt.s32.totalorder %s10, 1
        %s167 = scalar_select %p166, %s10, 1
        %s168 = smul.addr %s167, 32
        %s169 = smul.addr %s168, 8
        %s170 = scalar_lea.vmem %s1, %s169
      $region32: #{residual_block.5} parent=23 // pred_fallthru
        _
    $region24: #{residual_block.5} parent=5 // pred_fallthru
      _
    %p171 = scmp.le.s32.totalorder 1, %s10
    %p172 = scmp.lt.s32.totalorder %s10, 3
    %p173 = pnand %p171, %p172
    %p174 = pneg %p173
    // Predicated region
    $region33: #{residual_block.5} parent=5 // pred_check
      _
    $region34: #{residual_block.5} parent=5 // pred_check_branch
      %176 = sbr.rel (%p173) target = $region36
    $region35: #{residual_block.5} parent=5 // pred_region
      %s177 = ssub.s32 %s10, 1
      %p178 = scmp.lt.s32.totalorder %s15, 1
      %s179 = scalar_select %p178, %s15, 1
      %s180 = smul.addr %s179, 32
      %s181 = smul.addr %s180, 8
      %s182 = scalar_lea.vmem %s0, %s181
      %p183 = pneg %p36
      %p184 = pneg %p33
      %p185 = scmp.lt.s32.totalorder %s15, 1
      %s186 = scalar_select %p185, %s15, 1
      %s187 = smul.addr %s186, 32
      %s188 = smul.addr %s187, 8
      %s189 = scalar_lea.vmem %s1, %s188
      %p190 = pneg %p62
      %p191 = pneg %p59
      %p192 = pneg %p83
      %p193 = pneg %p80
      %p194 = pneg %p104
      %p195 = pneg %p101
      %p196 = pneg %p130
      %p197 = pneg %p127
      %p198 = scmp.lt.s32.totalorder %s15, 1
      %s199 = scalar_select %p198, %s15, 1
      %s200 = smul.addr %s199, 32
      %s201 = smul.addr %s200, 8
      %s202 = scalar_lea.vmem %s4, %s201
      %p203 = scmp.lt.s32.totalorder %s15, 1
      %s204 = scalar_select %p203, %s15, 1
      %s205 = smul.addr %s204, 32
      %s206 = smul.addr %s205, 8
      %s207 = scalar_lea.vmem %s0, %s206
      %p208 = scmp.lt.s32.totalorder %s15, 1
      %s209 = scalar_select %p208, %s15, 1
      %s210 = smul.addr %s209, 32
      %s211 = smul.addr %s210, 8
      %s212 = scalar_lea.vmem %s1, %s211
      %p213 = scmp.lt.s32.totalorder %s15, 1
      %s214 = scalar_select %p213, %s15, 1
      %s215 = smul.addr %s214, 32
      %s216 = smul.addr %s215, 8
      %s217 = scalar_lea.vmem %s4, %s216
      %v218 = vld [vmem:[%s2] sm:$0x1]
      %v219 = vld [vmem:[%s3] sm:$0x1]
      %v220 = vld [vmem:[%s207] sm:$0xff]
      %v221 = vld [vmem:[%s207 + $0x8] sm:$0xff]
      %v222 = vld [vmem:[%s207 + $0x10] sm:$0xff]
      %v223 = vld [vmem:[%s207 + $0x18] sm:$0xff]
      %v224 = vld [vmem:[%s207 + $0x20] sm:$0xff]
      %v225 = vld [vmem:[%s207 + $0x28] sm:$0xff]
      %v226 = vld [vmem:[%s207 + $0x30] sm:$0xff]
      %v227 = vld [vmem:[%s207 + $0x38] sm:$0xff]
      %v228 = vld [vmem:[%s207 + $0x40] sm:$0xff]
      %v229 = vld [vmem:[%s207 + $0x48] sm:$0xff]
      %v230 = vld [vmem:[%s207 + $0x50] sm:$0xff]
      %v231 = vld [vmem:[%s207 + $0x58] sm:$0xff]
      %v232 = vld [vmem:[%s207 + $0x60] sm:$0xff]
      %v233 = vld [vmem:[%s207 + $0x68] sm:$0xff]
      %v234 = vld [vmem:[%s207 + $0x70] sm:$0xff]
      %v235 = vld [vmem:[%s207 + $0x78] sm:$0xff]
      %v236 = vld [vmem:[%s207 + $0x80] sm:$0xff]
      %v237 = vld [vmem:[%s207 + $0x88] sm:$0xff]
      %v238 = vld [vmem:[%s207 + $0x90] sm:$0xff]
      %v239 = vld [vmem:[%s207 + $0x98] sm:$0xff]
      %v240 = vld [vmem:[%s207 + $0xa0] sm:$0xff]
      %v241 = vld [vmem:[%s207 + $0xa8] sm:$0xff]
      %v242 = vld [vmem:[%s207 + $0xb0] sm:$0xff]
      %v243 = vld [vmem:[%s207 + $0xb8] sm:$0xff]
      %v244 = vld [vmem:[%s207 + $0xc0] sm:$0xff]
      %v245 = vld [vmem:[%s207 + $0xc8] sm:$0xff]
      %v246 = vld [vmem:[%s207 + $0xd0] sm:$0xff]
      %v247 = vld [vmem:[%s207 + $0xd8] sm:$0xff]
      %v248 = vld [vmem:[%s207 + $0xe0] sm:$0xff]
      %v249 = vld [vmem:[%s207 + $0xe8] sm:$0xff]
      %v250 = vld [vmem:[%s207 + $0xf0] sm:$0xff]
      %v251 = vld [vmem:[%s207 + $0xf8] sm:$0xff]
      %v253 = vlaneseq
      %v254 = vshrl.u32 %v253, 7
      %v255 = vsub.s32 0, %v254
      %v256 = vrot.slane %v218, %v255
      %v258 = vmul.f32 %v220, %v256
      %v259 = vmul.f32 %v221, %v256
      %v260 = vmul.f32 %v222, %v256
      %v261 = vmul.f32 %v223, %v256
      %v262 = vmul.f32 %v224, %v256
      %v263 = vmul.f32 %v225, %v256
      %v264 = vmul.f32 %v226, %v256
      %v265 = vmul.f32 %v227, %v256
      %v266 = vmul.f32 %v228, %v256
      %v267 = vmul.f32 %v229, %v256
      %v268 = vmul.f32 %v230, %v256
      %v269 = vmul.f32 %v231, %v256
      %v270 = vmul.f32 %v232, %v256
      %v271 = vmul.f32 %v233, %v256
      %v272 = vmul.f32 %v234, %v256
      %v273 = vmul.f32 %v235, %v256
      %v274 = vmul.f32 %v236, %v256
      %v275 = vmul.f32 %v237, %v256
      %v276 = vmul.f32 %v238, %v256
      %v277 = vmul.f32 %v239, %v256
      %v278 = vmul.f32 %v240, %v256
      %v279 = vmul.f32 %v241, %v256
      %v280 = vmul.f32 %v242, %v256
      %v281 = vmul.f32 %v243, %v256
      %v282 = vmul.f32 %v244, %v256
      %v283 = vmul.f32 %v245, %v256
      %v284 = vmul.f32 %v246, %v256
      %v285 = vmul.f32 %v247, %v256
      %v286 = vmul.f32 %v248, %v256
      %v287 = vmul.f32 %v249, %v256
      %v288 = vmul.f32 %v250, %v256
      %v289 = vmul.f32 %v251, %v256
      %v291 = vlaneseq
      %v292 = vshrl.u32 %v291, 7
      %v293 = vsub.s32 0, %v292
      %v294 = vrot.slane %v219, %v293
      %v296 = vadd.f32 %v258, %v294
      %v297 = vadd.f32 %v259, %v294
      %v298 = vadd.f32 %v260, %v294
      %v299 = vadd.f32 %v261, %v294
      %v300 = vadd.f32 %v262, %v294
      %v301 = vadd.f32 %v263, %v294
      %v302 = vadd.f32 %v264, %v294
      %v303 = vadd.f32 %v265, %v294
      %v304 = vadd.f32 %v266, %v294
      %v305 = vadd.f32 %v267, %v294
      %v306 = vadd.f32 %v268, %v294
      %v307 = vadd.f32 %v269, %v294
      %v308 = vadd.f32 %v270, %v294
      %v309 = vadd.f32 %v271, %v294
      %v310 = vadd.f32 %v272, %v294
      %v311 = vadd.f32 %v273, %v294
      %v312 = vadd.f32 %v274, %v294
      %v313 = vadd.f32 %v275, %v294
      %v314 = vadd.f32 %v276, %v294
      %v315 = vadd.f32 %v277, %v294
      %v316 = vadd.f32 %v278, %v294
      %v317 = vadd.f32 %v279, %v294
      %v318 = vadd.f32 %v280, %v294
      %v319 = vadd.f32 %v281, %v294
      %v320 = vadd.f32 %v282, %v294
      %v321 = vadd.f32 %v283, %v294
      %v322 = vadd.f32 %v284, %v294
      %v323 = vadd.f32 %v285, %v294
      %v324 = vadd.f32 %v286, %v294
      %v325 = vadd.f32 %v287, %v294
      %v326 = vadd.f32 %v288, %v294
      %v327 = vadd.f32 %v289, %v294
      %v328 = vld [vmem:[%s212] sm:$0xff]
      %v329 = vld [vmem:[%s212 + $0x8] sm:$0xff]
      %v330 = vld [vmem:[%s212 + $0x10] sm:$0xff]
      %v331 = vld [vmem:[%s212 + $0x18] sm:$0xff]
      %v332 = vld [vmem:[%s212 + $0x20] sm:$0xff]
      %v333 = vld [vmem:[%s212 + $0x28] sm:$0xff]
      %v334 = vld [vmem:[%s212 + $0x30] sm:$0xff]
      %v335 = vld [vmem:[%s212 + $0x38] sm:$0xff]
      %v336 = vld [vmem:[%s212 + $0x40] sm:$0xff]
      %v337 = vld [vmem:[%s212 + $0x48] sm:$0xff]
      %v338 = vld [vmem:[%s212 + $0x50] sm:$0xff]
      %v339 = vld [vmem:[%s212 + $0x58] sm:$0xff]
      %v340 = vld [vmem:[%s212 + $0x60] sm:$0xff]
      %v341 = vld [vmem:[%s212 + $0x68] sm:$0xff]
      %v342 = vld [vmem:[%s212 + $0x70] sm:$0xff]
      %v343 = vld [vmem:[%s212 + $0x78] sm:$0xff]
      %v344 = vld [vmem:[%s212 + $0x80] sm:$0xff]
      %v345 = vld [vmem:[%s212 + $0x88] sm:$0xff]
      %v346 = vld [vmem:[%s212 + $0x90] sm:$0xff]
      %v347 = vld [vmem:[%s212 + $0x98] sm:$0xff]
      %v348 = vld [vmem:[%s212 + $0xa0] sm:$0xff]
      %v349 = vld [vmem:[%s212 + $0xa8] sm:$0xff]
      %v350 = vld [vmem:[%s212 + $0xb0] sm:$0xff]
      %v351 = vld [vmem:[%s212 + $0xb8] sm:$0xff]
      %v352 = vld [vmem:[%s212 + $0xc0] sm:$0xff]
      %v353 = vld [vmem:[%s212 + $0xc8] sm:$0xff]
      %v354 = vld [vmem:[%s212 + $0xd0] sm:$0xff]
      %v355 = vld [vmem:[%s212 + $0xd8] sm:$0xff]
      %v356 = vld [vmem:[%s212 + $0xe0] sm:$0xff]
      %v357 = vld [vmem:[%s212 + $0xe8] sm:$0xff]
      %v358 = vld [vmem:[%s212 + $0xf0] sm:$0xff]
      %v359 = vld [vmem:[%s212 + $0xf8] sm:$0xff]
      %v360 = vadd.f32 %v296, %v328
      %v361 = vadd.f32 %v297, %v329
      %v362 = vadd.f32 %v298, %v330
      %v363 = vadd.f32 %v299, %v331
      %v364 = vadd.f32 %v300, %v332
      %v365 = vadd.f32 %v301, %v333
      %v366 = vadd.f32 %v302, %v334
      %v367 = vadd.f32 %v303, %v335
      %v368 = vadd.f32 %v304, %v336
      %v369 = vadd.f32 %v305, %v337
      %v370 = vadd.f32 %v306, %v338
      %v371 = vadd.f32 %v307, %v339
      %v372 = vadd.f32 %v308, %v340
      %v373 = vadd.f32 %v309, %v341
      %v374 = vadd.f32 %v310, %v342
      %v375 = vadd.f32 %v311, %v343
      %v376 = vadd.f32 %v312, %v344
      %v377 = vadd.f32 %v313, %v345
      %v378 = vadd.f32 %v314, %v346
      %v379 = vadd.f32 %v315, %v347
      %v380 = vadd.f32 %v316, %v348
      %v381 = vadd.f32 %v317, %v349
      %v382 = vadd.f32 %v318, %v350
      %v383 = vadd.f32 %v319, %v351
      %v384 = vadd.f32 %v320, %v352
      %v385 = vadd.f32 %v321, %v353
      %v386 = vadd.f32 %v322, %v354
      %v387 = vadd.f32 %v323, %v355
      %v388 = vadd.f32 %v324, %v356
      %v389 = vadd.f32 %v325, %v357
      %v390 = vadd.f32 %v326, %v358
      %v391 = vadd.f32 %v327, %v359
      %v392 = vmax.f32 %v360, 0.0
      %v393 = vmax.f32 %v361, 0.0
      %v394 = vmax.f32 %v362, 0.0
      %v395 = vmax.f32 %v363, 0.0
      %v396 = vmax.f32 %v364, 0.0
      %v397 = vmax.f32 %v365, 0.0
      %v398 = vmax.f32 %v366, 0.0
      %v399 = vmax.f32 %v367, 0.0
      %v400 = vmax.f32 %v368, 0.0
      %v401 = vmax.f32 %v369, 0.0
      %v402 = vmax.f32 %v370, 0.0
      %v403 = vmax.f32 %v371, 0.0
      %v404 = vmax.f32 %v372, 0.0
      %v405 = vmax.f32 %v373, 0.0
      %v406 = vmax.f32 %v374, 0.0
      %v407 = vmax.f32 %v375, 0.0
      %v408 = vmax.f32 %v376, 0.0
      %v409 = vmax.f32 %v377, 0.0
      %v410 = vmax.f32 %v378, 0.0
      %v411 = vmax.f32 %v379, 0.0
      %v412 = vmax.f32 %v380, 0.0
      %v413 = vmax.f32 %v381, 0.0
      %v414 = vmax.f32 %v382, 0.0
      %v415 = vmax.f32 %v383, 0.0
      %v416 = vmax.f32 %v384, 0.0
      %v417 = vmax.f32 %v385, 0.0
      %v418 = vmax.f32 %v386, 0.0
      %v419 = vmax.f32 %v387, 0.0
      %v420 = vmax.f32 %v388, 0.0
      %v421 = vmax.f32 %v389, 0.0
      %v422 = vmax.f32 %v390, 0.0
      %v423 = vmax.f32 %v391, 0.0
      %vm424 = vcmask 31744
      %425 = vst.msk [vmem:[%s217] sm:$0xff] %vm424, %v392
      %426 = vst.msk [vmem:[%s217 + $0x8] sm:$0xff] %vm424, %v393
      %427 = vst.msk [vmem:[%s217 + $0x10] sm:$0xff] %vm424, %v394
      %428 = vst.msk [vmem:[%s217 + $0x18] sm:$0xff] %vm424, %v395
      %429 = vst.msk [vmem:[%s217 + $0x20] sm:$0xff] %vm424, %v396
      %430 = vst.msk [vmem:[%s217 + $0x28] sm:$0xff] %vm424, %v397
      %431 = vst.msk [vmem:[%s217 + $0x30] sm:$0xff] %vm424, %v398
      %432 = vst.msk [vmem:[%s217 + $0x38] sm:$0xff] %vm424, %v399
      %433 = vst.msk [vmem:[%s217 + $0x40] sm:$0xff] %vm424, %v400
      %434 = vst.msk [vmem:[%s217 + $0x48] sm:$0xff] %vm424, %v401
      %435 = vst.msk [vmem:[%s217 + $0x50] sm:$0xff] %vm424, %v402
      %436 = vst.msk [vmem:[%s217 + $0x58] sm:$0xff] %vm424, %v403
      %437 = vst.msk [vmem:[%s217 + $0x60] sm:$0xff] %vm424, %v404
      %438 = vst.msk [vmem:[%s217 + $0x68] sm:$0xff] %vm424, %v405
      %439 = vst.msk [vmem:[%s217 + $0x70] sm:$0xff] %vm424, %v406
      %440 = vst.msk [vmem:[%s217 + $0x78] sm:$0xff] %vm424, %v407
      %441 = vst.msk [vmem:[%s217 + $0x80] sm:$0xff] %vm424, %v408
      %442 = vst.msk [vmem:[%s217 + $0x88] sm:$0xff] %vm424, %v409
      %443 = vst.msk [vmem:[%s217 + $0x90] sm:$0xff] %vm424, %v410
      %444 = vst.msk [vmem:[%s217 + $0x98] sm:$0xff] %vm424, %v411
      %445 = vst.msk [vmem:[%s217 + $0xa0] sm:$0xff] %vm424, %v412
      %446 = vst.msk [vmem:[%s217 + $0xa8] sm:$0xff] %vm424, %v413
      %447 = vst.msk [vmem:[%s217 + $0xb0] sm:$0xff] %vm424, %v414
      %448 = vst.msk [vmem:[%s217 + $0xb8] sm:$0xff] %vm424, %v415
      %449 = vst.msk [vmem:[%s217 + $0xc0] sm:$0xff] %vm424, %v416
      %450 = vst.msk [vmem:[%s217 + $0xc8] sm:$0xff] %vm424, %v417
      %451 = vst.msk [vmem:[%s217 + $0xd0] sm:$0xff] %vm424, %v418
      %452 = vst.msk [vmem:[%s217 + $0xd8] sm:$0xff] %vm424, %v419
      %453 = vst.msk [vmem:[%s217 + $0xe0] sm:$0xff] %vm424, %v420
      %454 = vst.msk [vmem:[%s217 + $0xe8] sm:$0xff] %vm424, %v421
      %455 = vst.msk [vmem:[%s217 + $0xf0] sm:$0xff] %vm424, %v422
      %456 = vst.msk [vmem:[%s217 + $0xf8] sm:$0xff] %vm424, %v423
      %p457 = scmp.lt.s32.totalorder %s15, 1
      %s458 = scalar_select %p457, %s15, 1
      %s459 = smul.addr %s458, 32
      %s460 = smul.addr %s459, 8
      %s461 = scalar_lea.vmem %s4, %s460
      // Predicated region
      $region37: #{residual_block.5} parent=35 // pred_check
        %p462 = pneg %p127
      $region38: #{residual_block.5} parent=35 // pred_check_branch
        %464 = sbr.rel (%p462) target = $region40
      $region39: #{residual_block.5} parent=35 // pred_region
        _
      $region40: #{residual_block.5} parent=35 // pred_fallthru
        _
    $region36: #{residual_block.5} parent=5 // pred_fallthru
      _
    %p465 = scmp.le.s32.totalorder 2, %s10
    // Predicated region
    $region41: #{residual_block.5} parent=5 // pred_check
      %p466 = pneg %p465
    $region42: #{residual_block.5} parent=5 // pred_check_branch
      %468 = sbr.rel (%p466) target = $region44
    $region43: #{residual_block.5} parent=5 // pred_region
      %s469 = ssub.s32 %s10, 2
      // Predicated region
      $region45: #{residual_block.5} parent=43 // pred_check
        %p470 = pneg %p133
      $region46: #{residual_block.5} parent=43 // pred_check_branch
        %472 = sbr.rel (%p470) target = $region48
      $region47: #{residual_block.5} parent=43 // pred_region
        %p473 = scmp.lt.s32.totalorder %s16, 1
        %s474 = scalar_select %p473, %s16, 1
        %s475 = smul.addr %s474, 32
        %s476 = smul.addr %s475, 8
        %s477 = scalar_lea.vmem %s4, %s476
      $region48: #{residual_block.5} parent=43 // pred_fallthru
        _
    $region44: #{residual_block.5} parent=5 // pred_fallthru
      _
  $region6: #{residual_block.5} parent=0 // loop_footer
    %s14 = sadd.s32 1, %s10
  $region7: #{residual_block.5} parent=0 // loop_footer_branch
    %9 = sbr.rel target = $region3
  $region8: #{residual_block.5} parent=0 // loop_exit
    _

// kernel: residual_block.3
$region0: #{residual_block.3}
  #allocation0 [shape = 'u32[]', space=smem, size = 0x4, offset = 0x4, fixed_abs, tag = 'smem constant byte address 0x4 - core index']
  #allocation1 [shape = 'u32[144,128]{1,0:T(1,128)}', space=vmem, size = 0x12000, scoped, tag = 'internal scratch']
  %s0 = inlined_call_operand.vmem [shape: f32[2,16,16,4], index: 0, kind: input, shape index: {}]
  %s1 = inlined_call_operand.vmem [shape: f32[36,4], index: 1, kind: input, shape index: {}]
  %s2 = inlined_call_operand.vmem [shape: f32[2,16,16,4], index: 2, kind: output, shape index: {0}]
  %s3 = inlined_call_operand.vmem [shape: f32[2,2,4], index: 3, kind: output, shape index: {1}]
  %4 = xla_tuple %s2, %s3
  %s5 = sld [smem:[#allocation0]]
  $region49: #{residual_block.3} parent=0
    _
  %s7 = ssub.s32 1, %s5
  %s8 = scalar_select 0, %s7, %s5
  loop: start=0, step=1, limit=4
  $region2: #{residual_block.3} parent=0 // loop_pre_header
    _
  $region3: #{residual_block.3} parent=0 // loop_header
    %s10 = sphi 0, %s14
    %p11 = scmp.ge.s32.totalorder %s10, 4
    %s20 = sphi 0, %s22
    %s23 = sphi 0, %s20
    %s24 = sphi 0, %s23
    %s40 = sphi 0, %s24
    %s44 = sphi 0, %s44
    %s46 = sphi 0, %s44
    %s47 = sphi 0, %s46
    %s61 = sphi 0, %s47
    %s67 = sphi 0, %s69
    %s70 = sphi 0, %s67
    %s71 = sphi 0, %s70
    %s87 = sphi 0, %s71
    %s93 = sphi 0, %s95
    %s96 = sphi 0, %s93
    %s97 = sphi 0, %s96
    %s113 = sphi 0, %s97
  $region4: #{residual_block.3} parent=0 // loop_header_branch
    %13 = sbr.rel (%p11) target = $region8
  $region5: #{residual_block.3} parent=0 // loop_body
    %s15 = ssub.s32 %s10, 1
    %s16 = ssub.s32 %s10, 2
    %s17 = sadd.s32 %s10, 1
    %s18 = ssub.s32 %s10, %s17
    %p19 = scmp.eq.s32.totalorder %s18, 0
    %s21 = sadd.s32 %s20, 1
    %s22 = scalar_select %p19, %s20, %s21
    %p25 = pneg %p19
    %p26 = scmp.eq.s32.totalorder %s10, 1
    %p27 = por %p25, %p26
    %p28 = scmp.ne.s32.totalorder %s20, %s23
    %p29 = scmp.eq.s32.totalorder %s10, 0
    %p30 = por %p28, %p29
    %p31 = scmp.ne.s32.totalorder %s20, %s23
    %p32 = scmp.eq.s32.totalorder %s15, 1
    %p33 = por %p31, %p32
    %p34 = scmp.ne.s32.totalorder %s23, %s24
    %p35 = scmp.eq.s32.totalorder %s15, 0
    %p36 = por %p34, %p35
    %p37 = scmp.ne.s32.totalorder %s23, %s24
    %p38 = scmp.eq.s32.totalorder %s16, 1
    %p39 = por %p37, %p38
    %p41 = scmp.ne.s32.totalorder %s24, %s40
    %p42 = scmp.eq.s32.totalorder %s16, 0
    %p43 = por %p41, %p42
    %s45 = sadd.s32 %s44, 1
    %p48 = scmp.eq.s32.totalorder %s10, 1
    %p49 = scmp.ne.s32.totalorder %s44, %s46
    %p50 = scmp.eq.s32.totalorder %s10, 0
    %p51 = por %p49, %p50
    %p52 = scmp.ne.s32.totalorder %s44, %s46
    %p53 = scmp.eq.s32.totalorder %s15, 1
    %p54 = por %p52, %p53
    %p55 = scmp.ne.s32.totalorder %s46, %s47
    %p56 = scmp.eq.s32.totalorder %s15, 0
    %p57 = por %p55, %p56
    %p58 = scmp.ne.s32.totalorder %s46, %s47
    %p59 = scmp.eq.s32.totalorder %s16, 1
    %p60 = por %p58, %p59
    %p62 = scmp.ne.s32.totalorder %s47, %s61
    %p63 = scmp.eq.s32.totalorder %s16, 0
    %p64 = por %p62, %p63
    %s65 = ssub.s32 %s10, %s17
    %p66 = scmp.eq.s32.totalorder %s65, 0
    %s68 = sadd.s32 %s67, 1
    %s69 = scalar_select %p66, %s67, %s68
    %p72 = pneg %p66
    %p73 = scmp.eq.s32.totalorder %s10, 1
    %p74 = por %p72, %p73
    %p75 = scmp.ne.s32.totalorder %s67, %s70
    %p76 = scmp.eq.s32.totalorder %s10, 0
    %p77 = por %p75, %p76
    %p78 = scmp.ne.s32.totalorder %s67, %s70
    %p79 = scmp.eq.s32.totalorder %s15, 1
    %p80 = por %p78, %p79
    %p81 = scmp.ne.s32.totalorder %s70, %s71
    %p82 = scmp.eq.s32.totalorder %s15, 0
    %p83 = por %p81, %p82
    %p84 = scmp.ne.s32.totalorder %s70, %s71
    %p85 = scmp.eq.s32.totalorder %s16, 1
    %p86 = por %p84, %p85
    %p88 = scmp.ne.s32.totalorder %s71, %s87
    %p89 = scmp.eq.s32.totalorder %s16, 0
    %p90 = por %p88, %p89
    %s91 = ssub.s32 %s10, %s17
    %p92 = scmp.eq.s32.totalorder %s91, 0
    %s94 = sadd.s32 %s93, 1
    %s95 = scalar_select %p92, %s93, %s94
    %p98 = pneg %p92
    %p99 = scmp.eq.s32.totalorder %s10, 1
    %p100 = por %p98, %p99
    %p101 = scmp.ne.s32.totalorder %s93, %s96
    %p102 = scmp.eq.s32.totalorder %s10, 0
    %p103 = por %p101, %p102
    %p104 = scmp.ne.s32.totalorder %s93, %s96
    %p105 = scmp.eq.s32.totalorder %s15, 1
    %p106 = por %p104, %p105
    %p107 = scmp.ne.s32.totalorder %s96, %s97
    %p108 = scmp.eq.s32.totalorder %s15, 0
    %p109 = por %p107, %p108
    %p110 = scmp.ne.s32.totalorder %s96, %s97
    %p111 = scmp.eq.s32.totalorder %s16, 1
    %p112 = por %p110, %p111
    %p114 = scmp.ne.s32.totalorder %s97, %s113
    %p115 = scmp.eq.s32.totalorder %s16, 0
    %p116 = por %p114, %p115
    %p117 = scmp.le.s32.totalorder 1, %s10
    %p118 = scmp.lt.s32.totalorder %s10, 3
    %p119 = pnand %p117, %p118
    %p120 = pneg %p119
    // Predicated region
    $region9: #{residual_block.3} parent=5 // pred_check
      _
    $region10: #{residual_block.3} parent=5 // pred_check_branch
      %122 = sbr.rel (%p119) target = $region12
    $region11: #{residual_block.3} parent=5 // pred_region
      %s123 = ssub.s32 %s10, 1
      // Predicated region
      $region13: #{residual_block.3} parent=11 // pred_check
        %p124 = pneg %p57
      $region14: #{residual_block.3} parent=11 // pred_check_branch
        %126 = sbr.rel (%p124) target = $region16
      $region15: #{residual_block.3} parent=11 // pred_region
        _
      $region16: #{residual_block.3} parent=11 // pred_fallthru
        _
    $region12: #{residual_block.3} parent=5 // pred_fallthru
      _
    %p127 = scmp.lt.s32.totalorder %s10, 2
    // Predicated region
    $region17: #{residual_block.3} parent=5 // pred_check
      %p128 = pneg %p127
    $region18: #{residual_block.3} parent=5 // pred_check_branch
      %130 = sbr.rel (%p128) target = $region20
    $region19: #{residual_block.3} parent=5 // pred_region
      // Predicated region
      $region21: #{residual_block.3} parent=19 // pred_check
        %p131 = pneg %p30
      $region22: #{residual_block.3} parent=19 // pred_check_branch
        %133 = sbr.rel (%p131) target = $region24
      $region23: #{residual_block.3} parent=19 // pred_region
        %p134 = scmp.lt.s32.totalorder %s10, 1
        %s135 = scalar_select %p134, %s10, 1
        %s136 = smul.addr %s135, 32
        %s137 = smul.addr %s136, 8
        %s138 = scalar_lea.vmem %s0, %s137
      $region24: #{residual_block.3} parent=19 // pred_fallthru
        _
    $region20: #{residual_block.3} parent=5 // pred_fallthru
      _
    %p139 = scmp.le.s32.totalorder 1, %s10
    %p140 = scmp.lt.s32.totalorder %s10, 3
    %p141 = pnand %p139, %p140
    %p142 = pneg %p141
    // Predicated region
    $region25: #{residual_block.3} parent=5 // pred_check
      _
    $region26: #{residual_block.3} parent=5 // pred_check_branch
      %144 = sbr.rel (%p141) target = $region28
    $region27: #{residual_block.3} parent=5 // pred_region
      %s145 = ssub.s32 %s10, 1
      %p146 = scmp.lt.s32.totalorder %s15, 1
      %s147 = scalar_select %p146, %s15, 1
      %s148 = smul.addr %s147, 32
      %s149 = smul.addr %s148, 8
      %s150 = scalar_lea.vmem %s0, %s149
      %p151 = pneg %p36
      %p152 = pneg %p33
      %p153 = pneg %p57
      %p154 = pneg %p54
      %p155 = pneg %p83
      %p156 = pneg %p80
      %p157 = scmp.lt.s32.totalorder %s15, 1
      %s158 = scalar_select %p157, %s15, 1
      %s159 = smul.addr %s158, 32
      %s160 = smul.addr %s159, 8
      %s161 = scalar_lea.vmem %s2, %s160
      %p162 = pneg %p109
      %p163 = pneg %p106
      %p164 = scmp.lt.s32.totalorder %s15, 1
      %s165 = scalar_select %p164, %s15, 1
      %s166 = smul.addr %s165, 2
      %s167 = scalar_lea.vmem %s3, %s166
      %p168 = scmp.lt.s32.totalorder %s15, 1
      %s169 = scalar_select %p168, %s15, 1
      %s170 = smul.addr %s169, 32
      %s171 = smul.addr %s170, 8
      %s172 = scalar_lea.vmem %s0, %s171
      %p173 = scmp.lt.s32.totalorder %s15, 1
      %s174 = scalar_select %p173, %s15, 1
      %s175 = smul.addr %s174, 32
      %s176 = smul.addr %s175, 8
      %s177 = scalar_lea.vmem %s2, %s176
      %p178 = scmp.lt.s32.totalorder %s15, 1
      %s179 = scalar_select %p178, %s15, 1
      %s180 = smul.addr %s179, 2
      %s181 = scalar_lea.vmem %s3, %s180
      %v182 = vld [vmem:[%s172] sm:$0xff]
      %v183 = vld [vmem:[%s172 + $0x8] sm:$0xff]
      %v184 = vld [vmem:[%s172 + $0x10] sm:$0xff]
      %v185 = vld [vmem:[%s172 + $0x18] sm:$0xff]
      %v186 = vld [vmem:[%s172 + $0x20] sm:$0xff]
      %v187 = vld [vmem:[%s172 + $0x28] sm:$0xff]
      %v188 = vld [vmem:[%s172 + $0x30] sm:$0xff]
      %v189 = vld [vmem:[%s172 + $0x38] sm:$0xff]
      %v190 = vld [vmem:[%s172 + $0x40] sm:$0xff]
      %v191 = vld [vmem:[%s172 + $0x48] sm:$0xff]
      %v192 = vld [vmem:[%s172 + $0x50] sm:$0xff]
      %v193 = vld [vmem:[%s172 + $0x58] sm:$0xff]
      %v194 = vld [vmem:[%s172 + $0x60] sm:$0xff]
      %v195 = vld [vmem:[%s172 + $0x68] sm:$0xff]
      %v196 = vld [vmem:[%s172 + $0x70] sm:$0xff]
      %v197 = vld [vmem:[%s172 + $0x78] sm:$0xff]
      %v198 = vld [vmem:[%s172 + $0x80] sm:$0xff]
      %v199 = vld [vmem:[%s172 + $0x88] sm:$0xff]
      %v200 = vld [vmem:[%s172 + $0x90] sm:$0xff]
      %v201 = vld [vmem:[%s172 + $0x98] sm:$0xff]
      %v202 = vld [vmem:[%s172 + $0xa0] sm:$0xff]
      %v203 = vld [vmem:[%s172 + $0xa8] sm:$0xff]
      %v204 = vld [vmem:[%s172 + $0xb0] sm:$0xff]
      %v205 = vld [vmem:[%s172 + $0xb8] sm:$0xff]
      %v206 = vld [vmem:[%s172 + $0xc0] sm:$0xff]
      %v207 = vld [vmem:[%s172 + $0xc8] sm:$0xff]
      %v208 = vld [vmem:[%s172 + $0xd0] sm:$0xff]
      %v209 = vld [vmem:[%s172 + $0xd8] sm:$0xff]
      %v210 = vld [vmem:[%s172 + $0xe0] sm:$0xff]
      %v211 = vld [vmem:[%s172 + $0xe8] sm:$0xff]
      %v212 = vld [vmem:[%s172 + $0xf0] sm:$0xff]
      %v213 = vld [vmem:[%s172 + $0xf8] sm:$0xff]
      %vm247 = vcmask 1040384
      %v248 = vrot.slane 0.0, 7
      %v249 = vsel %vm247, %v248, %v248
      %v250 = vrot.slane %v182, 7
      %v251 = vrot.slane %v183, 7
      %v252 = vsel %vm247, %v250, %v251
      %v253 = vrot.slane %v184, 7
      %v254 = vrot.slane %v185, 7
      %v255 = vsel %vm247, %v253, %v254
      %v256 = vrot.slane %v186, 7
      %v257 = vrot.slane %v187, 7
      %v258 = vsel %vm247, %v256, %v257
      %v259 = vrot.slane %v188, 7
      %v260 = vrot.slane %v189, 7
      %v261 = vsel %vm247, %v259, %v260
      %v262 = vrot.slane %v190, 7
      %v263 = vrot.slane %v191, 7
      %v264 = vsel %vm247, %v262, %v263
      %v265 = vrot.slane %v192, 7
      %v266 = vrot.slane %v193, 7
      %v267 = vsel %vm247, %v265, %v266
      %v268 = vrot.slane %v194, 7
      %v269 = vrot.slane %v195, 7
      %v270 = vsel %vm247, %v268, %v269
      %v271 = vrot.slane %v196, 7
      %v272 = vrot.slane %v197, 7
      %v273 = vsel %vm247, %v271, %v272
      %v274 = vrot.slane %v198, 7
      %v275 = vrot.slane %v199, 7
      %v276 = vsel %vm247, %v274, %v275
      %v277 = vrot.slane %v200, 7
      %v278 = vrot.slane %v201, 7
      %v279 = vsel %vm247, %v277, %v278
      %v280 = vrot.slane %v202, 7
      %v281 = vrot.slane %v203, 7
      %v282 = vsel %vm247, %v280, %v281
      %v283 = vrot.slane %v204, 7
      %v284 = vrot.slane %v205, 7
      %v285 = vsel %vm247, %v283, %v284
      %v286 = vrot.slane %v206, 7
      %v287 = vrot.slane %v207, 7
      %v288 = vsel %vm247, %v286, %v287
      %v289 = vrot.slane %v208, 7
      %v290 = vrot.slane %v209, 7
      %v291 = vsel %vm247, %v289, %v290
      %v292 = vrot.slane %v210, 7
      %v293 = vrot.slane %v211, 7
      %v294 = vsel %vm247, %v292, %v293
      %v295 = vrot.slane %v212, 7
      %v296 = vrot.slane %v213, 7
      %v297 = vsel %vm247, %v295, %v296
      %v347 = vsel %vm247, 0.0, %v248
      %v348 = vsel %vm247, 0.0, %v250
      %v349 = vsel %vm247, 0.0, %v253
      %v350 = vsel %vm247, 0.0, %v256
      %v351 = vsel %vm247, 0.0, %v259
      %v352 = vsel %vm247, 0.0, %v262
      %v353 = vsel %vm247, 0.0, %v265
      %v354 = vsel %vm247, 0.0, %v268
      %v355 = vsel %vm247, 0.0, %v271
      %v356 = vsel %vm247, 0.0, %v274
      %v357 = vsel %vm247, 0.0, %v277
      %v358 = vsel %vm247, 0.0, %v280
      %v359 = vsel %vm247, 0.0, %v283
      %v360 = vsel %vm247, 0.0, %v286
      %v361 = vsel %vm247, 0.0, %v289
      %v362 = vsel %vm247, 0.0, %v292
      %v363 = vsel %vm247, 0.0, %v295
      %v364 = vsel %vm247, %v248, 0.0
      %v365 = vsel %vm247, %v251, 0.0
      %v366 = vsel %vm247, %v254, 0.0
      %v367 = vsel %vm247, %v257, 0.0
      %v368 = vsel %vm247, %v260, 0.0
      %v369 = vsel %vm247, %v263, 0.0
      %v370 = vsel %vm247, %v266, 0.0
      %v371 = vsel %vm247, %v269, 0.0
      %v372 = vsel %vm247, %v272, 0.0
      %v373 = vsel %vm247, %v275, 0.0
      %v374 = vsel %vm247, %v278, 0.0
      %v375 = vsel %vm247, %v281, 0.0
      %v376 = vsel %vm247, %v284, 0.0
      %v377 = vsel %vm247, %v287, 0.0
      %v378 = vsel %vm247, %v290, 0.0
      %v379 = vsel %vm247, %v293, 0.0
      %v380 = vsel %vm247, %v296, 0.0
      %vm413 = vcmask 1046528
      %v414 = vrot.slane %v347, 1
      %v415 = vrot.slane %v249, 1
      %v416 = vsel %vm413, %v414, %v415
      %v417 = vrot.slane %v364, 1
      %v418 = vsel %vm413, %v415, %v417
      %v419 = vrot.slane %v348, 1
      %v420 = vrot.slane %v252, 1
      %v421 = vsel %vm413, %v419, %v420
      %v422 = vrot.slane %v365, 1
      %v423 = vsel %vm413, %v420, %v422
      %v424 = vrot.slane %v349, 1
      %v425 = vrot.slane %v255, 1
      %v426 = vsel %vm413, %v424, %v425
      %v427 = vrot.slane %v366, 1
      %v428 = vsel %vm413, %v425, %v427
      %v429 = vrot.slane %v350, 1
      %v430 = vrot.slane %v258, 1
      %v431 = vsel %vm413, %v429, %v430
      %v432 = vrot.slane %v367, 1
      %v433 = vsel %vm413, %v430, %v432
      %v434 = vrot.slane %v351, 1
      %v435 = vrot.slane %v261, 1
      %v436 = vsel %vm413, %v434, %v435
      %v437 = vrot.slane %v368, 1
      %v438 = vsel %vm413, %v435, %v437
      %v439 = vrot.slane %v352, 1
      %v440 = vrot.slane %v264, 1
      %v441 = vsel %vm413, %v439, %v440
      %v442 = vrot.slane %v369, 1
      %v443 = vsel %vm413, %v440, %v442
      %v444 = vrot.slane %v353, 1
      %v445 = vrot.slane %v267, 1
      %v446 = vsel %vm413, %v444, %v445
      %v447 = vrot.slane %v370, 1
      %v448 = vsel %vm413, %v445, %v447
      %v449 = vrot.slane %v354, 1
      %v450 = vrot.slane %v270, 1
      %v451 = vsel %vm413, %v449, %v450
      %v452 = vrot.slane %v371, 1
      %v453 = vsel %vm413, %v450, %v452
      %v454 = vrot.slane %v355, 1
      %v455 = vrot.slane %v273, 1
      %v456 = vsel %vm413, %v454, %v455
      %v457 = vrot.slane %v372, 1
      %v458 = vsel %vm413, %v455, %v457
      %v459 = vrot.slane %v356, 1
      %v460 = vrot.slane %v276, 1
      %v461 = vsel %vm413, %v459, %v460
      %v462 = vrot.slane %v373, 1
      %v463 = vsel %vm413, %v460, %v462
      %v464 = vrot.slane %v357, 1
      %v465 = vrot.slane %v279, 1
      %v466 = vsel %vm413, %v464, %v465
      %v467 = vrot.slane %v374, 1
      %v468 = vsel %vm413, %v465, %v467
      %v469 = vrot.slane %v358, 1
      %v470 = vrot.slane %v282, 1
      %v471 = vsel %vm413, %v469, %v470
      %v472 = vrot.slane %v375, 1
      %v473 = vsel %vm413, %v470, %v472
      %v474 = vrot.slane %v359, 1
      %v475 = vrot.slane %v285, 1
      %v476 = vsel %vm413, %v474, %v475
      %v477 = vrot.slane %v376, 1
      %v478 = vsel %vm413, %v475, %v477
      %v479 = vrot.slane %v360, 1
      %v480 = vrot.slane %v288, 1
      %v481 = vsel %vm413, %v479, %v480
      %v482 = vrot.slane %v377, 1
      %v483 = vsel %vm413, %v480, %v482
      %v484 = vrot.slane %v361, 1
      %v485 = vrot.slane %v291, 1
      %v486 = vsel %vm413, %v484, %v485
      %v487 = vrot.slane %v378, 1
      %v488 = vsel %vm413, %v485, %v487
      %v489 = vrot.slane %v362, 1
      %v490 = vrot.slane %v294, 1
      %v491 = vsel %vm413, %v489, %v490
      %v492 = vrot.slane %v379, 1
      %v493 = vsel %vm413, %v490, %v492
      %494 = vrot.lane.b32.xlu0 %v416, 4
      %v495 = vpop.permute.xlu0 %494
      %496 = vrot.lane.b32.xlu0 %v418, 4
      %v497 = vpop.permute.xlu0 %496
      %498 = vrot.lane.b32.xlu0 %v421, 4
      %v499 = vpop.permute.xlu0 %498
      %500 = vrot.lane.b32.xlu0 %v423, 4
      %v501 = vpop.permute.xlu0 %500
      %502 = vrot.lane.b32.xlu0 %v426, 4
      %v503 = vpop.permute.xlu0 %502
      %504 = vrot.lane.b32.xlu0 %v428, 4
      %v505 = vpop.permute.xlu0 %504
      %506 = vrot.lane.b32.xlu0 %v431, 4
      %v507 = vpop.permute.xlu0 %506
      %508 = vrot.lane.b32.xlu0 %v433, 4
      %v509 = vpop.permute.xlu0 %508
      %510 = vrot.lane.b32.xlu0 %v436, 4
      %v511 = vpop.permute.xlu0 %510
      %512 = vrot.lane.b32.xlu0 %v438, 4
      %v513 = vpop.permute.xlu0 %512
      %514 = vrot.lane.b32.xlu0 %v441, 4
      %v515 = vpop.permute.xlu0 %514
      %516 = vrot.lane.b32.xlu0 %v443, 4
      %v517 = vpop.permute.xlu0 %516
      %518 = vrot.lane.b32.xlu0 %v446, 4
      %v519 = vpop.permute.xlu0 %518
      %520 = vrot.lane.b32.xlu0 %v448, 4
      %v521 = vpop.permute.xlu0 %520
      %522 = vrot.lane.b32.xlu0 %v451, 4
      %v523 = vpop.permute.xlu0 %522
      %524 = vrot.lane.b32.xlu0 %v453, 4
      %v525 = vpop.permute.xlu0 %524
      %526 = vrot.lane.b32.xlu0 %v456, 4
      %v527 = vpop.permute.xlu0 %526
      %528 = vrot.lane.b32.xlu0 %v458, 4
      %v529 = vpop.permute.xlu0 %528
      %530 = vrot.lane.b32.xlu0 %v461, 4
      %v531 = vpop.permute.xlu0 %530
      %532 = vrot.lane.b32.xlu0 %v463, 4
      %v533 = vpop.permute.xlu0 %532
      %534 = vrot.lane.b32.xlu0 %v466, 4
      %v535 = vpop.permute.xlu0 %534
      %536 = vrot.lane.b32.xlu0 %v468, 4
      %v537 = vpop.permute.xlu0 %536
      %538 = vrot.lane.b32.xlu0 %v471, 4
      %v539 = vpop.permute.xlu0 %538
      %540 = vrot.lane.b32.xlu0 %v473, 4
      %v541 = vpop.permute.xlu0 %540
      %542 = vrot.lane.b32.xlu0 %v476, 4
      %v543 = vpop.permute.xlu0 %542
      %544 = vrot.lane.b32.xlu0 %v478, 4
      %v545 = vpop.permute.xlu0 %544
      %546 = vrot.lane.b32.xlu0 %v481, 4
      %v547 = vpop.permute.xlu0 %546
      %548 = vrot.lane.b32.xlu0 %v483, 4
      %v549 = vpop.permute.xlu0 %548
      %550 = vrot.lane.b32.xlu0 %v486, 4
      %v551 = vpop.permute.xlu0 %550
      %552 = vrot.lane.b32.xlu0 %v488, 4
      %v553 = vpop.permute.xlu0 %552
      %554 = vrot.lane.b32.xlu0 %v491, 4
      %v555 = vpop.permute.xlu0 %554
      %556 = vrot.lane.b32.xlu0 %v493, 4
      %v557 = vpop.permute.xlu0 %556
      %vm590 = vcmask 1045504
      %v591 = vrot.slane %v347, 2
      %v592 = vrot.slane %v249, 2
      %v593 = vsel %vm590, %v591, %v592
      %v594 = vrot.slane %v364, 2
      %v595 = vsel %vm590, %v592, %v594
      %v596 = vrot.slane %v348, 2
      %v597 = vrot.slane %v252, 2
      %v598 = vsel %vm590, %v596, %v597
      %v599 = vrot.slane %v365, 2
      %v600 = vsel %vm590, %v597, %v599
      %v601 = vrot.slane %v349, 2
      %v602 = vrot.slane %v255, 2
      %v603 = vsel %vm590, %v601, %v602
      %v604 = vrot.slane %v366, 2
      %v605 = vsel %vm590, %v602, %v604
      %v606 = vrot.slane %v350, 2
      %v607 = vrot.slane %v258, 2
      %v608 = vsel %vm590, %v606, %v607
      %v609 = vrot.slane %v367, 2
      %v610 = vsel %vm590, %v607, %v609
      %v611 = vrot.slane %v351, 2
      %v612 = vrot.slane %v261, 2
      %v613 = vsel %vm590, %v611, %v612
      %v614 = vrot.slane %v368, 2
      %v615 = vsel %vm590, %v612, %v614
      %v616 = vrot.slane %v352, 2
      %v617 = vrot.slane %v264, 2
      %v618 = vsel %vm590, %v616, %v617
      %v619 = vrot.slane %v369, 2
      %v620 = vsel %vm590, %v617, %v619
      %v621 = vrot.slane %v353, 2
      %v622 = vrot.slane %v267, 2
      %v623 = vsel %vm590, %v621, %v622
      %v624 = vrot.slane %v370, 2
      %v625 = vsel %vm590, %v622, %v624
      %v626 = vrot.slane %v354, 2
      %v627 = vrot.slane %v270, 2
      %v628 = vsel %vm590, %v626, %v627
      %v629 = vrot.slane %v371, 2
      %v630 = vsel %vm590, %v627, %v629
      %v631 = vrot.slane %v355, 2
      %v632 = vrot.slane %v273, 2
      %v633 = vsel %vm590, %v631, %v632
      %v634 = vrot.slane %v372, 2
      %v635 = vsel %vm590, %v632, %v634
      %v636 = vrot.slane %v356, 2
      %v637 = vrot.slane %v276, 2
      %v638 = vsel %vm590, %v636, %v637
      %v639 = vrot.slane %v373, 2
      %v640 = vsel %vm590, %v637, %v639
      %v641 = vrot.slane %v357, 2
      %v642 = vrot.slane %v279, 2
      %v643 = vsel %vm590, %v641, %v642
      %v644 = vrot.slane %v374, 2
      %v645 = vsel %vm590, %v642, %v644
      %v646 = vrot.slane %v358, 2
      %v647 = vrot.slane %v282, 2
      %v648 = vsel %vm590, %v646, %v647
      %v649 = vrot.slane %v375, 2
      %v650 = vsel %vm590, %v647, %v649
      %v651 = vrot.slane %v359, 2
      %v652 = vrot.slane %v285, 2
      %v653 = vsel %vm590, %v651, %v652
      %v654 = vrot.slane %v376, 2
      %v655 = vsel %vm590, %v652, %v654
      %v656 = vrot.slane %v360, 2
      %v657 = vrot.slane %v288, 2
      %v658 = vsel %vm590, %v656, %v657
      %v659 = vrot.slane %v377, 2
      %v660 = vsel %vm590, %v657, %v659
      %v661 = vrot.slane %v361, 2
      %v662 = vrot.slane %v291, 2
      %v663 = vsel %vm590, %v661, %v662
      %v664 = vrot.slane %v378, 2
      %v665 = vsel %vm590, %v662, %v664
      %v666 = vrot.slane %v362, 2
      %v667 = vrot.slane %v294, 2
      %v668 = vsel %vm590, %v666, %v667
      %v669 = vrot.slane %v379, 2
      %v670 = vsel %vm590, %v667, %v669
      %671 = vrot.lane.b32.xlu0 %v593, 8
      %v672 = vpop.permute.xlu0 %671
      %673 = vrot.lane.b32.xlu0 %v595, 8
      %v674 = vpop.permute.xlu0 %673
      %675 = vrot.lane.b32.xlu0 %v598, 8
      %v676 = vpop.permute.xlu0 %675
      %677 = vrot.lane.b32.xlu0 %v600, 8
      %v678 = vpop.permute.xlu0 %677
      %679 = vrot.lane.b32.xlu0 %v603, 8
      %v680 = vpop.permute.xlu0 %679
      %681 = vrot.lane.b32.xlu0 %v605, 8
      %v682 = vpop.permute.xlu0 %681
      %683 = vrot.lane.b32.xlu0 %v608, 8
      %v684 = vpop.permute.xlu0 %683
      %685 = vrot.lane.b32.xlu0 %v610, 8
      %v686 = vpop.permute.xlu0 %685
      %687 = vrot.lane.b32.xlu0 %v613, 8
      %v688 = vpop.permute.xlu0 %687
      %689 = vrot.lane.b32.xlu0 %v615, 8
      %v690 = vpop.permute.xlu0 %689
      %691 = vrot.lane.b32.xlu0 %v618, 8
      %v692 = vpop.permute.xlu0 %691
      %693 = vrot.lane.b32.xlu0 %v620, 8
      %v694 = vpop.permute.xlu0 %693
      %695 = vrot.lane.b32.xlu0 %v623, 8
      %v696 = vpop.permute.xlu0 %695
      %697 = vrot.lane.b32.xlu0 %v625, 8
      %v698 = vpop.permute.xlu0 %697
      %699 = vrot.lane.b32.xlu0 %v628, 8
      %v700 = vpop.permute.xlu0 %699
      %701 = vrot.lane.b32.xlu0 %v630, 8
      %v702 = vpop.permute.xlu0 %701
      %703 = vrot.lane.b32.xlu0 %v633, 8
      %v704 = vpop.permute.xlu0 %703
      %705 = vrot.lane.b32.xlu0 %v635, 8
      %v706 = vpop.permute.xlu0 %705
      %707 = vrot.lane.b32.xlu0 %v638, 8
      %v708 = vpop.permute.xlu0 %707
      %709 = vrot.lane.b32.xlu0 %v640, 8
      %v710 = vpop.permute.xlu0 %709
      %711 = vrot.lane.b32.xlu0 %v643, 8
      %v712 = vpop.permute.xlu0 %711
      %713 = vrot.lane.b32.xlu0 %v645, 8
      %v714 = vpop.permute.xlu0 %713
      %715 = vrot.lane.b32.xlu0 %v648, 8
      %v716 = vpop.permute.xlu0 %715
      %717 = vrot.lane.b32.xlu0 %v650, 8
      %v718 = vpop.permute.xlu0 %717
      %719 = vrot.lane.b32.xlu0 %v653, 8
      %v720 = vpop.permute.xlu0 %719
      %721 = vrot.lane.b32.xlu0 %v655, 8
      %v722 = vpop.permute.xlu0 %721
      %723 = vrot.lane.b32.xlu0 %v658, 8
      %v724 = vpop.permute.xlu0 %723
      %725 = vrot.lane.b32.xlu0 %v660, 8
      %v726 = vpop.permute.xlu0 %725
      %727 = vrot.lane.b32.xlu0 %v663, 8
      %v728 = vpop.permute.xlu0 %727
      %729 = vrot.lane.b32.xlu0 %v665, 8
      %v730 = vpop.permute.xlu0 %729
      %731 = vrot.lane.b32.xlu0 %v668, 8
      %v732 = vpop.permute.xlu0 %731
      %733 = vrot.lane.b32.xlu0 %v670, 8
      %v734 = vpop.permute.xlu0 %733
      %768 = vrot.lane.b32.xlu0 %v348, 12
      %v769 = vpop.permute.xlu0 %768
      %770 = vrot.lane.b32.xlu0 %v252, 12
      %v771 = vpop.permute.xlu0 %770
      %772 = vrot.lane.b32.xlu0 %v349, 12
      %v773 = vpop.permute.xlu0 %772
      %774 = vrot.lane.b32.xlu0 %v255, 12
      %v775 = vpop.permute.xlu0 %774
      %776 = vrot.lane.b32.xlu0 %v350, 12
      %v777 = vpop.permute.xlu0 %776
      %778 = vrot.lane.b32.xlu0 %v258, 12
      %v779 = vpop.permute.xlu0 %778
      %780 = vrot.lane.b32.xlu0 %v351, 12
      %v781 = vpop.permute.xlu0 %780
      %782 = vrot.lane.b32.xlu0 %v261, 12
      %v783 = vpop.permute.xlu0 %782
      %784 = vrot.lane.b32.xlu0 %v352, 12
      %v785 = vpop.permute.xlu0 %784
      %786 = vrot.lane.b32.xlu0 %v264, 12
      %v787 = vpop.permute.xlu0 %786
      %788 = vrot.lane.b32.xlu0 %v353, 12
      %v789 = vpop.permute.xlu0 %788
      %790 = vrot.lane.b32.xlu0 %v267, 12
      %v791 = vpop.permute.xlu0 %790
      %792 = vrot.lane.b32.xlu0 %v354, 12
      %v793 = vpop.permute.xlu0 %792
      %794 = vrot.lane.b32.xlu0 %v270, 12
      %v795 = vpop.permute.xlu0 %794
      %796 = vrot.lane.b32.xlu0 %v355, 12
      %v797 = vpop.permute.xlu0 %796
      %798 = vrot.lane.b32.xlu0 %v273, 12
      %v799 = vpop.permute.xlu0 %798
      %800 = vrot.lane.b32.xlu0 %v356, 12
      %v801 = vpop.permute.xlu0 %800
      %802 = vrot.lane.b32.xlu0 %v276, 12
      %v803 = vpop.permute.xlu0 %802
      %804 = vrot.lane.b32.xlu0 %v357, 12
      %v805 = vpop.permute.xlu0 %804
      %806 = vrot.lane.b32.xlu0 %v279, 12
      %v807 = vpop.permute.xlu0 %806
      %808 = vrot.lane.b32.xlu0 %v358, 12
      %v809 = vpop.permute.xlu0 %808
      %810 = vrot.lane.b32.xlu0 %v282, 12
      %v811 = vpop.permute.xlu0 %810
      %812 = vrot.lane.b32.xlu0 %v359, 12
      %v813 = vpop.permute.xlu0 %812
      %814 = vrot.lane.b32.xlu0 %v285, 12
      %v815 = vpop.permute.xlu0 %814
      %816 = vrot.lane.b32.xlu0 %v360, 12
      %v817 = vpop.permute.xlu0 %816
      %818 = vrot.lane.b32.xlu0 %v288, 12
      %v819 = vpop.permute.xlu0 %818
      %820 = vrot.lane.b32.xlu0 %v361, 12
      %v821 = vpop.permute.xlu0 %820
      %822 = vrot.lane.b32.xlu0 %v291, 12
      %v823 = vpop.permute.xlu0 %822
      %824 = vrot.lane.b32.xlu0 %v362, 12
      %v825 = vpop.permute.xlu0 %824
      %826 = vrot.lane.b32.xlu0 %v294, 12
      %v827 = vpop.permute.xlu0 %826
      %828 = vrot.lane.b32.xlu0 %v363, 12
      %v829 = vpop.permute.xlu0 %828
      %830 = vrot.lane.b32.xlu0 %v297, 12
      %v831 = vpop.permute.xlu0 %830
      %v865 = vrot.slane %v363, 1
      %v866 = vrot.slane %v297, 1
      %v867 = vsel %vm413, %v865, %v866
      %v868 = vrot.slane %v380, 1
      %v869 = vsel %vm413, %v866, %v868
      %870 = vrot.lane.b32.xlu0 %v421, 16
      %v871 = vpop.permute.xlu0 %870
      %872 = vrot.lane.b32.xlu0 %v423, 16
      %v873 = vpop.permute.xlu0 %872
      %874 = vrot.lane.b32.xlu0 %v426, 16
      %v875 = vpop.permute.xlu0 %874
      %876 = vrot.lane.b32.xlu0 %v428, 16
      %v877 = vpop.permute.xlu0 %876
      %878 = vrot.lane.b32.xlu0 %v431, 16
      %v879 = vpop.permute.xlu0 %878
      %880 = vrot.lane.b32.xlu0 %v433, 16
      %v881 = vpop.permute.xlu0 %880
      %882 = vrot.lane.b32.xlu0 %v436, 16
      %v883 = vpop.permute.xlu0 %882
      %884 = vrot.lane.b32.xlu0 %v438, 16
      %v885 = vpop.permute.xlu0 %884
      %886 = vrot.lane.b32.xlu0 %v441, 16
      %v887 = vpop.permute.xlu0 %886
      %888 = vrot.lane.b32.xlu0 %v443, 16
      %v889 = vpop.permute.xlu0 %888
      %890 = vrot.lane.b32.xlu0 %v446, 16
      %v891 = vpop.permute.xlu0 %890
      %892 = vrot.lane.b32.xlu0 %v448, 16
      %v893 = vpop.permute.xlu0 %892
      %894 = vrot.lane.b32.xlu0 %v451, 16
      %v895 = vpop.permute.xlu0 %894
      %896 = vrot.lane.b32.xlu0 %v453, 16
      %v897 = vpop.permute.xlu0 %896
      %898 = vrot.lane.b32.xlu0 %v456, 16
      %v899 = vpop.permute.xlu0 %898
      %900 = vrot.lane.b32.xlu0 %v458, 16
      %v901 = vpop.permute.xlu0 %900
      %902 = vrot.lane.b32.xlu0 %v461, 16
      %v903 = vpop.permute.xlu0 %902
      %904 = vrot.lane.b32.xlu0 %v463, 16
      %v905 = vpop.permute.xlu0 %904
      %906 = vrot.lane.b32.xlu0 %v466, 16
      %v907 = vpop.permute.xlu0 %906
      %908 = vrot.lane.b32.xlu0 %v468, 16
      %v909 = vpop.permute.xlu0 %908
      %910 = vrot.lane.b32.xlu0 %v471, 16
      %v911 = vpop.permute.xlu0 %910
      %912 = vrot.lane.b32.xlu0 %v473, 16
      %v913 = vpop.permute.xlu0 %912
      %914 = vrot.lane.b32.xlu0 %v476, 16
      %v915 = vpop.permute.xlu0 %914
      %916 = vrot.lane.b32.xlu0 %v478, 16
      %v917 = vpop.permute.xlu0 %916
      %918 = vrot.lane.b32.xlu0 %v481, 16
      %v919 = vpop.permute.xlu0 %918
      %920 = vrot.lane.b32.xlu0 %v483, 16
      %v921 = vpop.permute.xlu0 %920
      %922 = vrot.lane.b32.xlu0 %v486, 16
      %v923 = vpop.permute.xlu0 %922
      %924 = vrot.lane.b32.xlu0 %v488, 16
      %v925 = vpop.permute.xlu0 %924
      %926 = vrot.lane.b32.xlu0 %v491, 16
      %v927 = vpop.permute.xlu0 %926
      %928 = vrot.lane.b32.xlu0 %v493, 16
      %v929 = vpop.permute.xlu0 %928
      %930 = vrot.lane.b32.xlu0 %v867, 16
      %v931 = vpop.permute.xlu0 %930
      %932 = vrot.lane.b32.xlu0 %v869, 16
      %v933 = vpop.permute.xlu0 %932
      %v966 = vrot.slane %v363, 2
      %v967 = vrot.slane %v297, 2
      %v968 = vsel %vm590, %v966, %v967
      %v969 = vrot.slane %v380, 2
      %v970 = vsel %vm590, %v967, %v969
      %971 = vrot.lane.b32.xlu0 %v598, 20
      %v972 = vpop.permute.xlu0 %971
      %973 = vrot.lane.b32.xlu0 %v600, 20
      %v974 = vpop.permute.xlu0 %973
      %975 = vrot.lane.b32.xlu0 %v603, 20
      %v976 = vpop.permute.xlu0 %975
      %977 = vrot.lane.b32.xlu0 %v605, 20
      %v978 = vpop.permute.xlu0 %977
      %979 = vrot.lane.b32.xlu0 %v608, 20
      %v980 = vpop.permute.xlu0 %979
      %981 = vrot.lane.b32.xlu0 %v610, 20
      %v982 = vpop.permute.xlu0 %981
      %983 = vrot.lane.b32.xlu0 %v613, 20
      %v984 = vpop.permute.xlu0 %983
      %985 = vrot.lane.b32.xlu0 %v615, 20
      %v986 = vpop.permute.xlu0 %985
      %987 = vrot.lane.b32.xlu0 %v618, 20
      %v988 = vpop.permute.xlu0 %987
      %989 = vrot.lane.b32.xlu0 %v620, 20
      %v990 = vpop.permute.xlu0 %989
      %991 = vrot.lane.b32.xlu0 %v623, 20
      %v992 = vpop.permute.xlu0 %991
      %993 = vrot.lane.b32.xlu0 %v625, 20
      %v994 = vpop.permute.xlu0 %993
      %995 = vrot.lane.b32.xlu0 %v628, 20
      %v996 = vpop.permute.xlu0 %995
      %997 = vrot.lane.b32.xlu0 %v630, 20
      %v998 = vpop.permute.xlu0 %997
      %999 = vrot.lane.b32.xlu0 %v633, 20
      %v1000 = vpop.permute.xlu0 %999
      %1001 = vrot.lane.b32.xlu0 %v635, 20
      %v1002 = vpop.permute.xlu0 %1001
      %1003 = vrot.lane.b32.xlu0 %v638, 20
      %v1004 = vpop.permute.xlu0 %1003
      %1005 = vrot.lane.b32.xlu0 %v640, 20
      %v1006 = vpop.permute.xlu0 %1005
      %1007 = vrot.lane.b32.xlu0 %v643, 20
      %v1008 = vpop.permute.xlu0 %1007
      %1009 = vrot.lane.b32.xlu0 %v645, 20
      %v1010 = vpop.permute.xlu0 %1009
      %1011 = vrot.lane.b32.xlu0 %v648, 20
      %v1012 = vpop.permute.xlu0 %1011
      %1013 = vrot.lane.b32.xlu0 %v650, 20
      %v1014 = vpop.permute.xlu0 %1013
      %1015 = vrot.lane.b32.xlu0 %v653, 20
      %v1016 = vpop.permute.xlu0 %1015
      %1017 = vrot.lane.b32.xlu0 %v655, 20
      %v1018 = vpop.permute.xlu0 %1017
      %1019 = vrot.lane.b32.xlu0 %v658, 20
      %v1020 = vpop.permute.xlu0 %1019
      %1021 = vrot.lane.b32.xlu0 %v660, 20
      %v1022 = vpop.permute.xlu0 %1021
      %1023 = vrot.lane.b32.xlu0 %v663, 20
      %v1024 = vpop.permute.xlu0 %1023
      %1025 = vrot.lane.b32.xlu0 %v665, 20
      %v1026 = vpop.permute.xlu0 %1025
      %1027 = vrot.lane.b32.xlu0 %v668, 20
      %v1028 = vpop.permute.xlu0 %1027
      %1029 = vrot.lane.b32.xlu0 %v670, 20
      %v1030 = vpop.permute.xlu0 %1029
      %1031 = vrot.lane.b32.xlu0 %v968, 20
      %v1032 = vpop.permute.xlu0 %1031
      %1033 = vrot.lane.b32.xlu0 %v970, 20
      %v1034 = vpop.permute.xlu0 %1033
      %1067 = vrot.lane.b32.xlu0 %v349, 24
      %v1068 = vpop.permute.xlu0 %1067
      %1069 = vrot.lane.b32.xlu0 %v255, 24
      %v1070 = vpop.permute.xlu0 %1069
      %1071 = vrot.lane.b32.xlu0 %v350, 24
      %v1072 = vpop.permute.xlu0 %1071
      %1073 = vrot.lane.b32.xlu0 %v258, 24
      %v1074 = vpop.permute.xlu0 %1073
      %1075 = vrot.lane.b32.xlu0 %v351, 24
      %v1076 = vpop.permute.xlu0 %1075
      %1077 = vrot.lane.b32.xlu0 %v261, 24
      %v1078 = vpop.permute.xlu0 %1077
      %1079 = vrot.lane.b32.xlu0 %v352, 24
      %v1080 = vpop.permute.xlu0 %1079
      %1081 = vrot.lane.b32.xlu0 %v264, 24
      %v1082 = vpop.permute.xlu0 %1081
      %1083 = vrot.lane.b32.xlu0 %v353, 24
      %v1084 = vpop.permute.xlu0 %1083
      %1085 = vrot.lane.b32.xlu0 %v267, 24
      %v1086 = vpop.permute.xlu0 %1085
      %1087 = vrot.lane.b32.xlu0 %v354, 24
      %v1088 = vpop.permute.xlu0 %1087
      %1089 = vrot.lane.b32.xlu0 %v270, 24
      %v1090 = vpop.permute.xlu0 %1089
      %1091 = vrot.lane.b32.xlu0 %v355, 24
      %v1092 = vpop.permute.xlu0 %1091
      %1093 = vrot.lane.b32.xlu0 %v273, 24
      %v1094 = vpop.permute.xlu0 %1093
      %1095 = vrot.lane.b32.xlu0 %v356, 24
      %v1096 = vpop.permute.xlu0 %1095
      %1097 = vrot.lane.b32.xlu0 %v276, 24
      %v1098 = vpop.permute.xlu0 %1097
      %1099 = vrot.lane.b32.xlu0 %v357, 24
      %v1100 = vpop.permute.xlu0 %1099
      %1101 = vrot.lane.b32.xlu0 %v279, 24
      %v1102 = vpop.permute.xlu0 %1101
      %1103 = vrot.lane.b32.xlu0 %v358, 24
      %v1104 = vpop.permute.xlu0 %1103
      %1105 = vrot.lane.b32.xlu0 %v282, 24
      %v1106 = vpop.permute.xlu0 %1105
      %1107 = vrot.lane.b32.xlu0 %v359, 24
      %v1108 = vpop.permute.xlu0 %1107
      %1109 = vrot.lane.b32.xlu0 %v285, 24
      %v1110 = vpop.permute.xlu0 %1109
      %1111 = vrot.lane.b32.xlu0 %v360, 24
      %v1112 = vpop.permute.xlu0 %1111
      %1113 = vrot.lane.b32.xlu0 %v288, 24
      %v1114 = vpop.permute.xlu0 %1113
      %1115 = vrot.lane.b32.xlu0 %v361, 24
      %v1116 = vpop.permute.xlu0 %1115
      %1117 = vrot.lane.b32.xlu0 %v291, 24
      %v1118 = vpop.permute.xlu0 %1117
      %1119 = vrot.lane.b32.xlu0 %v362, 24
      %v1120 = vpop.permute.xlu0 %1119
      %1121 = vrot.lane.b32.xlu0 %v294, 24
      %v1122 = vpop.permute.xlu0 %1121
      %1123 = vrot.lane.b32.xlu0 %v363, 24
      %v1124 = vpop.permute.xlu0 %1123
      %1125 = vrot.lane.b32.xlu0 %v297, 24
      %v1126 = vpop.permute.xlu0 %1125
      %1127 = vrot.lane.b32.xlu0 %v347, 24
      %v1128 = vpop.permute.xlu0 %1127
      %1129 = vrot.lane.b32.xlu0 %v249, 24
      %v1130 = vpop.permute.xlu0 %1129
      %1163 = vrot.lane.b32.xlu0 %v426, 28
      %v1164 = vpop.permute.xlu0 %1163
      %1165 = vrot.lane.b32.xlu0 %v428, 28
      %v1166 = vpop.permute.xlu0 %1165
      %1167 = vrot.lane.b32.xlu0 %v431, 28
      %v1168 = vpop.permute.xlu0 %1167
      %1169 = vrot.lane.b32.xlu0 %v433, 28
      %v1170 = vpop.permute.xlu0 %1169
      %1171 = vrot.lane.b32.xlu0 %v436, 28
      %v1172 = vpop.permute.xlu0 %1171
      %1173 = vrot.lane.b32.xlu0 %v438, 28
      %v1174 = vpop.permute.xlu0 %1173
      %1175 = vrot.lane.b32.xlu0 %v441, 28
      %v1176 = vpop.permute.xlu0 %1175
      %1177 = vrot.lane.b32.xlu0 %v443, 28
      %v1178 = vpop.permute.xlu0 %1177
      %1179 = vrot.lane.b32.xlu0 %v446, 28
      %v1180 = vpop.permute.xlu0 %1179
      %1181 = vrot.lane.b32.xlu0 %v448, 28
      %v1182 = vpop.permute.xlu0 %1181
      %1183 = vrot.lane.b32.xlu0 %v451, 28
      %v1184 = vpop.permute.xlu0 %1183
      %1185 = vrot.lane.b32.xlu0 %v453, 28
      %v1186 = vpop.permute.xlu0 %1185
      %1187 = vrot.lane.b32.xlu0 %v456, 28
      %v1188 = vpop.permute.xlu0 %1187
      %1189 = vrot.lane.b32.xlu0 %v458, 28
      %v1190 = vpop.permute.xlu0 %1189
      %1191 = vrot.lane.b32.xlu0 %v461, 28
      %v1192 = vpop.permute.xlu0 %1191
      %1193 = vrot.lane.b32.xlu0 %v463, 28
      %v1194 = vpop.permute.xlu0 %1193
      %1195 = vrot.lane.b32.xlu0 %v466, 28
      %v1196 = vpop.permute.xlu0 %1195
      %1197 = vrot.lane.b32.xlu0 %v468, 28
      %v1198 = vpop.permute.xlu0 %1197
      %1199 = vrot.lane.b32.xlu0 %v471, 28
      %v1200 = vpop.permute.xlu0 %1199
      %1201 = vrot.lane.b32.xlu0 %v473, 28
      %v1202 = vpop.permute.xlu0 %1201
      %1203 = vrot.lane.b32.xlu0 %v476, 28
      %v1204 = vpop.permute.xlu0 %1203
      %1205 = vrot.lane.b32.xlu0 %v478, 28
      %v1206 = vpop.permute.xlu0 %1205
      %1207 = vrot.lane.b32.xlu0 %v481, 28
      %v1208 = vpop.permute.xlu0 %1207
      %1209 = vrot.lane.b32.xlu0 %v483, 28
      %v1210 = vpop.permute.xlu0 %1209
      %1211 = vrot.lane.b32.xlu0 %v486, 28
      %v1212 = vpop.permute.xlu0 %1211
      %1213 = vrot.lane.b32.xlu0 %v488, 28
      %v1214 = vpop.permute.xlu0 %1213
      %1215 = vrot.lane.b32.xlu0 %v491, 28
      %v1216 = vpop.permute.xlu0 %1215
      %1217 = vrot.lane.b32.xlu0 %v493, 28
      %v1218 = vpop.permute.xlu0 %1217
      %1219 = vrot.lane.b32.xlu0 %v867, 28
      %v1220 = vpop.permute.xlu0 %1219
      %1221 = vrot.lane.b32.xlu0 %v869, 28
      %v1222 = vpop.permute.xlu0 %1221
      %1223 = vrot.lane.b32.xlu0 %v416, 28
      %v1224 = vpop.permute.xlu0 %1223
      %1225 = vrot.lane.b32.xlu0 %v418, 28
      %v1226 = vpop.permute.xlu0 %1225
      %1259 = vrot.lane.b32.xlu0 %v603, 32
      %v1260 = vpop.permute.xlu0 %1259
      %1261 = vrot.lane.b32.xlu0 %v605, 32
      %v1262 = vpop.permute.xlu0 %1261
      %1263 = vrot.lane.b32.xlu0 %v608, 32
      %v1264 = vpop.permute.xlu0 %1263
      %1265 = vrot.lane.b32.xlu0 %v610, 32
      %v1266 = vpop.permute.xlu0 %1265
      %1267 = vrot.lane.b32.xlu0 %v613, 32
      %v1268 = vpop.permute.xlu0 %1267
      %1269 = vrot.lane.b32.xlu0 %v615, 32
      %v1270 = vpop.permute.xlu0 %1269
      %1271 = vrot.lane.b32.xlu0 %v618, 32
      %v1272 = vpop.permute.xlu0 %1271
      %1273 = vrot.lane.b32.xlu0 %v620, 32
      %v1274 = vpop.permute.xlu0 %1273
      %1275 = vrot.lane.b32.xlu0 %v623, 32
      %v1276 = vpop.permute.xlu0 %1275
      %1277 = vrot.lane.b32.xlu0 %v625, 32
      %v1278 = vpop.permute.xlu0 %1277
      %1279 = vrot.lane.b32.xlu0 %v628, 32
      %v1280 = vpop.permute.xlu0 %1279
      %1281 = vrot.lane.b32.xlu0 %v630, 32
      %v1282 = vpop.permute.xlu0 %1281
      %1283 = vrot.lane.b32.xlu0 %v633, 32
      %v1284 = vpop.permute.xlu0 %1283
      %1285 = vrot.lane.b32.xlu0 %v635, 32
      %v1286 = vpop.permute.xlu0 %1285
      %1287 = vrot.lane.b32.xlu0 %v638, 32
      %v1288 = vpop.permute.xlu0 %1287
      %1289 = vrot.lane.b32.xlu0 %v640, 32
      %v1290 = vpop.permute.xlu0 %1289
      %1291 = vrot.lane.b32.xlu0 %v643, 32
      %v1292 = vpop.permute.xlu0 %1291
      %1293 = vrot.lane.b32.xlu0 %v645, 32
      %v1294 = vpop.permute.xlu0 %1293
      %1295 = vrot.lane.b32.xlu0 %v648, 32
      %v1296 = vpop.permute.xlu0 %1295
      %1297 = vrot.lane.b32.xlu0 %v650, 32
      %v1298 = vpop.permute.xlu0 %1297
      %1299 = vrot.lane.b32.xlu0 %v653, 32
      %v1300 = vpop.permute.xlu0 %1299
      %1301 = vrot.lane.b32.xlu0 %v655, 32
      %v1302 = vpop.permute.xlu0 %1301
      %1303 = vrot.lane.b32.xlu0 %v658, 32
      %v1304 = vpop.permute.xlu0 %1303
      %1305 = vrot.lane.b32.xlu0 %v660, 32
      %v1306 = vpop.permute.xlu0 %1305
      %1307 = vrot.lane.b32.xlu0 %v663, 32
      %v1308 = vpop.permute.xlu0 %1307
      %1309 = vrot.lane.b32.xlu0 %v665, 32
      %v1310 = vpop.permute.xlu0 %1309
      %1311 = vrot.lane.b32.xlu0 %v668, 32
      %v1312 = vpop.permute.xlu0 %1311
      %1313 = vrot.lane.b32.xlu0 %v670, 32
      %v1314 = vpop.permute.xlu0 %1313
      %1315 = vrot.lane.b32.xlu0 %v968, 32
      %v1316 = vpop.permute.xlu0 %1315
      %1317 = vrot.lane.b32.xlu0 %v970, 32
      %v1318 = vpop.permute.xlu0 %1317
      %1319 = vrot.lane.b32.xlu0 %v593, 32
      %v1320 = vpop.permute.xlu0 %1319
      %1321 = vrot.lane.b32.xlu0 %v595, 32
      %v1322 = vpop.permute.xlu0 %1321
      %vm1355 = vcmask 31744
      %v1356 = vsel %vm1355, %v347, %v495
      %v1357 = vsel %vm1355, %v249, %v497
      %v1358 = vsel %vm1355, %v348, %v499
      %v1359 = vsel %vm1355, %v252, %v501
      %v1360 = vsel %vm1355, %v349, %v503
      %v1361 = vsel %vm1355, %v255, %v505
      %v1362 = vsel %vm1355, %v350, %v507
      %v1363 = vsel %vm1355, %v258, %v509
      %v1364 = vsel %vm1355, %v351, %v511
      %v1365 = vsel %vm1355, %v261, %v513
      %v1366 = vsel %vm1355, %v352, %v515
      %v1367 = vsel %vm1355, %v264, %v517
      %v1368 = vsel %vm1355, %v353, %v519
      %v1369 = vsel %vm1355, %v267, %v521
      %v1370 = vsel %vm1355, %v354, %v523
      %v1371 = vsel %vm1355, %v270, %v525
      %v1372 = vsel %vm1355, %v355, %v527
      %v1373 = vsel %vm1355, %v273, %v529
      %v1374 = vsel %vm1355, %v356, %v531
      %v1375 = vsel %vm1355, %v276, %v533
      %v1376 = vsel %vm1355, %v357, %v535
      %v1377 = vsel %vm1355, %v279, %v537
      %v1378 = vsel %vm1355, %v358, %v539
      %v1379 = vsel %vm1355, %v282, %v541
      %v1380 = vsel %vm1355, %v359, %v543
      %v1381 = vsel %vm1355, %v285, %v545
      %v1382 = vsel %vm1355, %v360, %v547
      %v1383 = vsel %vm1355, %v288, %v549
      %v1384 = vsel %vm1355, %v361, %v551
      %v1385 = vsel %vm1355, %v291, %v553
      %v1386 = vsel %vm1355, %v362, %v555
      %v1387 = vsel %vm1355, %v294, %v557
      %vm1388 = vcmask 64512
      %v1389 = vsel %vm1388, %v1356, %v672
      %v1390 = vsel %vm1388, %v1357, %v674
      %v1391 = vsel %vm1388, %v1358, %v676
      %v1392 = vsel %vm1388, %v1359, %v678
      %v1393 = vsel %vm1388, %v1360, %v680
      %v1394 = vsel %vm1388, %v1361, %v682
      %v1395 = vsel %vm1388, %v1362, %v684
      %v1396 = vsel %vm1388, %v1363, %v686
      %v1397 = vsel %vm1388, %v1364, %v688
      %v1398 = vsel %vm1388, %v1365, %v690
      %v1399 = vsel %vm1388, %v1366, %v692
      %v1400 = vsel %vm1388, %v1367, %v694
      %v1401 = vsel %vm1388, %v1368, %v696
      %v1402 = vsel %vm1388, %v1369, %v698
      %v1403 = vsel %vm1388, %v1370, %v700
      %v1404 = vsel %vm1388, %v1371, %v702
      %v1405 = vsel %vm1388, %v1372, %v704
      %v1406 = vsel %vm1388, %v1373, %v706
      %v1407 = vsel %vm1388, %v1374, %v708
      %v1408 = vsel %vm1388, %v1375, %v710
      %v1409 = vsel %vm1388, %v1376, %v712
      %v1410 = vsel %vm1388, %v1377, %v714
      %v1411 = vsel %vm1388, %v1378, %v716
      %v1412 = vsel %vm1388, %v1379, %v718
      %v1413 = vsel %vm1388, %v1380, %v720
      %v1414 = vsel %vm1388, %v1381, %v722
      %v1415 = vsel %vm1388, %v1382, %v724
      %v1416 = vsel %vm1388, %v1383, %v726
      %v1417 = vsel %vm1388, %v1384, %v728
      %v1418 = vsel %vm1388, %v1385, %v730
      %v1419 = vsel %vm1388, %v1386, %v732
      %v1420 = vsel %vm1388, %v1387, %v734
      %vm1421 = vcmask 97280
      %v1422 = vsel %vm1421, %v1389, %v769
      %v1423 = vsel %vm1421, %v1390, %v771
      %v1424 = vsel %vm1421, %v1391, %v773
      %v1425 = vsel %vm1421, %v1392, %v775
      %v1426 = vsel %vm1421, %v1393, %v777
      %v1427 = vsel %vm1421, %v1394, %v779
      %v1428 = vsel %vm1421, %v1395, %v781
      %v1429 = vsel %vm1421, %v1396, %v783
      %v1430 = vsel %vm1421, %v1397, %v785
      %v1431 = vsel %vm1421, %v1398, %v787
      %v1432 = vsel %vm1421, %v1399, %v789
      %v1433 = vsel %vm1421, %v1400, %v791
      %v1434 = vsel %vm1421, %v1401, %v793
      %v1435 = vsel %vm1421, %v1402, %v795
      %v1436 = vsel %vm1421, %v1403, %v797
      %v1437 = vsel %vm1421, %v1404, %v799
      %v1438 = vsel %vm1421, %v1405, %v801
      %v1439 = vsel %vm1421, %v1406, %v803
      %v1440 = vsel %vm1421, %v1407, %v805
      %v1441 = vsel %vm1421, %v1408, %v807
      %v1442 = vsel %vm1421, %v1409, %v809
      %v1443 = vsel %vm1421, %v1410, %v811
      %v1444 = vsel %vm1421, %v1411, %v813
      %v1445 = vsel %vm1421, %v1412, %v815
      %v1446 = vsel %vm1421, %v1413, %v817
      %v1447 = vsel %vm1421, %v1414, %v819
      %v1448 = vsel %vm1421, %v1415, %v821
      %v1449 = vsel %vm1421, %v1416, %v823
      %v1450 = vsel %vm1421, %v1417, %v825
      %v1451 = vsel %vm1421, %v1418, %v827
      %v1452 = vsel %vm1421, %v1419, %v829
      %v1453 = vsel %vm1421, %v1420, %v831
      %vm1454 = vcmask 130048
      %v1455 = vsel %vm1454, %v1422, %v871
      %v1456 = vsel %vm1454, %v1423, %v873
      %v1457 = vsel %vm1454, %v1424, %v875
      %v1458 = vsel %vm1454, %v1425, %v877
      %v1459 = vsel %vm1454, %v1426, %v879
      %v1460 = vsel %vm1454, %v1427, %v881
      %v1461 = vsel %vm1454, %v1428, %v883
      %v1462 = vsel %vm1454, %v1429, %v885
      %v1463 = vsel %vm1454, %v1430, %v887
      %v1464 = vsel %vm1454, %v1431, %v889
      %v1465 = vsel %vm1454, %v1432, %v891
      %v1466 = vsel %vm1454, %v1433, %v893
      %v1467 = vsel %vm1454, %v1434, %v895
      %v1468 = vsel %vm1454, %v1435, %v897
      %v1469 = vsel %vm1454, %v1436, %v899
      %v1470 = vsel %vm1454, %v1437, %v901
      %v1471 = vsel %vm1454, %v1438, %v903
      %v1472 = vsel %vm1454, %v1439, %v905
      %v1473 = vsel %vm1454, %v1440, %v907
      %v1474 = vsel %vm1454, %v1441, %v909
      %v1475 = vsel %vm1454, %v1442, %v911
      %v1476 = vsel %vm1454, %v1443, %v913
      %v1477 = vsel %vm1454, %v1444, %v915
      %v1478 = vsel %vm1454, %v1445, %v917
      %v1479 = vsel %vm1454, %v1446, %v919
      %v1480 = vsel %vm1454, %v1447, %v921
      %v1481 = vsel %vm1454, %v1448, %v923
      %v1482 = vsel %vm1454, %v1449, %v925
      %v1483 = vsel %vm1454, %v1450, %v927
      %v1484 = vsel %vm1454, %v1451, %v929
      %v1485 = vsel %vm1454, %v1452, %v931
      %v1486 = vsel %vm1454, %v1453, %v933
      %vm1487 = vcmask 162816
      %v1488 = vsel %vm1487, %v1455, %v972
      %v1489 = vsel %vm1487, %v1456, %v974
      %v1490 = vsel %vm1487, %v1457, %v976
      %v1491 = vsel %vm1487, %v1458, %v978
      %v1492 = vsel %vm1487, %v1459, %v980
      %v1493 = vsel %vm1487, %v1460, %v982
      %v1494 = vsel %vm1487, %v1461, %v984
      %v1495 = vsel %vm1487, %v1462, %v986
      %v1496 = vsel %vm1487, %v1463, %v988
      %v1497 = vsel %vm1487, %v1464, %v990
      %v1498 = vsel %vm1487, %v1465, %v992
      %v1499 = vsel %vm1487, %v1466, %v994
      %v1500 = vsel %vm1487, %v1467, %v996
      %v1501 = vsel %vm1487, %v1468, %v998
      %v1502 = vsel %vm1487, %v1469, %v1000
      %v1503 = vsel %vm1487, %v1470, %v1002
      %v1504 = vsel %vm1487, %v1471, %v1004
      %v1505 = vsel %vm1487, %v1472, %v1006
      %v1506 = vsel %vm1487, %v1473, %v1008
      %v1507 = vsel %vm1487, %v1474, %v1010
      %v1508 = vsel %vm1487, %v1475, %v1012
      %v1509 = vsel %vm1487, %v1476, %v1014
      %v1510 = vsel %vm1487, %v1477, %v1016
      %v1511 = vsel %vm1487, %v1478, %v1018
      %v1512 = vsel %vm1487, %v1479, %v1020
      %v1513 = vsel %vm1487, %v1480, %v1022
      %v1514 = vsel %vm1487, %v1481, %v1024
      %v1515 = vsel %vm1487, %v1482, %v1026
      %v1516 = vsel %vm1487, %v1483, %v1028
      %v1517 = vsel %vm1487, %v1484, %v1030
      %v1518 = vsel %vm1487, %v1485, %v1032
      %v1519 = vsel %vm1487, %v1486, %v1034
      %vm1520 = vcmask 195584
      %v1521 = vsel %vm1520, %v1488, %v1068
      %v1522 = vsel %vm1520, %v1489, %v1070
      %v1523 = vsel %vm1520, %v1490, %v1072
      %v1524 = vsel %vm1520, %v1491, %v1074
      %v1525 = vsel %vm1520, %v1492, %v1076
      %v1526 = vsel %vm1520, %v1493, %v1078
      %v1527 = vsel %vm1520, %v1494, %v1080
      %v1528 = vsel %vm1520, %v1495, %v1082
      %v1529 = vsel %vm1520, %v1496, %v1084
      %v1530 = vsel %vm1520, %v1497, %v1086
      %v1531 = vsel %vm1520, %v1498, %v1088
      %v1532 = vsel %vm1520, %v1499, %v1090
      %v1533 = vsel %vm1520, %v1500, %v1092
      %v1534 = vsel %vm1520, %v1501, %v1094
      %v1535 = vsel %vm1520, %v1502, %v1096
      %v1536 = vsel %vm1520, %v1503, %v1098
      %v1537 = vsel %vm1520, %v1504, %v1100
      %v1538 = vsel %vm1520, %v1505, %v1102
      %v1539 = vsel %vm1520, %v1506, %v1104
      %v1540 = vsel %vm1520, %v1507, %v1106
      %v1541 = vsel %vm1520, %v1508, %v1108
      %v1542 = vsel %vm1520, %v1509, %v1110
      %v1543 = vsel %vm1520, %v1510, %v1112
      %v1544 = vsel %vm1520, %v1511, %v1114
      %v1545 = vsel %vm1520, %v1512, %v1116
      %v1546 = vsel %vm1520, %v1513, %v1118
      %v1547 = vsel %vm1520, %v1514, %v1120
      %v1548 = vsel %vm1520, %v1515, %v1122
      %v1549 = vsel %vm1520, %v1516, %v1124
      %v1550 = vsel %vm1520, %v1517, %v1126
      %v1551 = vsel %vm1520, %v1518, %v1128
      %v1552 = vsel %vm1520, %v1519, %v1130
      %vm1553 = vcmask 228352
      %v1554 = vsel %vm1553, %v1521, %v1164
      %v1555 = vsel %vm1553, %v1522, %v1166
      %v1556 = vsel %vm1553, %v1523, %v1168
      %v1557 = vsel %vm1553, %v1524, %v1170
      %v1558 = vsel %vm1553, %v1525, %v1172
      %v1559 = vsel %vm1553, %v1526, %v1174
      %v1560 = vsel %vm1553, %v1527, %v1176
      %v1561 = vsel %vm1553, %v1528, %v1178
      %v1562 = vsel %vm1553, %v1529, %v1180
      %v1563 = vsel %vm1553, %v1530, %v1182
      %v1564 = vsel %vm1553, %v1531, %v1184
      %v1565 = vsel %vm1553, %v1532, %v1186
      %v1566 = vsel %vm1553, %v1533, %v1188
      %v1567 = vsel %vm1553, %v1534, %v1190
      %v1568 = vsel %vm1553, %v1535, %v1192
      %v1569 = vsel %vm1553, %v1536, %v1194
      %v1570 = vsel %vm1553, %v1537, %v1196
      %v1571 = vsel %vm1553, %v1538, %v1198
      %v1572 = vsel %vm1553, %v1539, %v1200
      %v1573 = vsel %vm1553, %v1540, %v1202
      %v1574 = vsel %vm1553, %v1541, %v1204
      %v1575 = vsel %vm1553, %v1542, %v1206
      %v1576 = vsel %vm1553, %v1543, %v1208
      %v1577 = vsel %vm1553, %v1544, %v1210
      %v1578 = vsel %vm1553, %v1545, %v1212
      %v1579 = vsel %vm1553, %v1546, %v1214
      %v1580 = vsel %vm1553, %v1547, %v1216
      %v1581 = vsel %vm1553, %v1548, %v1218
      %v1582 = vsel %vm1553, %v1549, %v1220
      %v1583 = vsel %vm1553, %v1550, %v1222
      %v1584 = vsel %vm1553, %v1551, %v1224
      %v1585 = vsel %vm1553, %v1552, %v1226
      %vm1586 = vcmask 261120
      %v1587 = vsel %vm1586, %v1554, %v1260
      %v1588 = vsel %vm1586, %v1555, %v1262
      %v1589 = vsel %vm1586, %v1556, %v1264
      %v1590 = vsel %vm1586, %v1557, %v1266
      %v1591 = vsel %vm1586, %v1558, %v1268
      %v1592 = vsel %vm1586, %v1559, %v1270
      %v1593 = vsel %vm1586, %v1560, %v1272
      %v1594 = vsel %vm1586, %v1561, %v1274
      %v1595 = vsel %vm1586, %v1562, %v1276
      %v1596 = vsel %vm1586, %v1563, %v1278
      %v1597 = vsel %vm1586, %v1564, %v1280
      %v1598 = vsel %vm1586, %v1565, %v1282
      %v1599 = vsel %vm1586, %v1566, %v1284
      %v1600 = vsel %vm1586, %v1567, %v1286
      %v1601 = vsel %vm1586, %v1568, %v1288
      %v1602 = vsel %vm1586, %v1569, %v1290
      %v1603 = vsel %vm1586, %v1570, %v1292
      %v1604 = vsel %vm1586, %v1571, %v1294
      %v1605 = vsel %vm1586, %v1572, %v1296
      %v1606 = vsel %vm1586, %v1573, %v1298
      %v1607 = vsel %vm1586, %v1574, %v1300
      %v1608 = vsel %vm1586, %v1575, %v1302
      %v1609 = vsel %vm1586, %v1576, %v1304
      %v1610 = vsel %vm1586, %v1577, %v1306
      %v1611 = vsel %vm1586, %v1578, %v1308
      %v1612 = vsel %vm1586, %v1579, %v1310
      %v1613 = vsel %vm1586, %v1580, %v1312
      %v1614 = vsel %vm1586, %v1581, %v1314
      %v1615 = vsel %vm1586, %v1582, %v1316
      %v1616 = vsel %vm1586, %v1583, %v1318
      %v1617 = vsel %vm1586, %v1584, %v1320
      %v1618 = vsel %vm1586, %v1585, %v1322
      %v1619 = vld [vmem:[%s1] sm:$0xff]
      %v1620 = vld [vmem:[%s1 + $0x8] sm:$0xff]
      %v1621 = vld [vmem:[%s1 + $0x10] sm:$0xff]
      %v1622 = vld [vmem:[%s1 + $0x18] sm:$0xff]
      %v1623 = vld [vmem:[%s1 + $0x20] sm:$0xf]
      %vm1624 = vcmask 293888
      %v1626 = vsel %vm1624, %v1587, 0
      %v1629 = vsel %vm1624, %v1588, 0
      %v1632 = vsel %vm1624, %v1589, 0
      %v1635 = vsel %vm1624, %v1590, 0
      %v1638 = vsel %vm1624, %v1591, 0
      %v1641 = vsel %vm1624, %v1592, 0
      %v1644 = vsel %vm1624, %v1593, 0
      %v1647 = vsel %vm1624, %v1594, 0
      %v1650 = vsel %vm1624, %v1595, 0
      %v1653 = vsel %vm1624, %v1596, 0
      %v1656 = vsel %vm1624, %v1597, 0
      %v1659 = vsel %vm1624, %v1598, 0
      %v1662 = vsel %vm1624, %v1599, 0
      %v1665 = vsel %vm1624, %v1600, 0
      %v1668 = vsel %vm1624, %v1601, 0
      %v1671 = vsel %vm1624, %v1602, 0
      %v1674 = vsel %vm1624, %v1603, 0
      %v1677 = vsel %vm1624, %v1604, 0
      %v1680 = vsel %vm1624, %v1605, 0
      %v1683 = vsel %vm1624, %v1606, 0
      %v1686 = vsel %vm1624, %v1607, 0
      %v1689 = vsel %vm1624, %v1608, 0
      %v1692 = vsel %vm1624, %v1609, 0
      %v1695 = vsel %vm1624, %v1610, 0
      %v1698 = vsel %vm1624, %v1611, 0
      %v1701 = vsel %vm1624, %v1612, 0
      %v1704 = vsel %vm1624, %v1613, 0
      %v1707 = vsel %vm1624, %v1614, 0
      %v1710 = vsel %vm1624, %v1615, 0
      %v1713 = vsel %vm1624, %v1616, 0
      %v1716 = vsel %vm1624, %v1617, 0
      %v1719 = vsel %vm1624, %v1618, 0
      %vm1721 = vcmask 1043456
      %v1723 = vsel %vm1721, %v1623, 0
      %1725 = vmatprep.subr.mxu0 0.0
      %1726 = vmatpush1.msra.mxu0 %v1619
      %1727 = vmatprep.subr.mxu0 0.0
      %1728 = vmatpush1.msra.mxu0 %v1620
      %1729 = vmatprep.subr.mxu0 0.0
      %1730 = vmatpush1.msra.mxu0 %v1621
      %1731 = vmatprep.subr.mxu0 0.0
      %1732 = vmatpush1.msra.mxu0 %v1622
      %1733 = vmatprep.subr.mxu0 0.0
      %1734 = vmatpush1.msra.mxu0 %v1723
      %1735 = vmatprep.subr.mxu0 0.0
      %1736 = vmatpush1.msra.mxu0 0.0
      %1737 = vmatprep.subr.mxu0 0.0
      %1738 = vmatpush1.msra.mxu0 0.0
      %1739 = vmatprep.subr.mxu0 0.0
      %1740 = vmatpush1.msra.mxu0 0.0
      %1741 = vmatprep.subr.mxu0 0.0
      %1742 = vmatpush1.msra.mxu0 0.0
      %1743 = vmatprep.subr.mxu0 0.0
      %1744 = vmatpush1.msra.mxu0 0.0
      %1745 = vmatprep.subr.mxu0 0.0
      %1746 = vmatpush1.msra.mxu0 0.0
      %1747 = vmatprep.subr.mxu0 0.0
      %1748 = vmatpush1.msra.mxu0 0.0
      %1749 = vmatprep.subr.mxu0 0.0
      %1750 = vmatpush1.msra.mxu0 0.0
      %1751 = vmatprep.subr.mxu0 0.0
      %1752 = vmatpush1.msra.mxu0 0.0
      %1753 = vmatprep.subr.mxu0 0.0
      %1754 = vmatpush1.msra.mxu0 0.0
      %1755 = vmatprep.subr.mxu0 0.0
      %1756 = vmatpush1.msra.mxu0 0.0
      %1757 = vmatprep.subr.mxu0 0.0
      %1758 = vmatpush1.msra.mxu0 0.0
      %1759 = vmatprep.subr.mxu0 0.0
      %1760 = vmatpush1.msra.mxu0 0.0
      %1761 = vmatprep.subr.mxu0 0.0
      %1762 = vmatpush1.msra.mxu0 0.0
      %1763 = vmatprep.subr.mxu0 0.0
      %1764 = vmatpush1.msra.mxu0 0.0
      %1765 = vmatprep.subr.mxu0 0.0
      %1766 = vmatpush1.msra.mxu0 0.0
      %1767 = vmatprep.subr.mxu0 0.0
      %1768 = vmatpush1.msra.mxu0 0.0
      %1769 = vmatprep.subr.mxu0 0.0
      %1770 = vmatpush1.msra.mxu0 0.0
      %1771 = vmatprep.subr.mxu0 0.0
      %1772 = vmatpush1.msra.mxu0 0.0
      %1773 = vmatprep.subr.mxu0 0.0
      %1774 = vmatpush1.msra.mxu0 0.0
      %1775 = vmatprep.subr.mxu0 0.0
      %1776 = vmatpush1.msra.mxu0 0.0
      %1777 = vmatprep.subr.mxu0 0.0
      %1778 = vmatpush1.msra.mxu0 0.0
      %1779 = vmatprep.subr.mxu0 0.0
      %1780 = vmatpush1.msra.mxu0 0.0
      %1781 = vmatprep.subr.mxu0 0.0
      %1782 = vmatpush1.msra.mxu0 0.0
      %1783 = vmatprep.subr.mxu0 0.0
      %1784 = vmatpush1.msra.mxu0 0.0
      %1785 = vmatprep.subr.mxu0 0.0
      %1786 = vmatpush1.msra.mxu0 0.0
      %1787 = vmatprep.subr.mxu0 0.0
      %1788 = vmatpush1.msra.mxu0 0.0
      %1789 = vmatprep.mubr.f32.mxu0 0.0
      %1790 = vmatmul.mubr.f32.gmra.mrb[0].mxu0 %v1626
      %v1791 = vpop.f32.mrb[0].mxu0
      %v1792 = vadd.f32 0.0, %v1791
      %v1793 = vpop.f32.mrb[0].mxu0
      %1794 = vmatprep.mubr.f32.mxu0 0.0
      %1795 = vmatmul.mubr.f32.gmra.mrb[0].mxu0 %v1629
      %v1796 = vpop.f32.mrb[0].mxu0
      %v1797 = vadd.f32 0.0, %v1796
      %v1798 = vpop.f32.mrb[0].mxu0
      %1799 = vmatprep.mubr.f32.mxu0 0.0
      %1800 = vmatmul.mubr.f32.gmra.mrb[0].mxu0 %v1632
      %v1801 = vpop.f32.mrb[0].mxu0
      %v1802 = vadd.f32 0.0, %v1801
      %v1803 = vpop.f32.mrb[0].mxu0
      %1804 = vmatprep.mubr.f32.mxu0 0.0
      %1805 = vmatmul.mubr.f32.gmra.mrb[0].mxu0 %v1635
      %v1806 = vpop.f32.mrb[0].mxu0
      %v1807 = vadd.f32 0.0, %v1806
      %v1808 = vpop.f32.mrb[0].mxu0
      %1809 = vmatprep.mubr.f32.mxu0 0.0
      %1810 = vmatmul.mubr.f32.gmra.mrb[0].mxu0 %v1638
      %v1811 = vpop.f32.mrb[0].mxu0
      %v1812 = vadd.f32 0.0, %v1811
      %v1813 = vpop.f32.mrb[0].mxu0
      %1814 = vmatprep.mubr.f32.mxu0 0.0
      %1815 = vmatmul.mubr.f32.gmra.mrb[0].mxu0 %v1641
      %v1816 = vpop.f32.mrb[0].mxu0
      %v1817 = vadd.f32 0.0, %v1816
      %v1818 = vpop.f32.mrb[0].mxu0
      %1819 = vmatprep.mubr.f32.mxu0 0.0
      %1820 = vmatmul.mubr.f32.gmra.mrb[0].mxu0 %v1644
      %v1821 = vpop.f32.mrb[0].mxu0
      %v1822 = vadd.f32 0.0, %v1821
      %v1823 = vpop.f32.mrb[0].mxu0
      %1824 = vmatprep.mubr.f32.mxu0 0.0
      %1825 = vmatmul.mubr.f32.gmra.mrb[0].mxu0 %v1647
      %v1826 = vpop.f32.mrb[0].mxu0
      %v1827 = vadd.f32 0.0, %v1826
      %v1828 = vpop.f32.mrb[0].mxu0
      %1829 = vmatprep.mubr.f32.mxu0 0.0
      %1830 = vmatmul.mubr.f32.gmra.mrb[0].mxu0 %v1650
      %v1831 = vpop.f32.mrb[0].mxu0
      %v1832 = vadd.f32 0.0, %v1831
      %v1833 = vpop.f32.mrb[0].mxu0
      %1834 = vmatprep.mubr.f32.mxu0 0.0
      %1835 = vmatmul.mubr.f32.gmra.mrb[0].mxu0 %v1653
      %v1836 = vpop.f32.mrb[0].mxu0
      %v1837 = vadd.f32 0.0, %v1836
      %v1838 = vpop.f32.mrb[0].mxu0
      %1839 = vmatprep.mubr.f32.mxu0 0.0
      %1840 = vmatmul.mubr.f32.gmra.mrb[0].mxu0 %v1656
      %v1841 = vpop.f32.mrb[0].mxu0
      %v1842 = vadd.f32 0.0, %v1841
      %v1843 = vpop.f32.mrb[0].mxu0
      %1844 = vmatprep.mubr.f32.mxu0 0.0
      %1845 = vmatmul.mubr.f32.gmra.mrb[0].mxu0 %v1659
      %v1846 = vpop.f32.mrb[0].mxu0
      %v1847 = vadd.f32 0.0, %v1846
      %v1848 = vpop.f32.mrb[0].mxu0
      %1849 = vmatprep.mubr.f32.mxu0 0.0
      %1850 = vmatmul.mubr.f32.gmra.mrb[0].mxu0 %v1662
      %v1851 = vpop.f32.mrb[0].mxu0
      %v1852 = vadd.f32 0.0, %v1851
      %v1853 = vpop.f32.mrb[0].mxu0
      %1854 = vmatprep.mubr.f32.mxu0 0.0
      %1855 = vmatmul.mubr.f32.gmra.mrb[0].mxu0 %v1665
      %v1856 = vpop.f32.mrb[0].mxu0
      %v1857 = vadd.f32 0.0, %v1856
      %v1858 = vpop.f32.mrb[0].mxu0
      %1859 = vmatprep.mubr.f32.mxu0 0.0
      %1860 = vmatmul.mubr.f32.gmra.mrb[0].mxu0 %v1668
      %v1861 = vpop.f32.mrb[0].mxu0
      %v1862 = vadd.f32 0.0, %v1861
      %v1863 = vpop.f32.mrb[0].mxu0
      %1864 = vmatprep.mubr.f32.mxu0 0.0
      %1865 = vmatmul.mubr.f32.gmra.mrb[0].mxu0 %v1671
      %v1866 = vpop.f32.mrb[0].mxu0
      %v1867 = vadd.f32 0.0, %v1866
      %v1868 = vpop.f32.mrb[0].mxu0
      %1869 = vmatprep.mubr.f32.mxu0 0.0
      %1870 = vmatmul.mubr.f32.gmra.mrb[0].mxu0 %v1674
      %v1871 = vpop.f32.mrb[0].mxu0
      %v1872 = vadd.f32 0.0, %v1871
      %v1873 = vpop.f32.mrb[0].mxu0
      %1874 = vmatprep.mubr.f32.mxu0 0.0
      %1875 = vmatmul.mubr.f32.gmra.mrb[0].mxu0 %v1677
      %v1876 = vpop.f32.mrb[0].mxu0
      %v1877 = vadd.f32 0.0, %v1876
      %v1878 = vpop.f32.mrb[0].mxu0
      %1879 = vmatprep.mubr.f32.mxu0 0.0
      %1880 = vmatmul.mubr.f32.gmra.mrb[0].mxu0 %v1680
      %v1881 = vpop.f32.mrb[0].mxu0
      %v1882 = vadd.f32 0.0, %v1881
      %v1883 = vpop.f32.mrb[0].mxu0
      %1884 = vmatprep.mubr.f32.mxu0 0.0
      %1885 = vmatmul.mubr.f32.gmra.mrb[0].mxu0 %v1683
      %v1886 = vpop.f32.mrb[0].mxu0
      %v1887 = vadd.f32 0.0, %v1886
      %v1888 = vpop.f32.mrb[0].mxu0
      %1889 = vmatprep.mubr.f32.mxu0 0.0
      %1890 = vmatmul.mubr.f32.gmra.mrb[0].mxu0 %v1686
      %v1891 = vpop.f32.mrb[0].mxu0
      %v1892 = vadd.f32 0.0, %v1891
      %v1893 = vpop.f32.mrb[0].mxu0
      %1894 = vmatprep.mubr.f32.mxu0 0.0
      %1895 = vmatmul.mubr.f32.gmra.mrb[0].mxu0 %v1689
      %v1896 = vpop.f32.mrb[0].mxu0
      %v1897 = vadd.f32 0.0, %v1896
      %v1898 = vpop.f32.mrb[0].mxu0
      %1899 = vmatprep.mubr.f32.mxu0 0.0
      %1900 = vmatmul.mubr.f32.gmra.mrb[0].mxu0 %v1692
      %v1901 = vpop.f32.mrb[0].mxu0
      %v1902 = vadd.f32 0.0, %v1901
      %v1903 = vpop.f32.mrb[0].mxu0
      %1904 = vmatprep.mubr.f32.mxu0 0.0
      %1905 = vmatmul.mubr.f32.gmra.mrb[0].mxu0 %v1695
      %v1906 = vpop.f32.mrb[0].mxu0
      %v1907 = vadd.f32 0.0, %v1906
      %v1908 = vpop.f32.mrb[0].mxu0
      %1909 = vmatprep.mubr.f32.mxu0 0.0
      %1910 = vmatmul.mubr.f32.gmra.mrb[0].mxu0 %v1698
      %v1911 = vpop.f32.mrb[0].mxu0
      %v1912 = vadd.f32 0.0, %v1911
      %v1913 = vpop.f32.mrb[0].mxu0
      %1914 = vmatprep.mubr.f32.mxu0 0.0
      %1915 = vmatmul.mubr.f32.gmra.mrb[0].mxu0 %v1701
      %v1916 = vpop.f32.mrb[0].mxu0
      %v1917 = vadd.f32 0.0, %v1916
      %v1918 = vpop.f32.mrb[0].mxu0
      %1919 = vmatprep.mubr.f32.mxu0 0.0
      %1920 = vmatmul.mubr.f32.gmra.mrb[0].mxu0 %v1704
      %v1921 = vpop.f32.mrb[0].mxu0
      %v1922 = vadd.f32 0.0, %v1921
      %v1923 = vpop.f32.mrb[0].mxu0
      %1924 = vmatprep.mubr.f32.mxu0 0.0
      %1925 = vmatmul.mubr.f32.gmra.mrb[0].mxu0 %v1707
      %v1926 = vpop.f32.mrb[0].mxu0
      %v1927 = vadd.f32 0.0, %v1926
      %v1928 = vpop.f32.mrb[0].mxu0
      %1929 = vmatprep.mubr.f32.mxu0 0.0
      %1930 = vmatmul.mubr.f32.gmra.mrb[0].mxu0 %v1710
      %v1931 = vpop.f32.mrb[0].mxu0
      %v1932 = vadd.f32 0.0, %v1931
      %v1933 = vpop.f32.mrb[0].mxu0
      %1934 = vmatprep.mubr.f32.mxu0 0.0
      %1935 = vmatmul.mubr.f32.gmra.mrb[0].mxu0 %v1713
      %v1936 = vpop.f32.mrb[0].mxu0
      %v1937 = vadd.f32 0.0, %v1936
      %v1938 = vpop.f32.mrb[0].mxu0
      %1939 = vmatprep.mubr.f32.mxu0 0.0
      %1940 = vmatmul.mubr.f32.gmra.mrb[0].mxu0 %v1716
      %v1941 = vpop.f32.mrb[0].mxu0
      %v1942 = vadd.f32 0.0, %v1941
      %v1943 = vpop.f32.mrb[0].mxu0
      %1944 = vmatprep.mubr.f32.mxu0 0.0
      %1945 = vmatmul.mubr.f32.gmra.mrb[0].mxu0 %v1719
      %v1946 = vpop.f32.mrb[0].mxu0
      %v1947 = vadd.f32 0.0, %v1946
      %v1948 = vpop.f32.mrb[0].mxu0
      %1949 = vdwg.mxu0
      %1950 = vst.msk [vmem:[%s177] sm:$0xff] %vm1355, %v1792
      %1951 = vst.msk [vmem:[%s177 + $0x8] sm:$0xff] %vm1355, %v1797
      %1952 = vst.msk [vmem:[%s177 + $0x10] sm:$0xff] %vm1355, %v1802
      %1953 = vst.msk [vmem:[%s177 + $0x18] sm:$0xff] %vm1355, %v1807
      %1954 = vst.msk [vmem:[%s177 + $0x20] sm:$0xff] %vm1355, %v1812
      %1955 = vst.msk [vmem:[%s177 + $0x28] sm:$0xff] %vm1355, %v1817
      %1956 = vst.msk [vmem:[%s177 + $0x30] sm:$0xff] %vm1355, %v1822
      %1957 = vst.msk [vmem:[%s177 + $0x38] sm:$0xff] %vm1355, %v1827
      %1958 = vst.msk [vmem:[%s177 + $0x40] sm:$0xff] %vm1355, %v1832
      %1959 = vst.msk [vmem:[%s177 + $0x48] sm:$0xff] %vm1355, %v1837
      %1960 = vst.msk [vmem:[%s177 + $0x50] sm:$0xff] %vm1355, %v1842
      %1961 = vst.msk [vmem:[%s177 + $0x58] sm:$0xff] %vm1355, %v1847
      %1962 = vst.msk [vmem:[%s177 + $0x60] sm:$0xff] %vm1355, %v1852
      %1963 = vst.msk [vmem:[%s177 + $0x68] sm:$0xff] %vm1355, %v1857
      %1964 = vst.msk [vmem:[%s177 + $0x70] sm:$0xff] %vm1355, %v1862
      %1965 = vst.msk [vmem:[%s177 + $0x78] sm:$0xff] %vm1355, %v1867
      %1966 = vst.msk [vmem:[%s177 + $0x80] sm:$0xff] %vm1355, %v1872
      %1967 = vst.msk [vmem:[%s177 + $0x88] sm:$0xff] %vm1355, %v1877
      %1968 = vst.msk [vmem:[%s177 + $0x90] sm:$0xff] %vm1355, %v1882
      %1969 = vst.msk [vmem:[%s177 + $0x98] sm:$0xff] %vm1355, %v1887
      %1970 = vst.msk [vmem:[%s177 + $0xa0] sm:$0xff] %vm1355, %v1892
      %1971 = vst.msk [vmem:[%s177 + $0xa8] sm:$0xff] %vm1355, %v1897
      %1972 = vst.msk [vmem:[%s177 + $0xb0] sm:$0xff] %vm1355, %v1902
      %1973 = vst.msk [vmem:[%s177 + $0xb8] sm:$0xff] %vm1355, %v1907
      %1974 = vst.msk [vmem:[%s177 + $0xc0] sm:$0xff] %vm1355, %v1912
      %1975 = vst.msk [vmem:[%s177 + $0xc8] sm:$0xff] %vm1355, %v1917
      %1976 = vst.msk [vmem:[%s177 + $0xd0] sm:$0xff] %vm1355, %v1922
      %1977 = vst.msk [vmem:[%s177 + $0xd8] sm:$0xff] %vm1355, %v1927
      %1978 = vst.msk [vmem:[%s177 + $0xe0] sm:$0xff] %vm1355, %v1932
      %1979 = vst.msk [vmem:[%s177 + $0xe8] sm:$0xff] %vm1355, %v1937
      %1980 = vst.msk [vmem:[%s177 + $0xf0] sm:$0xff] %vm1355, %v1942
      %1981 = vst.msk [vmem:[%s177 + $0xf8] sm:$0xff] %vm1355, %v1947
      %v1982 = vsel %vm1355, %v1792, 0.0
      %v1983 = vsel %vm1355, %v1797, 0.0
      %v1984 = vadd.f32 %v1982, %v1983
      %v1985 = vsel %vm1355, %v1802, 0.0
      %v1986 = vadd.f32 %v1984, %v1985
      %v1987 = vsel %vm1355, %v1807, 0.0
      %v1988 = vadd.f32 %v1986, %v1987
      %v1989 = vsel %vm1355, %v1812, 0.0
      %v1990 = vadd.f32 %v1988, %v1989
      %v1991 = vsel %vm1355, %v1817, 0.0
      %v1992 = vadd.f32 %v1990, %v1991
      %v1993 = vsel %vm1355, %v1822, 0.0
      %v1994 = vadd.f32 %v1992, %v1993
      %v1995 = vsel %vm1355, %v1827, 0.0
      %v1996 = vadd.f32 %v1994, %v1995
      %v1997 = vsel %vm1355, %v1832, 0.0
      %v1998 = vadd.f32 %v1996, %v1997
      %v1999 = vsel %vm1355, %v1837, 0.0
      %v2000 = vadd.f32 %v1998, %v1999
      %v2001 = vsel %vm1355, %v1842, 0.0
      %v2002 = vadd.f32 %v2000, %v2001
      %v2003 = vsel %vm1355, %v1847, 0.0
      %v2004 = vadd.f32 %v2002, %v2003
      %v2005 = vsel %vm1355, %v1852, 0.0
      %v2006 = vadd.f32 %v2004, %v2005
      %v2007 = vsel %vm1355, %v1857, 0.0
      %v2008 = vadd.f32 %v2006, %v2007
      %v2009 = vsel %vm1355, %v1862, 0.0
      %v2010 = vadd.f32 %v2008, %v2009
      %v2011 = vsel %vm1355, %v1867, 0.0
      %v2012 = vadd.f32 %v2010, %v2011
      %v2013 = vsel %vm1355, %v1872, 0.0
      %v2014 = vadd.f32 %v2012, %v2013
      %v2015 = vsel %vm1355, %v1877, 0.0
      %v2016 = vadd.f32 %v2014, %v2015
      %v2017 = vsel %vm1355, %v1882, 0.0
      %v2018 = vadd.f32 %v2016, %v2017
      %v2019 = vsel %vm1355, %v1887, 0.0
      %v2020 = vadd.f32 %v2018, %v2019
      %v2021 = vsel %vm1355, %v1892, 0.0
      %v2022 = vadd.f32 %v2020, %v2021
      %v2023 = vsel %vm1355, %v1897, 0.0
      %v2024 = vadd.f32 %v2022, %v2023
      %v2025 = vsel %vm1355, %v1902, 0.0
      %v2026 = vadd.f32 %v2024, %v2025
      %v2027 = vsel %vm1355, %v1907, 0.0
      %v2028 = vadd.f32 %v2026, %v2027
      %v2029 = vsel %vm1355, %v1912, 0.0
      %v2030 = vadd.f32 %v2028, %v2029
      %v2031 = vsel %vm1355, %v1917, 0.0
      %v2032 = vadd.f32 %v2030, %v2031
      %v2033 = vsel %vm1355, %v1922, 0.0
      %v2034 = vadd.f32 %v2032, %v2033
      %v2035 = vsel %vm1355, %v1927, 0.0
      %v2036 = vadd.f32 %v2034, %v2035
      %v2037 = vsel %vm1355, %v1932, 0.0
      %v2038 = vadd.f32 %v2036, %v2037
      %v2039 = vsel %vm1355, %v1937, 0.0
      %v2040 = vadd.f32 %v2038, %v2039
      %v2041 = vsel %vm1355, %v1942, 0.0
      %v2042 = vadd.f32 %v2040, %v2041
      %v2043 = vsel %vm1355, %v1947, 0.0
      %v2044 = vadd.f32 %v2042, %v2043
      %v2045 = vrot.slane %v2044, 4
      %v2046 = vadd.f32 %v2044, %v2045
      %v2047 = vrot.slane %v2046, 2
      %v2048 = vadd.f32 %v2046, %v2047
      %v2049 = vrot.slane %v2048, 1
      %v2050 = vadd.f32 %v2048, %v2049
      %v2051 = vmul.f32 %v1792, %v1792
      %v2052 = vmul.f32 %v1797, %v1797
      %v2053 = vmul.f32 %v1802, %v1802
      %v2054 = vmul.f32 %v1807, %v1807
      %v2055 = vmul.f32 %v1812, %v1812
      %v2056 = vmul.f32 %v1817, %v1817
      %v2057 = vmul.f32 %v1822, %v1822
      %v2058 = vmul.f32 %v1827, %v1827
      %v2059 = vmul.f32 %v1832, %v1832
      %v2060 = vmul.f32 %v1837, %v1837
      %v2061 = vmul.f32 %v1842, %v1842
      %v2062 = vmul.f32 %v1847, %v1847
      %v2063 = vmul.f32 %v1852, %v1852
      %v2064 = vmul.f32 %v1857, %v1857
      %v2065 = vmul.f32 %v1862, %v1862
      %v2066 = vmul.f32 %v1867, %v1867
      %v2067 = vmul.f32 %v1872, %v1872
      %v2068 = vmul.f32 %v1877, %v1877
      %v2069 = vmul.f32 %v1882, %v1882
      %v2070 = vmul.f32 %v1887, %v1887
      %v2071 = vmul.f32 %v1892, %v1892
      %v2072 = vmul.f32 %v1897, %v1897
      %v2073 = vmul.f32 %v1902, %v1902
      %v2074 = vmul.f32 %v1907, %v1907
      %v2075 = vmul.f32 %v1912, %v1912
      %v2076 = vmul.f32 %v1917, %v1917
      %v2077 = vmul.f32 %v1922, %v1922
      %v2078 = vmul.f32 %v1927, %v1927
      %v2079 = vmul.f32 %v1932, %v1932
      %v2080 = vmul.f32 %v1937, %v1937
      %v2081 = vmul.f32 %v1942, %v1942
      %v2082 = vmul.f32 %v1947, %v1947
      %v2083 = vsel %vm1355, %v2051, 0.0
      %v2084 = vsel %vm1355, %v2052, 0.0
      %v2085 = vadd.f32 %v2083, %v2084
      %v2086 = vsel %vm1355, %v2053, 0.0
      %v2087 = vadd.f32 %v2085, %v2086
      %v2088 = vsel %vm1355, %v2054, 0.0
      %v2089 = vadd.f32 %v2087, %v2088
      %v2090 = vsel %vm1355, %v2055, 0.0
      %v2091 = vadd.f32 %v2089, %v2090
      %v2092 = vsel %vm1355, %v2056, 0.0
      %v2093 = vadd.f32 %v2091, %v2092
      %v2094 = vsel %vm1355, %v2057, 0.0
      %v2095 = vadd.f32 %v2093, %v2094
      %v2096 = vsel %vm1355, %v2058, 0.0
      %v2097 = vadd.f32 %v2095, %v2096
      %v2098 = vsel %vm1355, %v2059, 0.0
      %v2099 = vadd.f32 %v2097, %v2098
      %v2100 = vsel %vm1355, %v2060, 0.0
      %v2101 = vadd.f32 %v2099, %v2100
      %v2102 = vsel %vm1355, %v2061, 0.0
      %v2103 = vadd.f32 %v2101, %v2102
      %v2104 = vsel %vm1355, %v2062, 0.0
      %v2105 = vadd.f32 %v2103, %v2104
      %v2106 = vsel %vm1355, %v2063, 0.0
      %v2107 = vadd.f32 %v2105, %v2106
      %v2108 = vsel %vm1355, %v2064, 0.0
      %v2109 = vadd.f32 %v2107, %v2108
      %v2110 = vsel %vm1355, %v2065, 0.0
      %v2111 = vadd.f32 %v2109, %v2110
      %v2112 = vsel %vm1355, %v2066, 0.0
      %v2113 = vadd.f32 %v2111, %v2112
      %v2114 = vsel %vm1355, %v2067, 0.0
      %v2115 = vadd.f32 %v2113, %v2114
      %v2116 = vsel %vm1355, %v2068, 0.0
      %v2117 = vadd.f32 %v2115, %v2116
      %v2118 = vsel %vm1355, %v2069, 0.0
      %v2119 = vadd.f32 %v2117, %v2118
      %v2120 = vsel %vm1355, %v2070, 0.0
      %v2121 = vadd.f32 %v2119, %v2120
      %v2122 = vsel %vm1355, %v2071, 0.0
      %v2123 = vadd.f32 %v2121, %v2122
      %v2124 = vsel %vm1355, %v2072, 0.0
      %v2125 = vadd.f32 %v2123, %v2124
      %v2126 = vsel %vm1355, %v2073, 0.0
      %v2127 = vadd.f32 %v2125, %v2126
      %v2128 = vsel %vm1355, %v2074, 0.0
      %v2129 = vadd.f32 %v2127, %v2128
      %v2130 = vsel %vm1355, %v2075, 0.0
      %v2131 = vadd.f32 %v2129, %v2130
      %v2132 = vsel %vm1355, %v2076, 0.0
      %v2133 = vadd.f32 %v2131, %v2132
      %v2134 = vsel %vm1355, %v2077, 0.0
      %v2135 = vadd.f32 %v2133, %v2134
      %v2136 = vsel %vm1355, %v2078, 0.0
      %v2137 = vadd.f32 %v2135, %v2136
      %v2138 = vsel %vm1355, %v2079, 0.0
      %v2139 = vadd.f32 %v2137, %v2138
      %v2140 = vsel %vm1355, %v2080, 0.0
      %v2141 = vadd.f32 %v2139, %v2140
      %v2142 = vsel %vm1355, %v2081, 0.0
      %v2143 = vadd.f32 %v2141, %v2142
      %v2144 = vsel %vm1355, %v2082, 0.0
      %v2145 = vadd.f32 %v2143, %v2144
      %v2146 = vrot.slane %v2145, 4
      %v2147 = vadd.f32 %v2145, %v2146
      %v2148 = vrot.slane %v2147, 2
      %v2149 = vadd.f32 %v2147, %v2148
      %v2150 = vrot.slane %v2149, 1
      %v2151 = vadd.f32 %v2149, %v2150
      %v2152 = vsel %vm247, %v2050, %v2151
      %vm2153 = vcmask 25600
      %2154 = vst.msk [vmem:[%s181] sm:$0x3] %vm2153, %v2152
      %p2155 = scmp.lt.s32.totalorder %s15, 1
      %s2156 = scalar_select %p2155, %s15, 1
      %s2157 = smul.addr %s2156, 32
      %s2158 = smul.addr %s2157, 8
      %s2159 = scalar_lea.vmem %s2, %s2158
      %p2160 = scmp.lt.s32.totalorder %s15, 1
      %s2161 = scalar_select %p2160, %s15, 1
      %s2162 = smul.addr %s2161, 2
      %s2163 = scalar_lea.vmem %s3, %s2162
      // Predicated region
      $region29: #{residual_block.3} parent=27 // pred_check
        %p2164 = pneg %p80
      $region30: #{residual_block.3} parent=27 // pred_check_branch
        %2166 = sbr.rel (%p2164) target = $region32
      $region31: #{residual_block.3} parent=27 // pred_region
        _
      $region32: #{residual_block.3} parent=27 // pred_fallthru
        _
      // Predicated region
      $region33: #{residual_block.3} parent=27 // pred_check
        %p2167 = pneg %p106
      $region34: #{residual_block.3} parent=27 // pred_check_branch
        %2169 = sbr.rel (%p2167) target = $region36
      $region35: #{residual_block.3} parent=27 // pred_region
        _
      $region36: #{residual_block.3} parent=27 // pred_fallthru
        _
    $region28: #{residual_block.3} parent=5 // pred_fallthru
      _
    %p2170 = scmp.le.s32.totalorder 2, %s10
    // Predicated region
    $region37: #{residual_block.3} parent=5 // pred_check
      %p2171 = pneg %p2170
    $region38: #{residual_block.3} parent=5 // pred_check_branch
      %2173 = sbr.rel (%p2171) target = $region40
    $region39: #{residual_block.3} parent=5 // pred_region
      %s2174 = ssub.s32 %s10, 2
      // Predicated region
      $region41: #{residual_block.3} parent=39 // pred_check
        %p2175 = pneg %p86
      $region42: #{residual_block.3} parent=39 // pred_check_branch
        %2177 = sbr.rel (%p2175) target = $region44
      $region43: #{residual_block.3} parent=39 // pred_region
        %p2178 = scmp.lt.s32.totalorder %s16, 1
        %s2179 = scalar_select %p2178, %s16, 1
        %s2180 = smul.addr %s2179, 32
        %s2181 = smul.addr %s2180, 8
        %s2182 = scalar_lea.vmem %s2, %s2181
      $region44: #{residual_block.3} parent=39 // pred_fallthru
        _
      // Predicated region
      $region45: #{residual_block.3} parent=39 // pred_check
        %p2183 = pneg %p112
      $region46: #{residual_block.3} parent=39 // pred_check_branch
        %2185 = sbr.rel (%p2183) target = $region48
      $region47: #{residual_block.3} parent=39 // pred_region
        %p2186 = scmp.lt.s32.totalorder %s16, 1
        %s2187 = scalar_select %p2186, %s16, 1
        %s2188 = smul.addr %s2187, 2
        %s2189 = scalar_lea.vmem %s3, %s2188
      $region48: #{residual_block.3} parent=39 // pred_fallthru
        _
    $region40: #{residual_block.3} parent=5 // pred_fallthru
      _
  $region6: #{residual_block.3} parent=0 // loop_footer
    %s14 = sadd.s32 1, %s10
  $region7: #{residual_block.3} parent=0 // loop_footer_branch
    %9 = sbr.rel target = $region3
  $region8: #{residual_block.3} parent=0 // loop_exit
    _

// kernel: residual_block.4
$region0: #{residual_block.4}
  #allocation0 [shape = 'u32[]', space=smem, size = 0x4, offset = 0x4, fixed_abs, tag = 'smem constant byte address 0x4 - core index']
  #allocation1 [shape = 'u32[144,128]{1,0:T(1,128)}', space=vmem, size = 0x12000, scoped, tag = 'internal scratch']
  %s0 = inlined_call_operand.vmem [shape: f32[2,16,16,4], index: 0, kind: input, shape index: {}]
  %s1 = inlined_call_operand.vmem [shape: f32[1,4], index: 1, kind: input, shape index: {}]
  %s2 = inlined_call_operand.vmem [shape: f32[1,4], index: 2, kind: input, shape index: {}]
  %s3 = inlined_call_operand.vmem [shape: f32[36,4], index: 3, kind: input, shape index: {}]
  %s4 = inlined_call_operand.vmem [shape: f32[2,16,16,4], index: 4, kind: output, shape index: {0}]
  %s5 = inlined_call_operand.vmem [shape: f32[2,2,4], index: 5, kind: output, shape index: {1}]
  %6 = xla_tuple %s4, %s5
  %s7 = sld [smem:[#allocation0]]
  $region57: #{residual_block.4} parent=0
    _
  %s9 = ssub.s32 1, %s7
  %s10 = scalar_select 0, %s9, %s7
  loop: start=0, step=1, limit=4
  $region2: #{residual_block.4} parent=0 // loop_pre_header
    _
  $region3: #{residual_block.4} parent=0 // loop_header
    %s12 = sphi 0, %s16
    %p13 = scmp.ge.s32.totalorder %s12, 4
    %s22 = sphi 0, %s24
    %s25 = sphi 0, %s22
    %s26 = sphi 0, %s25
    %s42 = sphi 0, %s26
    %s46 = sphi 0, %s46
    %s48 = sphi 0, %s46
    %s49 = sphi 0, %s48
    %s63 = sphi 0, %s49
    %s67 = sphi 0, %s67
    %s69 = sphi 0, %s67
    %s70 = sphi 0, %s69
    %s84 = sphi 0, %s70
    %s88 = sphi 0, %s88
    %s90 = sphi 0, %s88
    %s91 = sphi 0, %s90
    %s105 = sphi 0, %s91
    %s111 = sphi 0, %s113
    %s114 = sphi 0, %s111
    %s115 = sphi 0, %s114
    %s131 = sphi 0, %s115
    %s137 = sphi 0, %s139
    %s140 = sphi 0, %s137
    %s141 = sphi 0, %s140
    %s157 = sphi 0, %s141
  $region4: #{residual_block.4} parent=0 // loop_header_branch
    %15 = sbr.rel (%p13) target = $region8
  $region5: #{residual_block.4} parent=0 // loop_body
    %s17 = ssub.s32 %s12, 1
    %s18 = ssub.s32 %s12, 2
    %s19 = sadd.s32 %s12, 1
    %s20 = ssub.s32 %s12, %s19
    %p21 = scmp.eq.s32.totalorder %s20, 0
    %s23 = sadd.s32 %s22, 1
    %s24 = scalar_select %p21, %s22, %s23
    %p27 = pneg %p21
    %p28 = scmp.eq.s32.totalorder %s12, 1
    %p29 = por %p27, %p28
    %p30 = scmp.ne.s32.totalorder %s22, %s25
    %p31 = scmp.eq.s32.totalorder %s12, 0
    %p32 = por %p30, %p31
    %p33 = scmp.ne.s32.totalorder %s22, %s25
    %p34 = scmp.eq.s32.totalorder %s17, 1
    %p35 = por %p33, %p34
    %p36 = scmp.ne.s32.totalorder %s25, %s26
    %p37 = scmp.eq.s32.totalorder %s17, 0
    %p38 = por %p36, %p37
    %p39 = scmp.ne.s32.totalorder %s25, %s26
    %p40 = scmp.eq.s32.totalorder %s18, 1
    %p41 = por %p39, %p40
    %p43 = scmp.ne.s32.totalorder %s26, %s42
    %p44 = scmp.eq.s32.totalorder %s18, 0
    %p45 = por %p43, %p44
    %s47 = sadd.s32 %s46, 1
    %p50 = scmp.eq.s32.totalorder %s12, 1
    %p51 = scmp.ne.s32.totalorder %s46, %s48
    %p52 = scmp.eq.s32.totalorder %s12, 0
    %p53 = por %p51, %p52
    %p54 = scmp.ne.s32.totalorder %s46, %s48
    %p55 = scmp.eq.s32.totalorder %s17, 1
    %p56 = por %p54, %p55
    %p57 = scmp.ne.s32.totalorder %s48, %s49
    %p58 = scmp.eq.s32.totalorder %s17, 0
    %p59 = por %p57, %p58
    %p60 = scmp.ne.s32.totalorder %s48, %s49
    %p61 = scmp.eq.s32.totalorder %s18, 1
    %p62 = por %p60, %p61
    %p64 = scmp.ne.s32.totalorder %s49, %s63
    %p65 = scmp.eq.s32.totalorder %s18, 0
    %p66 = por %p64, %p65
    %s68 = sadd.s32 %s67, 1
    %p71 = scmp.eq.s32.totalorder %s12, 1
    %p72 = scmp.ne.s32.totalorder %s67, %s69
    %p73 = scmp.eq.s32.totalorder %s12, 0
    %p74 = por %p72, %p73
    %p75 = scmp.ne.s32.totalorder %s67, %s69
    %p76 = scmp.eq.s32.totalorder %s17, 1
    %p77 = por %p75, %p76
    %p78 = scmp.ne.s32.totalorder %s69, %s70
    %p79 = scmp.eq.s32.totalorder %s17, 0
    %p80 = por %p78, %p79
    %p81 = scmp.ne.s32.totalorder %s69, %s70
    %p82 = scmp.eq.s32.totalorder %s18, 1
    %p83 = por %p81, %p82
    %p85 = scmp.ne.s32.totalorder %s70, %s84
    %p86 = scmp.eq.s32.totalorder %s18, 0
    %p87 = por %p85, %p86
    %s89 = sadd.s32 %s88, 1
    %p92 = scmp.eq.s32.totalorder %s12, 1
    %p93 = scmp.ne.s32.totalorder %s88, %s90
    %p94 = scmp.eq.s32.totalorder %s12, 0
    %p95 = por %p93, %p94
    %p96 = scmp.ne.s32.totalorder %s88, %s90
    %p97 = scmp.eq.s32.totalorder %s17, 1
    %p98 = por %p96, %p97
    %p99 = scmp.ne.s32.totalorder %s90, %s91
    %p100 = scmp.eq.s32.totalorder %s17, 0
    %p101 = por %p99, %p100
    %p102 = scmp.ne.s32.totalorder %s90, %s91
    %p103 = scmp.eq.s32.totalorder %s18, 1
    %p104 = por %p102, %p103
    %p106 = scmp.ne.s32.totalorder %s91, %s105
    %p107 = scmp.eq.s32.totalorder %s18, 0
    %p108 = por %p106, %p107
    %s109 = ssub.s32 %s12, %s19
    %p110 = scmp.eq.s32.totalorder %s109, 0
    %s112 = sadd.s32 %s111, 1
    %s113 = scalar_select %p110, %s111, %s112
    %p116 = pneg %p110
    %p117 = scmp.eq.s32.totalorder %s12, 1
    %p118 = por %p116, %p117
    %p119 = scmp.ne.s32.totalorder %s111, %s114
    %p120 = scmp.eq.s32.totalorder %s12, 0
    %p121 = por %p119, %p120
    %p122 = scmp.ne.s32.totalorder %s111, %s114
    %p123 = scmp.eq.s32.totalorder %s17, 1
    %p124 = por %p122, %p123
    %p125 = scmp.ne.s32.totalorder %s114, %s115
    %p126 = scmp.eq.s32.totalorder %s17, 0
    %p127 = por %p125, %p126
    %p128 = scmp.ne.s32.totalorder %s114, %s115
    %p129 = scmp.eq.s32.totalorder %s18, 1
    %p130 = por %p128, %p129
    %p132 = scmp.ne.s32.totalorder %s115, %s131
    %p133 = scmp.eq.s32.totalorder %s18, 0
    %p134 = por %p132, %p133
    %s135 = ssub.s32 %s12, %s19
    %p136 = scmp.eq.s32.totalorder %s135, 0
    %s138 = sadd.s32 %s137, 1
    %s139 = scalar_select %p136, %s137, %s138
    %p142 = pneg %p136
    %p143 = scmp.eq.s32.totalorder %s12, 1
    %p144 = por %p142, %p143
    %p145 = scmp.ne.s32.totalorder %s137, %s140
    %p146 = scmp.eq.s32.totalorder %s12, 0
    %p147 = por %p145, %p146
    %p148 = scmp.ne.s32.totalorder %s137, %s140
    %p149 = scmp.eq.s32.totalorder %s17, 1
    %p150 = por %p148, %p149
    %p151 = scmp.ne.s32.totalorder %s140, %s141
    %p152 = scmp.eq.s32.totalorder %s17, 0
    %p153 = por %p151, %p152
    %p154 = scmp.ne.s32.totalorder %s140, %s141
    %p155 = scmp.eq.s32.totalorder %s18, 1
    %p156 = por %p154, %p155
    %p158 = scmp.ne.s32.totalorder %s141, %s157
    %p159 = scmp.eq.s32.totalorder %s18, 0
    %p160 = por %p158, %p159
    %p161 = scmp.le.s32.totalorder 1, %s12
    %p162 = scmp.lt.s32.totalorder %s12, 3
    %p163 = pnand %p161, %p162
    %p164 = pneg %p163
    // Predicated region
    $region9: #{residual_block.4} parent=5 // pred_check
      _
    $region10: #{residual_block.4} parent=5 // pred_check_branch
      %166 = sbr.rel (%p163) target = $region12
    $region11: #{residual_block.4} parent=5 // pred_region
      %s167 = ssub.s32 %s12, 1
      // Predicated region
      $region13: #{residual_block.4} parent=11 // pred_check
        %p168 = pneg %p59
      $region14: #{residual_block.4} parent=11 // pred_check_branch
        %170 = sbr.rel (%p168) target = $region16
      $region15: #{residual_block.4} parent=11 // pred_region
        _
      $region16: #{residual_block.4} parent=11 // pred_fallthru
        _
      // Predicated region
      $region17: #{residual_block.4} parent=11 // pred_check
        %p171 = pneg %p80
      $region18: #{residual_block.4} parent=11 // pred_check_branch
        %173 = sbr.rel (%p171) target = $region20
      $region19: #{residual_block.4} parent=11 // pred_region
        _
      $region20: #{residual_block.4} parent=11 // pred_fallthru
        _
      // Predicated region
      $region21: #{residual_block.4} parent=11 // pred_check
        %p174 = pneg %p101
      $region22: #{residual_block.4} parent=11 // pred_check_branch
        %176 = sbr.rel (%p174) target = $region24
      $region23: #{residual_block.4} parent=11 // pred_region
        _
      $region24: #{residual_block.4} parent=11 // pred_fallthru
        _
    $region12: #{residual_block.4} parent=5 // pred_fallthru
      _
    %p177 = scmp.lt.s32.totalorder %s12, 2
    // Predicated region
    $region25: #{residual_block.4} parent=5 // pred_check
      %p178 = pneg %p177
    $region26: #{residual_block.4} parent=5 // pred_check_branch
      %180 = sbr.rel (%p178) target = $region28
    $region27: #{residual_block.4} parent=5 // pred_region
      // Predicated region
      $region29: #{residual_block.4} parent=27 // pred_check
        %p181 = pneg %p32
      $region30: #{residual_block.4} parent=27 // pred_check_branch
        %183 = sbr.rel (%p181) target = $region32
      $region31: #{residual_block.4} parent=27 // pred_region
        %p184 = scmp.lt.s32.totalorder %s12, 1
        %s185 = scalar_select %p184, %s12, 1
        %s186 = smul.addr %s185, 32
        %s187 = smul.addr %s186, 8
        %s188 = scalar_lea.vmem %s0, %s187
      $region32: #{residual_block.4} parent=27 // pred_fallthru
        _
    $region28: #{residual_block.4} parent=5 // pred_fallthru
      _
    %p189 = scmp.le.s32.totalorder 1, %s12
    %p190 = scmp.lt.s32.totalorder %s12, 3
    %p191 = pnand %p189, %p190
    %p192 = pneg %p191
    // Predicated region
    $region33: #{residual_block.4} parent=5 // pred_check
      _
    $region34: #{residual_block.4} parent=5 // pred_check_branch
      %194 = sbr.rel (%p191) target = $region36
    $region35: #{residual_block.4} parent=5 // pred_region
      %s195 = ssub.s32 %s12, 1
      %p196 = scmp.lt.s32.totalorder %s17, 1
      %s197 = scalar_select %p196, %s17, 1
      %s198 = smul.addr %s197, 32
      %s199 = smul.addr %s198, 8
      %s200 = scalar_lea.vmem %s0, %s199
      %p201 = pneg %p38
      %p202 = pneg %p35
      %p203 = pneg %p59
      %p204 = pneg %p56
      %p205 = pneg %p80
      %p206 = pneg %p77
      %p207 = pneg %p101
      %p208 = pneg %p98
      %p209 = pneg %p127
      %p210 = pneg %p124
      %p211 = scmp.lt.s32.totalorder %s17, 1
      %s212 = scalar_select %p211, %s17, 1
      %s213 = smul.addr %s212, 32
      %s214 = smul.addr %s213, 8
      %s215 = scalar_lea.vmem %s4, %s214
      %p216 = pneg %p153
      %p217 = pneg %p150
      %p218 = scmp.lt.s32.totalorder %s17, 1
      %s219 = scalar_select %p218, %s17, 1
      %s220 = smul.addr %s219, 2
      %s221 = scalar_lea.vmem %s5, %s220
      %p222 = scmp.lt.s32.totalorder %s17, 1
      %s223 = scalar_select %p222, %s17, 1
      %s224 = smul.addr %s223, 32
      %s225 = smul.addr %s224, 8
      %s226 = scalar_lea.vmem %s0, %s225
      %p227 = scmp.lt.s32.totalorder %s17, 1
      %s228 = scalar_select %p227, %s17, 1
      %s229 = smul.addr %s228, 32
      %s230 = smul.addr %s229, 8
      %s231 = scalar_lea.vmem %s4, %s230
      %p232 = scmp.lt.s32.totalorder %s17, 1
      %s233 = scalar_select %p232, %s17, 1
      %s234 = smul.addr %s233, 2
      %s235 = scalar_lea.vmem %s5, %s234
      %v236 = vld [vmem:[%s1] sm:$0x1]
      %v237 = vld [vmem:[%s2] sm:$0x1]
      %v238 = vld [vmem:[%s226] sm:$0xff]
      %v239 = vld [vmem:[%s226 + $0x8] sm:$0xff]
      %v240 = vld [vmem:[%s226 + $0x10] sm:$0xff]
      %v241 = vld [vmem:[%s226 + $0x18] sm:$0xff]
      %v242 = vld [vmem:[%s226 + $0x20] sm:$0xff]
      %v243 = vld [vmem:[%s226 + $0x28] sm:$0xff]
      %v244 = vld [vmem:[%s226 + $0x30] sm:$0xff]
      %v245 = vld [vmem:[%s226 + $0x38] sm:$0xff]
      %v246 = vld [vmem:[%s226 + $0x40] sm:$0xff]
      %v247 = vld [vmem:[%s226 + $0x48] sm:$0xff]
      %v248 = vld [vmem:[%s226 + $0x50] sm:$0xff]
      %v249 = vld [vmem:[%s226 + $0x58] sm:$0xff]
      %v250 = vld [vmem:[%s226 + $0x60] sm:$0xff]
      %v251 = vld [vmem:[%s226 + $0x68] sm:$0xff]
      %v252 = vld [vmem:[%s226 + $0x70] sm:$0xff]
      %v253 = vld [vmem:[%s226 + $0x78] sm:$0xff]
      %v254 = vld [vmem:[%s226 + $0x80] sm:$0xff]
      %v255 = vld [vmem:[%s226 + $0x88] sm:$0xff]
      %v256 = vld [vmem:[%s226 + $0x90] sm:$0xff]
      %v257 = vld [vmem:[%s226 + $0x98] sm:$0xff]
      %v258 = vld [vmem:[%s226 + $0xa0] sm:$0xff]
      %v259 = vld [vmem:[%s226 + $0xa8] sm:$0xff]
      %v260 = vld [vmem:[%s226 + $0xb0] sm:$0xff]
      %v261 = vld [vmem:[%s226 + $0xb8] sm:$0xff]
      %v262 = vld [vmem:[%s226 + $0xc0] sm:$0xff]
      %v263 = vld [vmem:[%s226 + $0xc8] sm:$0xff]
      %v264 = vld [vmem:[%s226 + $0xd0] sm:$0xff]
      %v265 = vld [vmem:[%s226 + $0xd8] sm:$0xff]
      %v266 = vld [vmem:[%s226 + $0xe0] sm:$0xff]
      %v267 = vld [vmem:[%s226 + $0xe8] sm:$0xff]
      %v268 = vld [vmem:[%s226 + $0xf0] sm:$0xff]
      %v269 = vld [vmem:[%s226 + $0xf8] sm:$0xff]
      %v271 = vlaneseq
      %v272 = vshrl.u32 %v271, 7
      %v273 = vsub.s32 0, %v272
      %v274 = vrot.slane %v236, %v273
      %v276 = vmul.f32 %v238, %v274
      %v277 = vmul.f32 %v239, %v274
      %v278 = vmul.f32 %v240, %v274
      %v279 = vmul.f32 %v241, %v274
      %v280 = vmul.f32 %v242, %v274
      %v281 = vmul.f32 %v243, %v274
      %v282 = vmul.f32 %v244, %v274
      %v283 = vmul.f32 %v245, %v274
      %v284 = vmul.f32 %v246, %v274
      %v285 = vmul.f32 %v247, %v274
      %v286 = vmul.f32 %v248, %v274
      %v287 = vmul.f32 %v249, %v274
      %v288 = vmul.f32 %v250, %v274
      %v289 = vmul.f32 %v251, %v274
      %v290 = vmul.f32 %v252, %v274
      %v291 = vmul.f32 %v253, %v274
      %v292 = vmul.f32 %v254, %v274
      %v293 = vmul.f32 %v255, %v274
      %v294 = vmul.f32 %v256, %v274
      %v295 = vmul.f32 %v257, %v274
      %v296 = vmul.f32 %v258, %v274
      %v297 = vmul.f32 %v259, %v274
      %v298 = vmul.f32 %v260, %v274
      %v299 = vmul.f32 %v261, %v274
      %v300 = vmul.f32 %v262, %v274
      %v301 = vmul.f32 %v263, %v274
      %v302 = vmul.f32 %v264, %v274
      %v303 = vmul.f32 %v265, %v274
      %v304 = vmul.f32 %v266, %v274
      %v305 = vmul.f32 %v267, %v274
      %v306 = vmul.f32 %v268, %v274
      %v307 = vmul.f32 %v269, %v274
      %v309 = vlaneseq
      %v310 = vshrl.u32 %v309, 7
      %v311 = vsub.s32 0, %v310
      %v312 = vrot.slane %v237, %v311
      %v314 = vadd.f32 %v276, %v312
      %v315 = vadd.f32 %v277, %v312
      %v316 = vadd.f32 %v278, %v312
      %v317 = vadd.f32 %v279, %v312
      %v318 = vadd.f32 %v280, %v312
      %v319 = vadd.f32 %v281, %v312
      %v320 = vadd.f32 %v282, %v312
      %v321 = vadd.f32 %v283, %v312
      %v322 = vadd.f32 %v284, %v312
      %v323 = vadd.f32 %v285, %v312
      %v324 = vadd.f32 %v286, %v312
      %v325 = vadd.f32 %v287, %v312
      %v326 = vadd.f32 %v288, %v312
      %v327 = vadd.f32 %v289, %v312
      %v328 = vadd.f32 %v290, %v312
      %v329 = vadd.f32 %v291, %v312
      %v330 = vadd.f32 %v292, %v312
      %v331 = vadd.f32 %v293, %v312
      %v332 = vadd.f32 %v294, %v312
      %v333 = vadd.f32 %v295, %v312
      %v334 = vadd.f32 %v296, %v312
      %v335 = vadd.f32 %v297, %v312
      %v336 = vadd.f32 %v298, %v312
      %v337 = vadd.f32 %v299, %v312
      %v338 = vadd.f32 %v300, %v312
      %v339 = vadd.f32 %v301, %v312
      %v340 = vadd.f32 %v302, %v312
      %v341 = vadd.f32 %v303, %v312
      %v342 = vadd.f32 %v304, %v312
      %v343 = vadd.f32 %v305, %v312
      %v344 = vadd.f32 %v306, %v312
      %v345 = vadd.f32 %v307, %v312
      %v346 = vmax.f32 %v314, 0.0
      %v347 = vmax.f32 %v315, 0.0
      %v348 = vmax.f32 %v316, 0.0
      %v349 = vmax.f32 %v317, 0.0
      %v350 = vmax.f32 %v318, 0.0
      %v351 = vmax.f32 %v319, 0.0
      %v352 = vmax.f32 %v320, 0.0
      %v353 = vmax.f32 %v321, 0.0
      %v354 = vmax.f32 %v322, 0.0
      %v355 = vmax.f32 %v323, 0.0
      %v356 = vmax.f32 %v324, 0.0
      %v357 = vmax.f32 %v325, 0.0
      %v358 = vmax.f32 %v326, 0.0
      %v359 = vmax.f32 %v327, 0.0
      %v360 = vmax.f32 %v328, 0.0
      %v361 = vmax.f32 %v329, 0.0
      %v362 = vmax.f32 %v330, 0.0
      %v363 = vmax.f32 %v331, 0.0
      %v364 = vmax.f32 %v332, 0.0
      %v365 = vmax.f32 %v333, 0.0
      %v366 = vmax.f32 %v334, 0.0
      %v367 = vmax.f32 %v335, 0.0
      %v368 = vmax.f32 %v336, 0.0
      %v369 = vmax.f32 %v337, 0.0
      %v370 = vmax.f32 %v338, 0.0
      %v371 = vmax.f32 %v339, 0.0
      %v372 = vmax.f32 %v340, 0.0
      %v373 = vmax.f32 %v341, 0.0
      %v374 = vmax.f32 %v342, 0.0
      %v375 = vmax.f32 %v343, 0.0
      %v376 = vmax.f32 %v344, 0.0
      %v377 = vmax.f32 %v345, 0.0
      %vm411 = vcmask 1040384
      %v412 = vrot.slane 0.0, 7
      %v413 = vsel %vm411, %v412, %v412
      %v414 = vrot.slane %v346, 7
      %v415 = vrot.slane %v347, 7
      %v416 = vsel %vm411, %v414, %v415
      %v417 = vrot.slane %v348, 7
      %v418 = vrot.slane %v349, 7
      %v419 = vsel %vm411, %v417, %v418
      %v420 = vrot.slane %v350, 7
      %v421 = vrot.slane %v351, 7
      %v422 = vsel %vm411, %v420, %v421
      %v423 = vrot.slane %v352, 7
      %v424 = vrot.slane %v353, 7
      %v425 = vsel %vm411, %v423, %v424
      %v426 = vrot.slane %v354, 7
      %v427 = vrot.slane %v355, 7
      %v428 = vsel %vm411, %v426, %v427
      %v429 = vrot.slane %v356, 7
      %v430 = vrot.slane %v357, 7
      %v431 = vsel %vm411, %v429, %v430
      %v432 = vrot.slane %v358, 7
      %v433 = vrot.slane %v359, 7
      %v434 = vsel %vm411, %v432, %v433
      %v435 = vrot.slane %v360, 7
      %v436 = vrot.slane %v361, 7
      %v437 = vsel %vm411, %v435, %v436
      %v438 = vrot.slane %v362, 7
      %v439 = vrot.slane %v363, 7
      %v440 = vsel %vm411, %v438, %v439
      %v441 = vrot.slane %v364, 7
      %v442 = vrot.slane %v365, 7
      %v443 = vsel %vm411, %v441, %v442
      %v444 = vrot.slane %v366, 7
      %v445 = vrot.slane %v367, 7
      %v446 = vsel %vm411, %v444, %v445
      %v447 = vrot.slane %v368, 7
      %v448 = vrot.slane %v369, 7
      %v449 = vsel %vm411, %v447, %v448
      %v450 = vrot.slane %v370, 7
      %v451 = vrot.slane %v371, 7
      %v452 = vsel %vm411, %v450, %v451
      %v453 = vrot.slane %v372, 7
      %v454 = vrot.slane %v373, 7
      %v455 = vsel %vm411, %v453, %v454
      %v456 = vrot.slane %v374, 7
      %v457 = vrot.slane %v375, 7
      %v458 = vsel %vm411, %v456, %v457
      %v459 = vrot.slane %v376, 7
      %v460 = vrot.slane %v377, 7
      %v461 = vsel %vm411, %v459, %v460
      %v511 = vsel %vm411, 0.0, %v412
      %v512 = vsel %vm411, 0.0, %v414
      %v513 = vsel %vm411, 0.0, %v417
      %v514 = vsel %vm411, 0.0, %v420
      %v515 = vsel %vm411, 0.0, %v423
      %v516 = vsel %vm411, 0.0, %v426
      %v517 = vsel %vm411, 0.0, %v429
      %v518 = vsel %vm411, 0.0, %v432
      %v519 = vsel %vm411, 0.0, %v435
      %v520 = vsel %vm411, 0.0, %v438
      %v521 = vsel %vm411, 0.0, %v441
      %v522 = vsel %vm411, 0.0, %v444
      %v523 = vsel %vm411, 0.0, %v447
      %v524 = vsel %vm411, 0.0, %v450
      %v525 = vsel %vm411, 0.0, %v453
      %v526 = vsel %vm411, 0.0, %v456
      %v527 = vsel %vm411, 0.0, %v459
      %v528 = vsel %vm411, %v412, 0.0
      %v529 = vsel %vm411, %v415, 0.0
      %v530 = vsel %vm411, %v418, 0.0
      %v531 = vsel %vm411, %v421, 0.0
      %v532 = vsel %vm411, %v424, 0.0
      %v533 = vsel %vm411, %v427, 0.0
      %v534 = vsel %vm411, %v430, 0.0
      %v535 = vsel %vm411, %v433, 0.0
      %v536 = vsel %vm411, %v436, 0.0
      %v537 = vsel %vm411, %v439, 0.0
      %v538 = vsel %vm411, %v442, 0.0
      %v539 = vsel %vm411, %v445, 0.0
      %v540 = vsel %vm411, %v448, 0.0
      %v541 = vsel %vm411, %v451, 0.0
      %v542 = vsel %vm411, %v454, 0.0
      %v543 = vsel %vm411, %v457, 0.0
      %v544 = vsel %vm411, %v460, 0.0
      %vm577 = vcmask 1046528
      %v578 = vrot.slane %v511, 1
      %v579 = vrot.slane %v413, 1
      %v580 = vsel %vm577, %v578, %v579
      %v581 = vrot.slane %v528, 1
      %v582 = vsel %vm577, %v579, %v581
      %v583 = vrot.slane %v512, 1
      %v584 = vrot.slane %v416, 1
      %v585 = vsel %vm577, %v583, %v584
      %v586 = vrot.slane %v529, 1
      %v587 = vsel %vm577, %v584, %v586
      %v588 = vrot.slane %v513, 1
      %v589 = vrot.slane %v419, 1
      %v590 = vsel %vm577, %v588, %v589
      %v591 = vrot.slane %v530, 1
      %v592 = vsel %vm577, %v589, %v591
      %v593 = vrot.slane %v514, 1
      %v594 = vrot.slane %v422, 1
      %v595 = vsel %vm577, %v593, %v594
      %v596 = vrot.slane %v531, 1
      %v597 = vsel %vm577, %v594, %v596
      %v598 = vrot.slane %v515, 1
      %v599 = vrot.slane %v425, 1
      %v600 = vsel %vm577, %v598, %v599
      %v601 = vrot.slane %v532, 1
      %v602 = vsel %vm577, %v599, %v601
      %v603 = vrot.slane %v516, 1
      %v604 = vrot.slane %v428, 1
      %v605 = vsel %vm577, %v603, %v604
      %v606 = vrot.slane %v533, 1
      %v607 = vsel %vm577, %v604, %v606
      %v608 = vrot.slane %v517, 1
      %v609 = vrot.slane %v431, 1
      %v610 = vsel %vm577, %v608, %v609
      %v611 = vrot.slane %v534, 1
      %v612 = vsel %vm577, %v609, %v611
      %v613 = vrot.slane %v518, 1
      %v614 = vrot.slane %v434, 1
      %v615 = vsel %vm577, %v613, %v614
      %v616 = vrot.slane %v535, 1
      %v617 = vsel %vm577, %v614, %v616
      %v618 = vrot.slane %v519, 1
      %v619 = vrot.slane %v437, 1
      %v620 = vsel %vm577, %v618, %v619
      %v621 = vrot.slane %v536, 1
      %v622 = vsel %vm577, %v619, %v621
      %v623 = vrot.slane %v520, 1
      %v624 = vrot.slane %v440, 1
      %v625 = vsel %vm577, %v623, %v624
      %v626 = vrot.slane %v537, 1
      %v627 = vsel %vm577, %v624, %v626
      %v628 = vrot.slane %v521, 1
      %v629 = vrot.slane %v443, 1
      %v630 = vsel %vm577, %v628, %v629
      %v631 = vrot.slane %v538, 1
      %v632 = vsel %vm577, %v629, %v631
      %v633 = vrot.slane %v522, 1
      %v634 = vrot.slane %v446, 1
      %v635 = vsel %vm577, %v633, %v634
      %v636 = vrot.slane %v539, 1
      %v637 = vsel %vm577, %v634, %v636
      %v638 = vrot.slane %v523, 1
      %v639 = vrot.slane %v449, 1
      %v640 = vsel %vm577, %v638, %v639
      %v641 = vrot.slane %v540, 1
      %v642 = vsel %vm577, %v639, %v641
      %v643 = vrot.slane %v524, 1
      %v644 = vrot.slane %v452, 1
      %v645 = vsel %vm577, %v643, %v644
      %v646 = vrot.slane %v541, 1
      %v647 = vsel %vm577, %v644, %v646
      %v648 = vrot.slane %v525, 1
      %v649 = vrot.slane %v455, 1
      %v650 = vsel %vm577, %v648, %v649
      %v651 = vrot.slane %v542, 1
      %v652 = vsel %vm577, %v649, %v651
      %v653 = vrot.slane %v526, 1
      %v654 = vrot.slane %v458, 1
      %v655 = vsel %vm577, %v653, %v654
      %v656 = vrot.slane %v543, 1
      %v657 = vsel %vm577, %v654, %v656
      %658 = vrot.lane.b32.xlu0 %v580, 4
      %v659 = vpop.permute.xlu0 %658
      %660 = vrot.lane.b32.xlu0 %v582, 4
      %v661 = vpop.permute.xlu0 %660
      %662 = vrot.lane.b32.xlu0 %v585, 4
      %v663 = vpop.permute.xlu0 %662
      %664 = vrot.lane.b32.xlu0 %v587, 4
      %v665 = vpop.permute.xlu0 %664
      %666 = vrot.lane.b32.xlu0 %v590, 4
      %v667 = vpop.permute.xlu0 %666
      %668 = vrot.lane.b32.xlu0 %v592, 4
      %v669 = vpop.permute.xlu0 %668
      %670 = vrot.lane.b32.xlu0 %v595, 4
      %v671 = vpop.permute.xlu0 %670
      %672 = vrot.lane.b32.xlu0 %v597, 4
      %v673 = vpop.permute.xlu0 %672
      %674 = vrot.lane.b32.xlu0 %v600, 4
      %v675 = vpop.permute.xlu0 %674
      %676 = vrot.lane.b32.xlu0 %v602, 4
      %v677 = vpop.permute.xlu0 %676
      %678 = vrot.lane.b32.xlu0 %v605, 4
      %v679 = vpop.permute.xlu0 %678
      %680 = vrot.lane.b32.xlu0 %v607, 4
      %v681 = vpop.permute.xlu0 %680
      %682 = vrot.lane.b32.xlu0 %v610, 4
      %v683 = vpop.permute.xlu0 %682
      %684 = vrot.lane.b32.xlu0 %v612, 4
      %v685 = vpop.permute.xlu0 %684
      %686 = vrot.lane.b32.xlu0 %v615, 4
      %v687 = vpop.permute.xlu0 %686
      %688 = vrot.lane.b32.xlu0 %v617, 4
      %v689 = vpop.permute.xlu0 %688
      %690 = vrot.lane.b32.xlu0 %v620, 4
      %v691 = vpop.permute.xlu0 %690
      %692 = vrot.lane.b32.xlu0 %v622, 4
      %v693 = vpop.permute.xlu0 %692
      %694 = vrot.lane.b32.xlu0 %v625, 4
      %v695 = vpop.permute.xlu0 %694
      %696 = vrot.lane.b32.xlu0 %v627, 4
      %v697 = vpop.permute.xlu0 %696
      %698 = vrot.lane.b32.xlu0 %v630, 4
      %v699 = vpop.permute.xlu0 %698
      %700 = vrot.lane.b32.xlu0 %v632, 4
      %v701 = vpop.permute.xlu0 %700
      %702 = vrot.lane.b32.xlu0 %v635, 4
      %v703 = vpop.permute.xlu0 %702
      %704 = vrot.lane.b32.xlu0 %v637, 4
      %v705 = vpop.permute.xlu0 %704
      %706 = vrot.lane.b32.xlu0 %v640, 4
      %v707 = vpop.permute.xlu0 %706
      %708 = vrot.lane.b32.xlu0 %v642, 4
      %v709 = vpop.permute.xlu0 %708
      %710 = vrot.lane.b32.xlu0 %v645, 4
      %v711 = vpop.permute.xlu0 %710
      %712 = vrot.lane.b32.xlu0 %v647, 4
      %v713 = vpop.permute.xlu0 %712
      %714 = vrot.lane.b32.xlu0 %v650, 4
      %v715 = vpop.permute.xlu0 %714
      %716 = vrot.lane.b32.xlu0 %v652, 4
      %v717 = vpop.permute.xlu0 %716
      %718 = vrot.lane.b32.xlu0 %v655, 4
      %v719 = vpop.permute.xlu0 %718
      %720 = vrot.lane.b32.xlu0 %v657, 4
      %v721 = vpop.permute.xlu0 %720
      %vm754 = vcmask 1045504
      %v755 = vrot.slane %v511, 2
      %v756 = vrot.slane %v413, 2
      %v757 = vsel %vm754, %v755, %v756
      %v758 = vrot.slane %v528, 2
      %v759 = vsel %vm754, %v756, %v758
      %v760 = vrot.slane %v512, 2
      %v761 = vrot.slane %v416, 2
      %v762 = vsel %vm754, %v760, %v761
      %v763 = vrot.slane %v529, 2
      %v764 = vsel %vm754, %v761, %v763
      %v765 = vrot.slane %v513, 2
      %v766 = vrot.slane %v419, 2
      %v767 = vsel %vm754, %v765, %v766
      %v768 = vrot.slane %v530, 2
      %v769 = vsel %vm754, %v766, %v768
      %v770 = vrot.slane %v514, 2
      %v771 = vrot.slane %v422, 2
      %v772 = vsel %vm754, %v770, %v771
      %v773 = vrot.slane %v531, 2
      %v774 = vsel %vm754, %v771, %v773
      %v775 = vrot.slane %v515, 2
      %v776 = vrot.slane %v425, 2
      %v777 = vsel %vm754, %v775, %v776
      %v778 = vrot.slane %v532, 2
      %v779 = vsel %vm754, %v776, %v778
      %v780 = vrot.slane %v516, 2
      %v781 = vrot.slane %v428, 2
      %v782 = vsel %vm754, %v780, %v781
      %v783 = vrot.slane %v533, 2
      %v784 = vsel %vm754, %v781, %v783
      %v785 = vrot.slane %v517, 2
      %v786 = vrot.slane %v431, 2
      %v787 = vsel %vm754, %v785, %v786
      %v788 = vrot.slane %v534, 2
      %v789 = vsel %vm754, %v786, %v788
      %v790 = vrot.slane %v518, 2
      %v791 = vrot.slane %v434, 2
      %v792 = vsel %vm754, %v790, %v791
      %v793 = vrot.slane %v535, 2
      %v794 = vsel %vm754, %v791, %v793
      %v795 = vrot.slane %v519, 2
      %v796 = vrot.slane %v437, 2
      %v797 = vsel %vm754, %v795, %v796
      %v798 = vrot.slane %v536, 2
      %v799 = vsel %vm754, %v796, %v798
      %v800 = vrot.slane %v520, 2
      %v801 = vrot.slane %v440, 2
      %v802 = vsel %vm754, %v800, %v801
      %v803 = vrot.slane %v537, 2
      %v804 = vsel %vm754, %v801, %v803
      %v805 = vrot.slane %v521, 2
      %v806 = vrot.slane %v443, 2
      %v807 = vsel %vm754, %v805, %v806
      %v808 = vrot.slane %v538, 2
      %v809 = vsel %vm754, %v806, %v808
      %v810 = vrot.slane %v522, 2
      %v811 = vrot.slane %v446, 2
      %v812 = vsel %vm754, %v810, %v811
      %v813 = vrot.slane %v539, 2
      %v814 = vsel %vm754, %v811, %v813
      %v815 = vrot.slane %v523, 2
      %v816 = vrot.slane %v449, 2
      %v817 = vsel %vm754, %v815, %v816
      %v818 = vrot.slane %v540, 2
      %v819 = vsel %vm754, %v816, %v818
      %v820 = vrot.slane %v524, 2
      %v821 = vrot.slane %v452, 2
      %v822 = vsel %vm754, %v820, %v821
      %v823 = vrot.slane %v541, 2
      %v824 = vsel %vm754, %v821, %v823
      %v825 = vrot.slane %v525, 2
      %v826 = vrot.slane %v455, 2
      %v827 = vsel %vm754, %v825, %v826
      %v828 = vrot.slane %v542, 2
      %v829 = vsel %vm754, %v826, %v828
      %v830 = vrot.slane %v526, 2
      %v831 = vrot.slane %v458, 2
      %v832 = vsel %vm754, %v830, %v831
      %v833 = vrot.slane %v543, 2
      %v834 = vsel %vm754, %v831, %v833
      %835 = vrot.lane.b32.xlu0 %v757, 8
      %v836 = vpop.permute.xlu0 %835
      %837 = vrot.lane.b32.xlu0 %v759, 8
      %v838 = vpop.permute.xlu0 %837
      %839 = vrot.lane.b32.xlu0 %v762, 8
      %v840 = vpop.permute.xlu0 %839
      %841 = vrot.lane.b32.xlu0 %v764, 8
      %v842 = vpop.permute.xlu0 %841
      %843 = vrot.lane.b32.xlu0 %v767, 8
      %v844 = vpop.permute.xlu0 %843
      %845 = vrot.lane.b32.xlu0 %v769, 8
      %v846 = vpop.permute.xlu0 %845
      %847 = vrot.lane.b32.xlu0 %v772, 8
      %v848 = vpop.permute.xlu0 %847
      %849 = vrot.lane.b32.xlu0 %v774, 8
      %v850 = vpop.permute.xlu0 %849
      %851 = vrot.lane.b32.xlu0 %v777, 8
      %v852 = vpop.permute.xlu0 %851
      %853 = vrot.lane.b32.xlu0 %v779, 8
      %v854 = vpop.permute.xlu0 %853
      %855 = vrot.lane.b32.xlu0 %v782, 8
      %v856 = vpop.permute.xlu0 %855
      %857 = vrot.lane.b32.xlu0 %v784, 8
      %v858 = vpop.permute.xlu0 %857
      %859 = vrot.lane.b32.xlu0 %v787, 8
      %v860 = vpop.permute.xlu0 %859
      %861 = vrot.lane.b32.xlu0 %v789, 8
      %v862 = vpop.permute.xlu0 %861
      %863 = vrot.lane.b32.xlu0 %v792, 8
      %v864 = vpop.permute.xlu0 %863
      %865 = vrot.lane.b32.xlu0 %v794, 8
      %v866 = vpop.permute.xlu0 %865
      %867 = vrot.lane.b32.xlu0 %v797, 8
      %v868 = vpop.permute.xlu0 %867
      %869 = vrot.lane.b32.xlu0 %v799, 8
      %v870 = vpop.permute.xlu0 %869
      %871 = vrot.lane.b32.xlu0 %v802, 8
      %v872 = vpop.permute.xlu0 %871
      %873 = vrot.lane.b32.xlu0 %v804, 8
      %v874 = vpop.permute.xlu0 %873
      %875 = vrot.lane.b32.xlu0 %v807, 8
      %v876 = vpop.permute.xlu0 %875
      %877 = vrot.lane.b32.xlu0 %v809, 8
      %v878 = vpop.permute.xlu0 %877
      %879 = vrot.lane.b32.xlu0 %v812, 8
      %v880 = vpop.permute.xlu0 %879
      %881 = vrot.lane.b32.xlu0 %v814, 8
      %v882 = vpop.permute.xlu0 %881
      %883 = vrot.lane.b32.xlu0 %v817, 8
      %v884 = vpop.permute.xlu0 %883
      %885 = vrot.lane.b32.xlu0 %v819, 8
      %v886 = vpop.permute.xlu0 %885
      %887 = vrot.lane.b32.xlu0 %v822, 8
      %v888 = vpop.permute.xlu0 %887
      %889 = vrot.lane.b32.xlu0 %v824, 8
      %v890 = vpop.permute.xlu0 %889
      %891 = vrot.lane.b32.xlu0 %v827, 8
      %v892 = vpop.permute.xlu0 %891
      %893 = vrot.lane.b32.xlu0 %v829, 8
      %v894 = vpop.permute.xlu0 %893
      %895 = vrot.lane.b32.xlu0 %v832, 8
      %v896 = vpop.permute.xlu0 %895
      %897 = vrot.lane.b32.xlu0 %v834, 8
      %v898 = vpop.permute.xlu0 %897
      %932 = vrot.lane.b32.xlu0 %v512, 12
      %v933 = vpop.permute.xlu0 %932
      %934 = vrot.lane.b32.xlu0 %v416, 12
      %v935 = vpop.permute.xlu0 %934
      %936 = vrot.lane.b32.xlu0 %v513, 12
      %v937 = vpop.permute.xlu0 %936
      %938 = vrot.lane.b32.xlu0 %v419, 12
      %v939 = vpop.permute.xlu0 %938
      %940 = vrot.lane.b32.xlu0 %v514, 12
      %v941 = vpop.permute.xlu0 %940
      %942 = vrot.lane.b32.xlu0 %v422, 12
      %v943 = vpop.permute.xlu0 %942
      %944 = vrot.lane.b32.xlu0 %v515, 12
      %v945 = vpop.permute.xlu0 %944
      %946 = vrot.lane.b32.xlu0 %v425, 12
      %v947 = vpop.permute.xlu0 %946
      %948 = vrot.lane.b32.xlu0 %v516, 12
      %v949 = vpop.permute.xlu0 %948
      %950 = vrot.lane.b32.xlu0 %v428, 12
      %v951 = vpop.permute.xlu0 %950
      %952 = vrot.lane.b32.xlu0 %v517, 12
      %v953 = vpop.permute.xlu0 %952
      %954 = vrot.lane.b32.xlu0 %v431, 12
      %v955 = vpop.permute.xlu0 %954
      %956 = vrot.lane.b32.xlu0 %v518, 12
      %v957 = vpop.permute.xlu0 %956
      %958 = vrot.lane.b32.xlu0 %v434, 12
      %v959 = vpop.permute.xlu0 %958
      %960 = vrot.lane.b32.xlu0 %v519, 12
      %v961 = vpop.permute.xlu0 %960
      %962 = vrot.lane.b32.xlu0 %v437, 12
      %v963 = vpop.permute.xlu0 %962
      %964 = vrot.lane.b32.xlu0 %v520, 12
      %v965 = vpop.permute.xlu0 %964
      %966 = vrot.lane.b32.xlu0 %v440, 12
      %v967 = vpop.permute.xlu0 %966
      %968 = vrot.lane.b32.xlu0 %v521, 12
      %v969 = vpop.permute.xlu0 %968
      %970 = vrot.lane.b32.xlu0 %v443, 12
      %v971 = vpop.permute.xlu0 %970
      %972 = vrot.lane.b32.xlu0 %v522, 12
      %v973 = vpop.permute.xlu0 %972
      %974 = vrot.lane.b32.xlu0 %v446, 12
      %v975 = vpop.permute.xlu0 %974
      %976 = vrot.lane.b32.xlu0 %v523, 12
      %v977 = vpop.permute.xlu0 %976
      %978 = vrot.lane.b32.xlu0 %v449, 12
      %v979 = vpop.permute.xlu0 %978
      %980 = vrot.lane.b32.xlu0 %v524, 12
      %v981 = vpop.permute.xlu0 %980
      %982 = vrot.lane.b32.xlu0 %v452, 12
      %v983 = vpop.permute.xlu0 %982
      %984 = vrot.lane.b32.xlu0 %v525, 12
      %v985 = vpop.permute.xlu0 %984
      %986 = vrot.lane.b32.xlu0 %v455, 12
      %v987 = vpop.permute.xlu0 %986
      %988 = vrot.lane.b32.xlu0 %v526, 12
      %v989 = vpop.permute.xlu0 %988
      %990 = vrot.lane.b32.xlu0 %v458, 12
      %v991 = vpop.permute.xlu0 %990
      %992 = vrot.lane.b32.xlu0 %v527, 12
      %v993 = vpop.permute.xlu0 %992
      %994 = vrot.lane.b32.xlu0 %v461, 12
      %v995 = vpop.permute.xlu0 %994
      %v1029 = vrot.slane %v527, 1
      %v1030 = vrot.slane %v461, 1
      %v1031 = vsel %vm577, %v1029, %v1030
      %v1032 = vrot.slane %v544, 1
      %v1033 = vsel %vm577, %v1030, %v1032
      %1034 = vrot.lane.b32.xlu0 %v585, 16
      %v1035 = vpop.permute.xlu0 %1034
      %1036 = vrot.lane.b32.xlu0 %v587, 16
      %v1037 = vpop.permute.xlu0 %1036
      %1038 = vrot.lane.b32.xlu0 %v590, 16
      %v1039 = vpop.permute.xlu0 %1038
      %1040 = vrot.lane.b32.xlu0 %v592, 16
      %v1041 = vpop.permute.xlu0 %1040
      %1042 = vrot.lane.b32.xlu0 %v595, 16
      %v1043 = vpop.permute.xlu0 %1042
      %1044 = vrot.lane.b32.xlu0 %v597, 16
      %v1045 = vpop.permute.xlu0 %1044
      %1046 = vrot.lane.b32.xlu0 %v600, 16
      %v1047 = vpop.permute.xlu0 %1046
      %1048 = vrot.lane.b32.xlu0 %v602, 16
      %v1049 = vpop.permute.xlu0 %1048
      %1050 = vrot.lane.b32.xlu0 %v605, 16
      %v1051 = vpop.permute.xlu0 %1050
      %1052 = vrot.lane.b32.xlu0 %v607, 16
      %v1053 = vpop.permute.xlu0 %1052
      %1054 = vrot.lane.b32.xlu0 %v610, 16
      %v1055 = vpop.permute.xlu0 %1054
      %1056 = vrot.lane.b32.xlu0 %v612, 16
      %v1057 = vpop.permute.xlu0 %1056
      %1058 = vrot.lane.b32.xlu0 %v615, 16
      %v1059 = vpop.permute.xlu0 %1058
      %1060 = vrot.lane.b32.xlu0 %v617, 16
      %v1061 = vpop.permute.xlu0 %1060
      %1062 = vrot.lane.b32.xlu0 %v620, 16
      %v1063 = vpop.permute.xlu0 %1062
      %1064 = vrot.lane.b32.xlu0 %v622, 16
      %v1065 = vpop.permute.xlu0 %1064
      %1066 = vrot.lane.b32.xlu0 %v625, 16
      %v1067 = vpop.permute.xlu0 %1066
      %1068 = vrot.lane.b32.xlu0 %v627, 16
      %v1069 = vpop.permute.xlu0 %1068
      %1070 = vrot.lane.b32.xlu0 %v630, 16
      %v1071 = vpop.permute.xlu0 %1070
      %1072 = vrot.lane.b32.xlu0 %v632, 16
      %v1073 = vpop.permute.xlu0 %1072
      %1074 = vrot.lane.b32.xlu0 %v635, 16
      %v1075 = vpop.permute.xlu0 %1074
      %1076 = vrot.lane.b32.xlu0 %v637, 16
      %v1077 = vpop.permute.xlu0 %1076
      %1078 = vrot.lane.b32.xlu0 %v640, 16
      %v1079 = vpop.permute.xlu0 %1078
      %1080 = vrot.lane.b32.xlu0 %v642, 16
      %v1081 = vpop.permute.xlu0 %1080
      %1082 = vrot.lane.b32.xlu0 %v645, 16
      %v1083 = vpop.permute.xlu0 %1082
      %1084 = vrot.lane.b32.xlu0 %v647, 16
      %v1085 = vpop.permute.xlu0 %1084
      %1086 = vrot.lane.b32.xlu0 %v650, 16
      %v1087 = vpop.permute.xlu0 %1086
      %1088 = vrot.lane.b32.xlu0 %v652, 16
      %v1089 = vpop.permute.xlu0 %1088
      %1090 = vrot.lane.b32.xlu0 %v655, 16
      %v1091 = vpop.permute.xlu0 %1090
      %1092 = vrot.lane.b32.xlu0 %v657, 16
      %v1093 = vpop.permute.xlu0 %1092
      %1094 = vrot.lane.b32.xlu0 %v1031, 16
      %v1095 = vpop.permute.xlu0 %1094
      %1096 = vrot.lane.b32.xlu0 %v1033, 16
      %v1097 = vpop.permute.xlu0 %1096
      %v1130 = vrot.slane %v527, 2
      %v1131 = vrot.slane %v461, 2
      %v1132 = vsel %vm754, %v1130, %v1131
      %v1133 = vrot.slane %v544, 2
      %v1134 = vsel %vm754, %v1131, %v1133
      %1135 = vrot.lane.b32.xlu0 %v762, 20
      %v1136 = vpop.permute.xlu0 %1135
      %1137 = vrot.lane.b32.xlu0 %v764, 20
      %v1138 = vpop.permute.xlu0 %1137
      %1139 = vrot.lane.b32.xlu0 %v767, 20
      %v1140 = vpop.permute.xlu0 %1139
      %1141 = vrot.lane.b32.xlu0 %v769, 20
      %v1142 = vpop.permute.xlu0 %1141
      %1143 = vrot.lane.b32.xlu0 %v772, 20
      %v1144 = vpop.permute.xlu0 %1143
      %1145 = vrot.lane.b32.xlu0 %v774, 20
      %v1146 = vpop.permute.xlu0 %1145
      %1147 = vrot.lane.b32.xlu0 %v777, 20
      %v1148 = vpop.permute.xlu0 %1147
      %1149 = vrot.lane.b32.xlu0 %v779, 20
      %v1150 = vpop.permute.xlu0 %1149
      %1151 = vrot.lane.b32.xlu0 %v782, 20
      %v1152 = vpop.permute.xlu0 %1151
      %1153 = vrot.lane.b32.xlu0 %v784, 20
      %v1154 = vpop.permute.xlu0 %1153
      %1155 = vrot.lane.b32.xlu0 %v787, 20
      %v1156 = vpop.permute.xlu0 %1155
      %1157 = vrot.lane.b32.xlu0 %v789, 20
      %v1158 = vpop.permute.xlu0 %1157
      %1159 = vrot.lane.b32.xlu0 %v792, 20
      %v1160 = vpop.permute.xlu0 %1159
      %1161 = vrot.lane.b32.xlu0 %v794, 20
      %v1162 = vpop.permute.xlu0 %1161
      %1163 = vrot.lane.b32.xlu0 %v797, 20
      %v1164 = vpop.permute.xlu0 %1163
      %1165 = vrot.lane.b32.xlu0 %v799, 20
      %v1166 = vpop.permute.xlu0 %1165
      %1167 = vrot.lane.b32.xlu0 %v802, 20
      %v1168 = vpop.permute.xlu0 %1167
      %1169 = vrot.lane.b32.xlu0 %v804, 20
      %v1170 = vpop.permute.xlu0 %1169
      %1171 = vrot.lane.b32.xlu0 %v807, 20
      %v1172 = vpop.permute.xlu0 %1171
      %1173 = vrot.lane.b32.xlu0 %v809, 20
      %v1174 = vpop.permute.xlu0 %1173
      %1175 = vrot.lane.b32.xlu0 %v812, 20
      %v1176 = vpop.permute.xlu0 %1175
      %1177 = vrot.lane.b32.xlu0 %v814, 20
      %v1178 = vpop.permute.xlu0 %1177
      %1179 = vrot.lane.b32.xlu0 %v817, 20
      %v1180 = vpop.permute.xlu0 %1179
      %1181 = vrot.lane.b32.xlu0 %v819, 20
      %v1182 = vpop.permute.xlu0 %1181
      %1183 = vrot.lane.b32.xlu0 %v822, 20
      %v1184 = vpop.permute.xlu0 %1183
      %1185 = vrot.lane.b32.xlu0 %v824, 20
      %v1186 = vpop.permute.xlu0 %1185
      %1187 = vrot.lane.b32.xlu0 %v827, 20
      %v1188 = vpop.permute.xlu0 %1187
      %1189 = vrot.lane.b32.xlu0 %v829, 20
      %v1190 = vpop.permute.xlu0 %1189
      %1191 = vrot.lane.b32.xlu0 %v832, 20
      %v1192 = vpop.permute.xlu0 %1191
      %1193 = vrot.lane.b32.xlu0 %v834, 20
      %v1194 = vpop.permute.xlu0 %1193
      %1195 = vrot.lane.b32.xlu0 %v1132, 20
      %v1196 = vpop.permute.xlu0 %1195
      %1197 = vrot.lane.b32.xlu0 %v1134, 20
      %v1198 = vpop.permute.xlu0 %1197
      %1231 = vrot.lane.b32.xlu0 %v513, 24
      %v1232 = vpop.permute.xlu0 %1231
      %1233 = vrot.lane.b32.xlu0 %v419, 24
      %v1234 = vpop.permute.xlu0 %1233
      %1235 = vrot.lane.b32.xlu0 %v514, 24
      %v1236 = vpop.permute.xlu0 %1235
      %1237 = vrot.lane.b32.xlu0 %v422, 24
      %v1238 = vpop.permute.xlu0 %1237
      %1239 = vrot.lane.b32.xlu0 %v515, 24
      %v1240 = vpop.permute.xlu0 %1239
      %1241 = vrot.lane.b32.xlu0 %v425, 24
      %v1242 = vpop.permute.xlu0 %1241
      %1243 = vrot.lane.b32.xlu0 %v516, 24
      %v1244 = vpop.permute.xlu0 %1243
      %1245 = vrot.lane.b32.xlu0 %v428, 24
      %v1246 = vpop.permute.xlu0 %1245
      %1247 = vrot.lane.b32.xlu0 %v517, 24
      %v1248 = vpop.permute.xlu0 %1247
      %1249 = vrot.lane.b32.xlu0 %v431, 24
      %v1250 = vpop.permute.xlu0 %1249
      %1251 = vrot.lane.b32.xlu0 %v518, 24
      %v1252 = vpop.permute.xlu0 %1251
      %1253 = vrot.lane.b32.xlu0 %v434, 24
      %v1254 = vpop.permute.xlu0 %1253
      %1255 = vrot.lane.b32.xlu0 %v519, 24
      %v1256 = vpop.permute.xlu0 %1255
      %1257 = vrot.lane.b32.xlu0 %v437, 24
      %v1258 = vpop.permute.xlu0 %1257
      %1259 = vrot.lane.b32.xlu0 %v520, 24
      %v1260 = vpop.permute.xlu0 %1259
      %1261 = vrot.lane.b32.xlu0 %v440, 24
      %v1262 = vpop.permute.xlu0 %1261
      %1263 = vrot.lane.b32.xlu0 %v521, 24
      %v1264 = vpop.permute.xlu0 %1263
      %1265 = vrot.lane.b32.xlu0 %v443, 24
      %v1266 = vpop.permute.xlu0 %1265
      %1267 = vrot.lane.b32.xlu0 %v522, 24
      %v1268 = vpop.permute.xlu0 %1267
      %1269 = vrot.lane.b32.xlu0 %v446, 24
      %v1270 = vpop.permute.xlu0 %1269
      %1271 = vrot.lane.b32.xlu0 %v523, 24
      %v1272 = vpop.permute.xlu0 %1271
      %1273 = vrot.lane.b32.xlu0 %v449, 24
      %v1274 = vpop.permute.xlu0 %1273
      %1275 = vrot.lane.b32.xlu0 %v524, 24
      %v1276 = vpop.permute.xlu0 %1275
      %1277 = vrot.lane.b32.xlu0 %v452, 24
      %v1278 = vpop.permute.xlu0 %1277
      %1279 = vrot.lane.b32.xlu0 %v525, 24
      %v1280 = vpop.permute.xlu0 %1279
      %1281 = vrot.lane.b32.xlu0 %v455, 24
      %v1282 = vpop.permute.xlu0 %1281
      %1283 = vrot.lane.b32.xlu0 %v526, 24
      %v1284 = vpop.permute.xlu0 %1283
      %1285 = vrot.lane.b32.xlu0 %v458, 24
      %v1286 = vpop.permute.xlu0 %1285
      %1287 = vrot.lane.b32.xlu0 %v527, 24
      %v1288 = vpop.permute.xlu0 %1287
      %1289 = vrot.lane.b32.xlu0 %v461, 24
      %v1290 = vpop.permute.xlu0 %1289
      %1291 = vrot.lane.b32.xlu0 %v511, 24
      %v1292 = vpop.permute.xlu0 %1291
      %1293 = vrot.lane.b32.xlu0 %v413, 24
      %v1294 = vpop.permute.xlu0 %1293
      %1327 = vrot.lane.b32.xlu0 %v590, 28
      %v1328 = vpop.permute.xlu0 %1327
      %1329 = vrot.lane.b32.xlu0 %v592, 28
      %v1330 = vpop.permute.xlu0 %1329
      %1331 = vrot.lane.b32.xlu0 %v595, 28
      %v1332 = vpop.permute.xlu0 %1331
      %1333 = vrot.lane.b32.xlu0 %v597, 28
      %v1334 = vpop.permute.xlu0 %1333
      %1335 = vrot.lane.b32.xlu0 %v600, 28
      %v1336 = vpop.permute.xlu0 %1335
      %1337 = vrot.lane.b32.xlu0 %v602, 28
      %v1338 = vpop.permute.xlu0 %1337
      %1339 = vrot.lane.b32.xlu0 %v605, 28
      %v1340 = vpop.permute.xlu0 %1339
      %1341 = vrot.lane.b32.xlu0 %v607, 28
      %v1342 = vpop.permute.xlu0 %1341
      %1343 = vrot.lane.b32.xlu0 %v610, 28
      %v1344 = vpop.permute.xlu0 %1343
      %1345 = vrot.lane.b32.xlu0 %v612, 28
      %v1346 = vpop.permute.xlu0 %1345
      %1347 = vrot.lane.b32.xlu0 %v615, 28
      %v1348 = vpop.permute.xlu0 %1347
      %1349 = vrot.lane.b32.xlu0 %v617, 28
      %v1350 = vpop.permute.xlu0 %1349
      %1351 = vrot.lane.b32.xlu0 %v620, 28
      %v1352 = vpop.permute.xlu0 %1351
      %1353 = vrot.lane.b32.xlu0 %v622, 28
      %v1354 = vpop.permute.xlu0 %1353
      %1355 = vrot.lane.b32.xlu0 %v625, 28
      %v1356 = vpop.permute.xlu0 %1355
      %1357 = vrot.lane.b32.xlu0 %v627, 28
      %v1358 = vpop.permute.xlu0 %1357
      %1359 = vrot.lane.b32.xlu0 %v630, 28
      %v1360 = vpop.permute.xlu0 %1359
      %1361 = vrot.lane.b32.xlu0 %v632, 28
      %v1362 = vpop.permute.xlu0 %1361
      %1363 = vrot.lane.b32.xlu0 %v635, 28
      %v1364 = vpop.permute.xlu0 %1363
      %1365 = vrot.lane.b32.xlu0 %v637, 28
      %v1366 = vpop.permute.xlu0 %1365
      %1367 = vrot.lane.b32.xlu0 %v640, 28
      %v1368 = vpop.permute.xlu0 %1367
      %1369 = vrot.lane.b32.xlu0 %v642, 28
      %v1370 = vpop.permute.xlu0 %1369
      %1371 = vrot.lane.b32.xlu0 %v645, 28
      %v1372 = vpop.permute.xlu0 %1371
      %1373 = vrot.lane.b32.xlu0 %v647, 28
      %v1374 = vpop.permute.xlu0 %1373
      %1375 = vrot.lane.b32.xlu0 %v650, 28
      %v1376 = vpop.permute.xlu0 %1375
      %1377 = vrot.lane.b32.xlu0 %v652, 28
      %v1378 = vpop.permute.xlu0 %1377
      %1379 = vrot.lane.b32.xlu0 %v655, 28
      %v1380 = vpop.permute.xlu0 %1379
      %1381 = vrot.lane.b32.xlu0 %v657, 28
      %v1382 = vpop.permute.xlu0 %1381
      %1383 = vrot.lane.b32.xlu0 %v1031, 28
      %v1384 = vpop.permute.xlu0 %1383
      %1385 = vrot.lane.b32.xlu0 %v1033, 28
      %v1386 = vpop.permute.xlu0 %1385
      %1387 = vrot.lane.b32.xlu0 %v580, 28
      %v1388 = vpop.permute.xlu0 %1387
      %1389 = vrot.lane.b32.xlu0 %v582, 28
      %v1390 = vpop.permute.xlu0 %1389
      %1423 = vrot.lane.b32.xlu0 %v767, 32
      %v1424 = vpop.permute.xlu0 %1423
      %1425 = vrot.lane.b32.xlu0 %v769, 32
      %v1426 = vpop.permute.xlu0 %1425
      %1427 = vrot.lane.b32.xlu0 %v772, 32
      %v1428 = vpop.permute.xlu0 %1427
      %1429 = vrot.lane.b32.xlu0 %v774, 32
      %v1430 = vpop.permute.xlu0 %1429
      %1431 = vrot.lane.b32.xlu0 %v777, 32
      %v1432 = vpop.permute.xlu0 %1431
      %1433 = vrot.lane.b32.xlu0 %v779, 32
      %v1434 = vpop.permute.xlu0 %1433
      %1435 = vrot.lane.b32.xlu0 %v782, 32
      %v1436 = vpop.permute.xlu0 %1435
      %1437 = vrot.lane.b32.xlu0 %v784, 32
      %v1438 = vpop.permute.xlu0 %1437
      %1439 = vrot.lane.b32.xlu0 %v787, 32
      %v1440 = vpop.permute.xlu0 %1439
      %1441 = vrot.lane.b32.xlu0 %v789, 32
      %v1442 = vpop.permute.xlu0 %1441
      %1443 = vrot.lane.b32.xlu0 %v792, 32
      %v1444 = vpop.permute.xlu0 %1443
      %1445 = vrot.lane.b32.xlu0 %v794, 32
      %v1446 = vpop.permute.xlu0 %1445
      %1447 = vrot.lane.b32.xlu0 %v797, 32
      %v1448 = vpop.permute.xlu0 %1447
      %1449 = vrot.lane.b32.xlu0 %v799, 32
      %v1450 = vpop.permute.xlu0 %1449
      %1451 = vrot.lane.b32.xlu0 %v802, 32
      %v1452 = vpop.permute.xlu0 %1451
      %1453 = vrot.lane.b32.xlu0 %v804, 32
      %v1454 = vpop.permute.xlu0 %1453
      %1455 = vrot.lane.b32.xlu0 %v807, 32
      %v1456 = vpop.permute.xlu0 %1455
      %1457 = vrot.lane.b32.xlu0 %v809, 32
      %v1458 = vpop.permute.xlu0 %1457
      %1459 = vrot.lane.b32.xlu0 %v812, 32
      %v1460 = vpop.permute.xlu0 %1459
      %1461 = vrot.lane.b32.xlu0 %v814, 32
      %v1462 = vpop.permute.xlu0 %1461
      %1463 = vrot.lane.b32.xlu0 %v817, 32
      %v1464 = vpop.permute.xlu0 %1463
      %1465 = vrot.lane.b32.xlu0 %v819, 32
      %v1466 = vpop.permute.xlu0 %1465
      %1467 = vrot.lane.b32.xlu0 %v822, 32
      %v1468 = vpop.permute.xlu0 %1467
      %1469 = vrot.lane.b32.xlu0 %v824, 32
      %v1470 = vpop.permute.xlu0 %1469
      %1471 = vrot.lane.b32.xlu0 %v827, 32
      %v1472 = vpop.permute.xlu0 %1471
      %1473 = vrot.lane.b32.xlu0 %v829, 32
      %v1474 = vpop.permute.xlu0 %1473
      %1475 = vrot.lane.b32.xlu0 %v832, 32
      %v1476 = vpop.permute.xlu0 %1475
      %1477 = vrot.lane.b32.xlu0 %v834, 32
      %v1478 = vpop.permute.xlu0 %1477
      %1479 = vrot.lane.b32.xlu0 %v1132, 32
      %v1480 = vpop.permute.xlu0 %1479
      %1481 = vrot.lane.b32.xlu0 %v1134, 32
      %v1482 = vpop.permute.xlu0 %1481
      %1483 = vrot.lane.b32.xlu0 %v757, 32
      %v1484 = vpop.permute.xlu0 %1483
      %1485 = vrot.lane.b32.xlu0 %v759, 32
      %v1486 = vpop.permute.xlu0 %1485
      %vm1519 = vcmask 31744
      %v1520 = vsel %vm1519, %v511, %v659
      %v1521 = vsel %vm1519, %v413, %v661
      %v1522 = vsel %vm1519, %v512, %v663
      %v1523 = vsel %vm1519, %v416, %v665
      %v1524 = vsel %vm1519, %v513, %v667
      %v1525 = vsel %vm1519, %v419, %v669
      %v1526 = vsel %vm1519, %v514, %v671
      %v1527 = vsel %vm1519, %v422, %v673
      %v1528 = vsel %vm1519, %v515, %v675
      %v1529 = vsel %vm1519, %v425, %v677
      %v1530 = vsel %vm1519, %v516, %v679
      %v1531 = vsel %vm1519, %v428, %v681
      %v1532 = vsel %vm1519, %v517, %v683
      %v1533 = vsel %vm1519, %v431, %v685
      %v1534 = vsel %vm1519, %v518, %v687
      %v1535 = vsel %vm1519, %v434, %v689
      %v1536 = vsel %vm1519, %v519, %v691
      %v1537 = vsel %vm1519, %v437, %v693
      %v1538 = vsel %vm1519, %v520, %v695
      %v1539 = vsel %vm1519, %v440, %v697
      %v1540 = vsel %vm1519, %v521, %v699
      %v1541 = vsel %vm1519, %v443, %v701
      %v1542 = vsel %vm1519, %v522, %v703
      %v1543 = vsel %vm1519, %v446, %v705
      %v1544 = vsel %vm1519, %v523, %v707
      %v1545 = vsel %vm1519, %v449, %v709
      %v1546 = vsel %vm1519, %v524, %v711
      %v1547 = vsel %vm1519, %v452, %v713
      %v1548 = vsel %vm1519, %v525, %v715
      %v1549 = vsel %vm1519, %v455, %v717
      %v1550 = vsel %vm1519, %v526, %v719
      %v1551 = vsel %vm1519, %v458, %v721
      %vm1552 = vcmask 64512
      %v1553 = vsel %vm1552, %v1520, %v836
      %v1554 = vsel %vm1552, %v1521, %v838
      %v1555 = vsel %vm1552, %v1522, %v840
      %v1556 = vsel %vm1552, %v1523, %v842
      %v1557 = vsel %vm1552, %v1524, %v844
      %v1558 = vsel %vm1552, %v1525, %v846
      %v1559 = vsel %vm1552, %v1526, %v848
      %v1560 = vsel %vm1552, %v1527, %v850
      %v1561 = vsel %vm1552, %v1528, %v852
      %v1562 = vsel %vm1552, %v1529, %v854
      %v1563 = vsel %vm1552, %v1530, %v856
      %v1564 = vsel %vm1552, %v1531, %v858
      %v1565 = vsel %vm1552, %v1532, %v860
      %v1566 = vsel %vm1552, %v1533, %v862
      %v1567 = vsel %vm1552, %v1534, %v864
      %v1568 = vsel %vm1552, %v1535, %v866
      %v1569 = vsel %vm1552, %v1536, %v868
      %v1570 = vsel %vm1552, %v1537, %v870
      %v1571 = vsel %vm1552, %v1538, %v872
      %v1572 = vsel %vm1552, %v1539, %v874
      %v1573 = vsel %vm1552, %v1540, %v876
      %v1574 = vsel %vm1552, %v1541, %v878
      %v1575 = vsel %vm1552, %v1542, %v880
      %v1576 = vsel %vm1552, %v1543, %v882
      %v1577 = vsel %vm1552, %v1544, %v884
      %v1578 = vsel %vm1552, %v1545, %v886
      %v1579 = vsel %vm1552, %v1546, %v888
      %v1580 = vsel %vm1552, %v1547, %v890
      %v1581 = vsel %vm1552, %v1548, %v892
      %v1582 = vsel %vm1552, %v1549, %v894
      %v1583 = vsel %vm1552, %v1550, %v896
      %v1584 = vsel %vm1552, %v1551, %v898
      %vm1585 = vcmask 97280
      %v1586 = vsel %vm1585, %v1553, %v933
      %v1587 = vsel %vm1585, %v1554, %v935
      %v1588 = vsel %vm1585, %v1555, %v937
      %v1589 = vsel %vm1585, %v1556, %v939
      %v1590 = vsel %vm1585, %v1557, %v941
      %v1591 = vsel %vm1585, %v1558, %v943
      %v1592 = vsel %vm1585, %v1559, %v945
      %v1593 = vsel %vm1585, %v1560, %v947
      %v1594 = vsel %vm1585, %v1561, %v949
      %v1595 = vsel %vm1585, %v1562, %v951
      %v1596 = vsel %vm1585, %v1563, %v953
      %v1597 = vsel %vm1585, %v1564, %v955
      %v1598 = vsel %vm1585, %v1565, %v957
      %v1599 = vsel %vm1585, %v1566, %v959
      %v1600 = vsel %vm1585, %v1567, %v961
      %v1601 = vsel %vm1585, %v1568, %v963
      %v1602 = vsel %vm1585, %v1569, %v965
      %v1603 = vsel %vm1585, %v1570, %v967
      %v1604 = vsel %vm1585, %v1571, %v969
      %v1605 = vsel %vm1585, %v1572, %v971
      %v1606 = vsel %vm1585, %v1573, %v973
      %v1607 = vsel %vm1585, %v1574, %v975
      %v1608 = vsel %vm1585, %v1575, %v977
      %v1609 = vsel %vm1585, %v1576, %v979
      %v1610 = vsel %vm1585, %v1577, %v981
      %v1611 = vsel %vm1585, %v1578, %v983
      %v1612 = vsel %vm1585, %v1579, %v985
      %v1613 = vsel %vm1585, %v1580, %v987
      %v1614 = vsel %vm1585, %v1581, %v989
      %v1615 = vsel %vm1585, %v1582, %v991
      %v1616 = vsel %vm1585, %v1583, %v993
      %v1617 = vsel %vm1585, %v1584, %v995
      %vm1618 = vcmask 130048
      %v1619 = vsel %vm1618, %v1586, %v1035
      %v1620 = vsel %vm1618, %v1587, %v1037
      %v1621 = vsel %vm1618, %v1588, %v1039
      %v1622 = vsel %vm1618, %v1589, %v1041
      %v1623 = vsel %vm1618, %v1590, %v1043
      %v1624 = vsel %vm1618, %v1591, %v1045
      %v1625 = vsel %vm1618, %v1592, %v1047
      %v1626 = vsel %vm1618, %v1593, %v1049
      %v1627 = vsel %vm1618, %v1594, %v1051
      %v1628 = vsel %vm1618, %v1595, %v1053
      %v1629 = vsel %vm1618, %v1596, %v1055
      %v1630 = vsel %vm1618, %v1597, %v1057
      %v1631 = vsel %vm1618, %v1598, %v1059
      %v1632 = vsel %vm1618, %v1599, %v1061
      %v1633 = vsel %vm1618, %v1600, %v1063
      %v1634 = vsel %vm1618, %v1601, %v1065
      %v1635 = vsel %vm1618, %v1602, %v1067
      %v1636 = vsel %vm1618, %v1603, %v1069
      %v1637 = vsel %vm1618, %v1604, %v1071
      %v1638 = vsel %vm1618, %v1605, %v1073
      %v1639 = vsel %vm1618, %v1606, %v1075
      %v1640 = vsel %vm1618, %v1607, %v1077
      %v1641 = vsel %vm1618, %v1608, %v1079
      %v1642 = vsel %vm1618, %v1609, %v1081
      %v1643 = vsel %vm1618, %v1610, %v1083
      %v1644 = vsel %vm1618, %v1611, %v1085
      %v1645 = vsel %vm1618, %v1612, %v1087
      %v1646 = vsel %vm1618, %v1613, %v1089
      %v1647 = vsel %vm1618, %v1614, %v1091
      %v1648 = vsel %vm1618, %v1615, %v1093
      %v1649 = vsel %vm1618, %v1616, %v1095
      %v1650 = vsel %vm1618, %v1617, %v1097
      %vm1651 = vcmask 162816
      %v1652 = vsel %vm1651, %v1619, %v1136
      %v1653 = vsel %vm1651, %v1620, %v1138
      %v1654 = vsel %vm1651, %v1621, %v1140
      %v1655 = vsel %vm1651, %v1622, %v1142
      %v1656 = vsel %vm1651, %v1623, %v1144
      %v1657 = vsel %vm1651, %v1624, %v1146
      %v1658 = vsel %vm1651, %v1625, %v1148
      %v1659 = vsel %vm1651, %v1626, %v1150
      %v1660 = vsel %vm1651, %v1627, %v1152
      %v1661 = vsel %vm1651, %v1628, %v1154
      %v1662 = vsel %vm1651, %v1629, %v1156
      %v1663 = vsel %vm1651, %v1630, %v1158
      %v1664 = vsel %vm1651, %v1631, %v1160
      %v1665 = vsel %vm1651, %v1632, %v1162
      %v1666 = vsel %vm1651, %v1633, %v1164
      %v1667 = vsel %vm1651, %v1634, %v1166
      %v1668 = vsel %vm1651, %v1635, %v1168
      %v1669 = vsel %vm1651, %v1636, %v1170
      %v1670 = vsel %vm1651, %v1637, %v1172
      %v1671 = vsel %vm1651, %v1638, %v1174
      %v1672 = vsel %vm1651, %v1639, %v1176
      %v1673 = vsel %vm1651, %v1640, %v1178
      %v1674 = vsel %vm1651, %v1641, %v1180
      %v1675 = vsel %vm1651, %v1642, %v1182
      %v1676 = vsel %vm1651, %v1643, %v1184
      %v1677 = vsel %vm1651, %v1644, %v1186
      %v1678 = vsel %vm1651, %v1645, %v1188
      %v1679 = vsel %vm1651, %v1646, %v1190
      %v1680 = vsel %vm1651, %v1647, %v1192
      %v1681 = vsel %vm1651, %v1648, %v1194
      %v1682 = vsel %vm1651, %v1649, %v1196
      %v1683 = vsel %vm1651, %v1650, %v1198
      %vm1684 = vcmask 195584
      %v1685 = vsel %vm1684, %v1652, %v1232
      %v1686 = vsel %vm1684, %v1653, %v1234
      %v1687 = vsel %vm1684, %v1654, %v1236
      %v1688 = vsel %vm1684, %v1655, %v1238
      %v1689 = vsel %vm1684, %v1656, %v1240
      %v1690 = vsel %vm1684, %v1657, %v1242
      %v1691 = vsel %vm1684, %v1658, %v1244
      %v1692 = vsel %vm1684, %v1659, %v1246
      %v1693 = vsel %vm1684, %v1660, %v1248
      %v1694 = vsel %vm1684, %v1661, %v1250
      %v1695 = vsel %vm1684, %v1662, %v1252
      %v1696 = vsel %vm1684, %v1663, %v1254
      %v1697 = vsel %vm1684, %v1664, %v1256
      %v1698 = vsel %vm1684, %v1665, %v1258
      %v1699 = vsel %vm1684, %v1666, %v1260
      %v1700 = vsel %vm1684, %v1667, %v1262
      %v1701 = vsel %vm1684, %v1668, %v1264
      %v1702 = vsel %vm1684, %v1669, %v1266
      %v1703 = vsel %vm1684, %v1670, %v1268
      %v1704 = vsel %vm1684, %v1671, %v1270
      %v1705 = vsel %vm1684, %v1672, %v1272
      %v1706 = vsel %vm1684, %v1673, %v1274
      %v1707 = vsel %vm1684, %v1674, %v1276
      %v1708 = vsel %vm1684, %v1675, %v1278
      %v1709 = vsel %vm1684, %v1676, %v1280
      %v1710 = vsel %vm1684, %v1677, %v1282
      %v1711 = vsel %vm1684, %v1678, %v1284
      %v1712 = vsel %vm1684, %v1679, %v1286
      %v1713 = vsel %vm1684, %v1680, %v1288
      %v1714 = vsel %vm1684, %v1681, %v1290
      %v1715 = vsel %vm1684, %v1682, %v1292
      %v1716 = vsel %vm1684, %v1683, %v1294
      %vm1717 = vcmask 228352
      %v1718 = vsel %vm1717, %v1685, %v1328
      %v1719 = vsel %vm1717, %v1686, %v1330
      %v1720 = vsel %vm1717, %v1687, %v1332
      %v1721 = vsel %vm1717, %v1688, %v1334
      %v1722 = vsel %vm1717, %v1689, %v1336
      %v1723 = vsel %vm1717, %v1690, %v1338
      %v1724 = vsel %vm1717, %v1691, %v1340
      %v1725 = vsel %vm1717, %v1692, %v1342
      %v1726 = vsel %vm1717, %v1693, %v1344
      %v1727 = vsel %vm1717, %v1694, %v1346
      %v1728 = vsel %vm1717, %v1695, %v1348
      %v1729 = vsel %vm1717, %v1696, %v1350
      %v1730 = vsel %vm1717, %v1697, %v1352
      %v1731 = vsel %vm1717, %v1698, %v1354
      %v1732 = vsel %vm1717, %v1699, %v1356
      %v1733 = vsel %vm1717, %v1700, %v1358
      %v1734 = vsel %vm1717, %v1701, %v1360
      %v1735 = vsel %vm1717, %v1702, %v1362
      %v1736 = vsel %vm1717, %v1703, %v1364
      %v1737 = vsel %vm1717, %v1704, %v1366
      %v1738 = vsel %vm1717, %v1705, %v1368
      %v1739 = vsel %vm1717, %v1706, %v1370
      %v1740 = vsel %vm1717, %v1707, %v1372
      %v1741 = vsel %vm1717, %v1708, %v1374
      %v1742 = vsel %vm1717, %v1709, %v1376
      %v1743 = vsel %vm1717, %v1710, %v1378
      %v1744 = vsel %vm1717, %v1711, %v1380
      %v1745 = vsel %vm1717, %v1712, %v1382
      %v1746 = vsel %vm1717, %v1713, %v1384
      %v1747 = vsel %vm1717, %v1714, %v1386
      %v1748 = vsel %vm1717, %v1715, %v1388
      %v1749 = vsel %vm1717, %v1716, %v1390
      %vm1750 = vcmask 261120
      %v1751 = vsel %vm1750, %v1718, %v1424
      %v1752 = vsel %vm1750, %v1719, %v1426
      %v1753 = vsel %vm1750, %v1720, %v1428
      %v1754 = vsel %vm1750, %v1721, %v1430
      %v1755 = vsel %vm1750, %v1722, %v1432
      %v1756 = vsel %vm1750, %v1723, %v1434
      %v1757 = vsel %vm1750, %v1724, %v1436
      %v1758 = vsel %vm1750, %v1725, %v1438
      %v1759 = vsel %vm1750, %v1726, %v1440
      %v1760 = vsel %vm1750, %v1727, %v1442
      %v1761 = vsel %vm1750, %v1728, %v1444
      %v1762 = vsel %vm1750, %v1729, %v1446
      %v1763 = vsel %vm1750, %v1730, %v1448
      %v1764 = vsel %vm1750, %v1731, %v1450
      %v1765 = vsel %vm1750, %v1732, %v1452
      %v1766 = vsel %vm1750, %v1733, %v1454
      %v1767 = vsel %vm1750, %v1734, %v1456
      %v1768 = vsel %vm1750, %v1735, %v1458
      %v1769 = vsel %vm1750, %v1736, %v1460
      %v1770 = vsel %vm1750, %v1737, %v1462
      %v1771 = vsel %vm1750, %v1738, %v1464
      %v1772 = vsel %vm1750, %v1739, %v1466
      %v1773 = vsel %vm1750, %v1740, %v1468
      %v1774 = vsel %vm1750, %v1741, %v1470
      %v1775 = vsel %vm1750, %v1742, %v1472
      %v1776 = vsel %vm1750, %v1743, %v1474
      %v1777 = vsel %vm1750, %v1744, %v1476
      %v1778 = vsel %vm1750, %v1745, %v1478
      %v1779 = vsel %vm1750, %v1746, %v1480
      %v1780 = vsel %vm1750, %v1747, %v1482
      %v1781 = vsel %vm1750, %v1748, %v1484
      %v1782 = vsel %vm1750, %v1749, %v1486
      %v1783 = vld [vmem:[%s3] sm:$0xff]
      %v1784 = vld [vmem:[%s3 + $0x8] sm:$0xff]
      %v1785 = vld [vmem:[%s3 + $0x10] sm:$0xff]
      %v1786 = vld [vmem:[%s3 + $0x18] sm:$0xff]
      %v1787 = vld [vmem:[%s3 + $0x20] sm:$0xf]
      %vm1788 = vcmask 293888
      %v1790 = vsel %vm1788, %v1751, 0
      %v1793 = vsel %vm1788, %v1752, 0
      %v1796 = vsel %vm1788, %v1753, 0
      %v1799 = vsel %vm1788, %v1754, 0
      %v1802 = vsel %vm1788, %v1755, 0
      %v1805 = vsel %vm1788, %v1756, 0
      %v1808 = vsel %vm1788, %v1757, 0
      %v1811 = vsel %vm1788, %v1758, 0
      %v1814 = vsel %vm1788, %v1759, 0
      %v1817 = vsel %vm1788, %v1760, 0
      %v1820 = vsel %vm1788, %v1761, 0
      %v1823 = vsel %vm1788, %v1762, 0
      %v1826 = vsel %vm1788, %v1763, 0
      %v1829 = vsel %vm1788, %v1764, 0
      %v1832 = vsel %vm1788, %v1765, 0
      %v1835 = vsel %vm1788, %v1766, 0
      %v1838 = vsel %vm1788, %v1767, 0
      %v1841 = vsel %vm1788, %v1768, 0
      %v1844 = vsel %vm1788, %v1769, 0
      %v1847 = vsel %vm1788, %v1770, 0
      %v1850 = vsel %vm1788, %v1771, 0
      %v1853 = vsel %vm1788, %v1772, 0
      %v1856 = vsel %vm1788, %v1773, 0
      %v1859 = vsel %vm1788, %v1774, 0
      %v1862 = vsel %vm1788, %v1775, 0
      %v1865 = vsel %vm1788, %v1776, 0
      %v1868 = vsel %vm1788, %v1777, 0
      %v1871 = vsel %vm1788, %v1778, 0
      %v1874 = vsel %vm1788, %v1779, 0
      %v1877 = vsel %vm1788, %v1780, 0
      %v1880 = vsel %vm1788, %v1781, 0
      %v1883 = vsel %vm1788, %v1782, 0
      %vm1885 = vcmask 1043456
      %v1887 = vsel %vm1885, %v1787, 0
      %1889 = vmatprep.subr.mxu0 0.0
      %1890 = vmatpush1.msra.mxu0 %v1783
      %1891 = vmatprep.subr.mxu0 0.0
      %1892 = vmatpush1.msra.mxu0 %v1784
      %1893 = vmatprep.subr.mxu0 0.0
      %1894 = vmatpush1.msra.mxu0 %v1785
      %1895 = vmatprep.subr.mxu0 0.0
      %1896 = vmatpush1.msra.mxu0 %v1786
      %1897 = vmatprep.subr.mxu0 0.0
      %1898 = vmatpush1.msra.mxu0 %v1887
      %1899 = vmatprep.subr.mxu0 0.0
      %1900 = vmatpush1.msra.mxu0 0.0
      %1901 = vmatprep.subr.mxu0 0.0
      %1902 = vmatpush1.msra.mxu0 0.0
      %1903 = vmatprep.subr.mxu0 0.0
      %1904 = vmatpush1.msra.mxu0 0.0
      %1905 = vmatprep.subr.mxu0 0.0
      %1906 = vmatpush1.msra.mxu0 0.0
      %1907 = vmatprep.subr.mxu0 0.0
      %1908 = vmatpush1.msra.mxu0 0.0
      %1909 = vmatprep.subr.mxu0 0.0
      %1910 = vmatpush1.msra.mxu0 0.0
      %1911 = vmatprep.subr.mxu0 0.0
      %1912 = vmatpush1.msra.mxu0 0.0
      %1913 = vmatprep.subr.mxu0 0.0
      %1914 = vmatpush1.msra.mxu0 0.0
      %1915 = vmatprep.subr.mxu0 0.0
      %1916 = vmatpush1.msra.mxu0 0.0
      %1917 = vmatprep.subr.mxu0 0.0
      %1918 = vmatpush1.msra.mxu0 0.0
      %1919 = vmatprep.subr.mxu0 0.0
      %1920 = vmatpush1.msra.mxu0 0.0
      %1921 = vmatprep.subr.mxu0 0.0
      %1922 = vmatpush1.msra.mxu0 0.0
      %1923 = vmatprep.subr.mxu0 0.0
      %1924 = vmatpush1.msra.mxu0 0.0
      %1925 = vmatprep.subr.mxu0 0.0
      %1926 = vmatpush1.msra.mxu0 0.0
      %1927 = vmatprep.subr.mxu0 0.0
      %1928 = vmatpush1.msra.mxu0 0.0
      %1929 = vmatprep.subr.mxu0 0.0
      %1930 = vmatpush1.msra.mxu0 0.0
      %1931 = vmatprep.subr.mxu0 0.0
      %1932 = vmatpush1.msra.mxu0 0.0
      %1933 = vmatprep.subr.mxu0 0.0
      %1934 = vmatpush1.msra.mxu0 0.0
      %1935 = vmatprep.subr.mxu0 0.0
      %1936 = vmatpush1.msra.mxu0 0.0
      %1937 = vmatprep.subr.mxu0 0.0
      %1938 = vmatpush1.msra.mxu0 0.0
      %1939 = vmatprep.subr.mxu0 0.0
      %1940 = vmatpush1.msra.mxu0 0.0
      %1941 = vmatprep.subr.mxu0 0.0
      %1942 = vmatpush1.msra.mxu0 0.0
      %1943 = vmatprep.subr.mxu0 0.0
      %1944 = vmatpush1.msra.mxu0 0.0
      %1945 = vmatprep.subr.mxu0 0.0
      %1946 = vmatpush1.msra.mxu0 0.0
      %1947 = vmatprep.subr.mxu0 0.0
      %1948 = vmatpush1.msra.mxu0 0.0
      %1949 = vmatprep.subr.mxu0 0.0
      %1950 = vmatpush1.msra.mxu0 0.0
      %1951 = vmatprep.subr.mxu0 0.0
      %1952 = vmatpush1.msra.mxu0 0.0
      %1953 = vmatprep.mubr.f32.mxu0 0.0
      %1954 = vmatmul.mubr.f32.gmra.mrb[0].mxu0 %v1790
      %v1955 = vpop.f32.mrb[0].mxu0
      %v1956 = vadd.f32 0.0, %v1955
      %v1957 = vpop.f32.mrb[0].mxu0
      %1958 = vmatprep.mubr.f32.mxu0 0.0
      %1959 = vmatmul.mubr.f32.gmra.mrb[0].mxu0 %v1793
      %v1960 = vpop.f32.mrb[0].mxu0
      %v1961 = vadd.f32 0.0, %v1960
      %v1962 = vpop.f32.mrb[0].mxu0
      %1963 = vmatprep.mubr.f32.mxu0 0.0
      %1964 = vmatmul.mubr.f32.gmra.mrb[0].mxu0 %v1796
      %v1965 = vpop.f32.mrb[0].mxu0
      %v1966 = vadd.f32 0.0, %v1965
      %v1967 = vpop.f32.mrb[0].mxu0
      %1968 = vmatprep.mubr.f32.mxu0 0.0
      %1969 = vmatmul.mubr.f32.gmra.mrb[0].mxu0 %v1799
      %v1970 = vpop.f32.mrb[0].mxu0
      %v1971 = vadd.f32 0.0, %v1970
      %v1972 = vpop.f32.mrb[0].mxu0
      %1973 = vmatprep.mubr.f32.mxu0 0.0
      %1974 = vmatmul.mubr.f32.gmra.mrb[0].mxu0 %v1802
      %v1975 = vpop.f32.mrb[0].mxu0
      %v1976 = vadd.f32 0.0, %v1975
      %v1977 = vpop.f32.mrb[0].mxu0
      %1978 = vmatprep.mubr.f32.mxu0 0.0
      %1979 = vmatmul.mubr.f32.gmra.mrb[0].mxu0 %v1805
      %v1980 = vpop.f32.mrb[0].mxu0
      %v1981 = vadd.f32 0.0, %v1980
      %v1982 = vpop.f32.mrb[0].mxu0
      %1983 = vmatprep.mubr.f32.mxu0 0.0
      %1984 = vmatmul.mubr.f32.gmra.mrb[0].mxu0 %v1808
      %v1985 = vpop.f32.mrb[0].mxu0
      %v1986 = vadd.f32 0.0, %v1985
      %v1987 = vpop.f32.mrb[0].mxu0
      %1988 = vmatprep.mubr.f32.mxu0 0.0
      %1989 = vmatmul.mubr.f32.gmra.mrb[0].mxu0 %v1811
      %v1990 = vpop.f32.mrb[0].mxu0
      %v1991 = vadd.f32 0.0, %v1990
      %v1992 = vpop.f32.mrb[0].mxu0
      %1993 = vmatprep.mubr.f32.mxu0 0.0
      %1994 = vmatmul.mubr.f32.gmra.mrb[0].mxu0 %v1814
      %v1995 = vpop.f32.mrb[0].mxu0
      %v1996 = vadd.f32 0.0, %v1995
      %v1997 = vpop.f32.mrb[0].mxu0
      %1998 = vmatprep.mubr.f32.mxu0 0.0
      %1999 = vmatmul.mubr.f32.gmra.mrb[0].mxu0 %v1817
      %v2000 = vpop.f32.mrb[0].mxu0
      %v2001 = vadd.f32 0.0, %v2000
      %v2002 = vpop.f32.mrb[0].mxu0
      %2003 = vmatprep.mubr.f32.mxu0 0.0
      %2004 = vmatmul.mubr.f32.gmra.mrb[0].mxu0 %v1820
      %v2005 = vpop.f32.mrb[0].mxu0
      %v2006 = vadd.f32 0.0, %v2005
      %v2007 = vpop.f32.mrb[0].mxu0
      %2008 = vmatprep.mubr.f32.mxu0 0.0
      %2009 = vmatmul.mubr.f32.gmra.mrb[0].mxu0 %v1823
      %v2010 = vpop.f32.mrb[0].mxu0
      %v2011 = vadd.f32 0.0, %v2010
      %v2012 = vpop.f32.mrb[0].mxu0
      %2013 = vmatprep.mubr.f32.mxu0 0.0
      %2014 = vmatmul.mubr.f32.gmra.mrb[0].mxu0 %v1826
      %v2015 = vpop.f32.mrb[0].mxu0
      %v2016 = vadd.f32 0.0, %v2015
      %v2017 = vpop.f32.mrb[0].mxu0
      %2018 = vmatprep.mubr.f32.mxu0 0.0
      %2019 = vmatmul.mubr.f32.gmra.mrb[0].mxu0 %v1829
      %v2020 = vpop.f32.mrb[0].mxu0
      %v2021 = vadd.f32 0.0, %v2020
      %v2022 = vpop.f32.mrb[0].mxu0
      %2023 = vmatprep.mubr.f32.mxu0 0.0
      %2024 = vmatmul.mubr.f32.gmra.mrb[0].mxu0 %v1832
      %v2025 = vpop.f32.mrb[0].mxu0
      %v2026 = vadd.f32 0.0, %v2025
      %v2027 = vpop.f32.mrb[0].mxu0
      %2028 = vmatprep.mubr.f32.mxu0 0.0
      %2029 = vmatmul.mubr.f32.gmra.mrb[0].mxu0 %v1835
      %v2030 = vpop.f32.mrb[0].mxu0
      %v2031 = vadd.f32 0.0, %v2030
      %v2032 = vpop.f32.mrb[0].mxu0
      %2033 = vmatprep.mubr.f32.mxu0 0.0
      %2034 = vmatmul.mubr.f32.gmra.mrb[0].mxu0 %v1838
      %v2035 = vpop.f32.mrb[0].mxu0
      %v2036 = vadd.f32 0.0, %v2035
      %v2037 = vpop.f32.mrb[0].mxu0
      %2038 = vmatprep.mubr.f32.mxu0 0.0
      %2039 = vmatmul.mubr.f32.gmra.mrb[0].mxu0 %v1841
      %v2040 = vpop.f32.mrb[0].mxu0
      %v2041 = vadd.f32 0.0, %v2040
      %v2042 = vpop.f32.mrb[0].mxu0
      %2043 = vmatprep.mubr.f32.mxu0 0.0
      %2044 = vmatmul.mubr.f32.gmra.mrb[0].mxu0 %v1844
      %v2045 = vpop.f32.mrb[0].mxu0
      %v2046 = vadd.f32 0.0, %v2045
      %v2047 = vpop.f32.mrb[0].mxu0
      %2048 = vmatprep.mubr.f32.mxu0 0.0
      %2049 = vmatmul.mubr.f32.gmra.mrb[0].mxu0 %v1847
      %v2050 = vpop.f32.mrb[0].mxu0
      %v2051 = vadd.f32 0.0, %v2050
      %v2052 = vpop.f32.mrb[0].mxu0
      %2053 = vmatprep.mubr.f32.mxu0 0.0
      %2054 = vmatmul.mubr.f32.gmra.mrb[0].mxu0 %v1850
      %v2055 = vpop.f32.mrb[0].mxu0
      %v2056 = vadd.f32 0.0, %v2055
      %v2057 = vpop.f32.mrb[0].mxu0
      %2058 = vmatprep.mubr.f32.mxu0 0.0
      %2059 = vmatmul.mubr.f32.gmra.mrb[0].mxu0 %v1853
      %v2060 = vpop.f32.mrb[0].mxu0
      %v2061 = vadd.f32 0.0, %v2060
      %v2062 = vpop.f32.mrb[0].mxu0
      %2063 = vmatprep.mubr.f32.mxu0 0.0
      %2064 = vmatmul.mubr.f32.gmra.mrb[0].mxu0 %v1856
      %v2065 = vpop.f32.mrb[0].mxu0
      %v2066 = vadd.f32 0.0, %v2065
      %v2067 = vpop.f32.mrb[0].mxu0
      %2068 = vmatprep.mubr.f32.mxu0 0.0
      %2069 = vmatmul.mubr.f32.gmra.mrb[0].mxu0 %v1859
      %v2070 = vpop.f32.mrb[0].mxu0
      %v2071 = vadd.f32 0.0, %v2070
      %v2072 = vpop.f32.mrb[0].mxu0
      %2073 = vmatprep.mubr.f32.mxu0 0.0
      %2074 = vmatmul.mubr.f32.gmra.mrb[0].mxu0 %v1862
      %v2075 = vpop.f32.mrb[0].mxu0
      %v2076 = vadd.f32 0.0, %v2075
      %v2077 = vpop.f32.mrb[0].mxu0
      %2078 = vmatprep.mubr.f32.mxu0 0.0
      %2079 = vmatmul.mubr.f32.gmra.mrb[0].mxu0 %v1865
      %v2080 = vpop.f32.mrb[0].mxu0
      %v2081 = vadd.f32 0.0, %v2080
      %v2082 = vpop.f32.mrb[0].mxu0
      %2083 = vmatprep.mubr.f32.mxu0 0.0
      %2084 = vmatmul.mubr.f32.gmra.mrb[0].mxu0 %v1868
      %v2085 = vpop.f32.mrb[0].mxu0
      %v2086 = vadd.f32 0.0, %v2085
      %v2087 = vpop.f32.mrb[0].mxu0
      %2088 = vmatprep.mubr.f32.mxu0 0.0
      %2089 = vmatmul.mubr.f32.gmra.mrb[0].mxu0 %v1871
      %v2090 = vpop.f32.mrb[0].mxu0
      %v2091 = vadd.f32 0.0, %v2090
      %v2092 = vpop.f32.mrb[0].mxu0
      %2093 = vmatprep.mubr.f32.mxu0 0.0
      %2094 = vmatmul.mubr.f32.gmra.mrb[0].mxu0 %v1874
      %v2095 = vpop.f32.mrb[0].mxu0
      %v2096 = vadd.f32 0.0, %v2095
      %v2097 = vpop.f32.mrb[0].mxu0
      %2098 = vmatprep.mubr.f32.mxu0 0.0
      %2099 = vmatmul.mubr.f32.gmra.mrb[0].mxu0 %v1877
      %v2100 = vpop.f32.mrb[0].mxu0
      %v2101 = vadd.f32 0.0, %v2100
      %v2102 = vpop.f32.mrb[0].mxu0
      %2103 = vmatprep.mubr.f32.mxu0 0.0
      %2104 = vmatmul.mubr.f32.gmra.mrb[0].mxu0 %v1880
      %v2105 = vpop.f32.mrb[0].mxu0
      %v2106 = vadd.f32 0.0, %v2105
      %v2107 = vpop.f32.mrb[0].mxu0
      %2108 = vmatprep.mubr.f32.mxu0 0.0
      %2109 = vmatmul.mubr.f32.gmra.mrb[0].mxu0 %v1883
      %v2110 = vpop.f32.mrb[0].mxu0
      %v2111 = vadd.f32 0.0, %v2110
      %v2112 = vpop.f32.mrb[0].mxu0
      %2113 = vdwg.mxu0
      %2114 = vst.msk [vmem:[%s231] sm:$0xff] %vm1519, %v1956
      %2115 = vst.msk [vmem:[%s231 + $0x8] sm:$0xff] %vm1519, %v1961
      %2116 = vst.msk [vmem:[%s231 + $0x10] sm:$0xff] %vm1519, %v1966
      %2117 = vst.msk [vmem:[%s231 + $0x18] sm:$0xff] %vm1519, %v1971
      %2118 = vst.msk [vmem:[%s231 + $0x20] sm:$0xff] %vm1519, %v1976
      %2119 = vst.msk [vmem:[%s231 + $0x28] sm:$0xff] %vm1519, %v1981
      %2120 = vst.msk [vmem:[%s231 + $0x30] sm:$0xff] %vm1519, %v1986
      %2121 = vst.msk [vmem:[%s231 + $0x38] sm:$0xff] %vm1519, %v1991
      %2122 = vst.msk [vmem:[%s231 + $0x40] sm:$0xff] %vm1519, %v1996
      %2123 = vst.msk [vmem:[%s231 + $0x48] sm:$0xff] %vm1519, %v2001
      %2124 = vst.msk [vmem:[%s231 + $0x50] sm:$0xff] %vm1519, %v2006
      %2125 = vst.msk [vmem:[%s231 + $0x58] sm:$0xff] %vm1519, %v2011
      %2126 = vst.msk [vmem:[%s231 + $0x60] sm:$0xff] %vm1519, %v2016
      %2127 = vst.msk [vmem:[%s231 + $0x68] sm:$0xff] %vm1519, %v2021
      %2128 = vst.msk [vmem:[%s231 + $0x70] sm:$0xff] %vm1519, %v2026
      %2129 = vst.msk [vmem:[%s231 + $0x78] sm:$0xff] %vm1519, %v2031
      %2130 = vst.msk [vmem:[%s231 + $0x80] sm:$0xff] %vm1519, %v2036
      %2131 = vst.msk [vmem:[%s231 + $0x88] sm:$0xff] %vm1519, %v2041
      %2132 = vst.msk [vmem:[%s231 + $0x90] sm:$0xff] %vm1519, %v2046
      %2133 = vst.msk [vmem:[%s231 + $0x98] sm:$0xff] %vm1519, %v2051
      %2134 = vst.msk [vmem:[%s231 + $0xa0] sm:$0xff] %vm1519, %v2056
      %2135 = vst.msk [vmem:[%s231 + $0xa8] sm:$0xff] %vm1519, %v2061
      %2136 = vst.msk [vmem:[%s231 + $0xb0] sm:$0xff] %vm1519, %v2066
      %2137 = vst.msk [vmem:[%s231 + $0xb8] sm:$0xff] %vm1519, %v2071
      %2138 = vst.msk [vmem:[%s231 + $0xc0] sm:$0xff] %vm1519, %v2076
      %2139 = vst.msk [vmem:[%s231 + $0xc8] sm:$0xff] %vm1519, %v2081
      %2140 = vst.msk [vmem:[%s231 + $0xd0] sm:$0xff] %vm1519, %v2086
      %2141 = vst.msk [vmem:[%s231 + $0xd8] sm:$0xff] %vm1519, %v2091
      %2142 = vst.msk [vmem:[%s231 + $0xe0] sm:$0xff] %vm1519, %v2096
      %2143 = vst.msk [vmem:[%s231 + $0xe8] sm:$0xff] %vm1519, %v2101
      %2144 = vst.msk [vmem:[%s231 + $0xf0] sm:$0xff] %vm1519, %v2106
      %2145 = vst.msk [vmem:[%s231 + $0xf8] sm:$0xff] %vm1519, %v2111
      %v2146 = vsel %vm1519, %v1956, 0.0
      %v2147 = vsel %vm1519, %v1961, 0.0
      %v2148 = vadd.f32 %v2146, %v2147
      %v2149 = vsel %vm1519, %v1966, 0.0
      %v2150 = vadd.f32 %v2148, %v2149
      %v2151 = vsel %vm1519, %v1971, 0.0
      %v2152 = vadd.f32 %v2150, %v2151
      %v2153 = vsel %vm1519, %v1976, 0.0
      %v2154 = vadd.f32 %v2152, %v2153
      %v2155 = vsel %vm1519, %v1981, 0.0
      %v2156 = vadd.f32 %v2154, %v2155
      %v2157 = vsel %vm1519, %v1986, 0.0
      %v2158 = vadd.f32 %v2156, %v2157
      %v2159 = vsel %vm1519, %v1991, 0.0
      %v2160 = vadd.f32 %v2158, %v2159
      %v2161 = vsel %vm1519, %v1996, 0.0
      %v2162 = vadd.f32 %v2160, %v2161
      %v2163 = vsel %vm1519, %v2001, 0.0
      %v2164 = vadd.f32 %v2162, %v2163
      %v2165 = vsel %vm1519, %v2006, 0.0
      %v2166 = vadd.f32 %v2164, %v2165
      %v2167 = vsel %vm1519, %v2011, 0.0
      %v2168 = vadd.f32 %v2166, %v2167
      %v2169 = vsel %vm1519, %v2016, 0.0
      %v2170 = vadd.f32 %v2168, %v2169
      %v2171 = vsel %vm1519, %v2021, 0.0
      %v2172 = vadd.f32 %v2170, %v2171
      %v2173 = vsel %vm1519, %v2026, 0.0
      %v2174 = vadd.f32 %v2172, %v2173
      %v2175 = vsel %vm1519, %v2031, 0.0
      %v2176 = vadd.f32 %v2174, %v2175
      %v2177 = vsel %vm1519, %v2036, 0.0
      %v2178 = vadd.f32 %v2176, %v2177
      %v2179 = vsel %vm1519, %v2041, 0.0
      %v2180 = vadd.f32 %v2178, %v2179
      %v2181 = vsel %vm1519, %v2046, 0.0
      %v2182 = vadd.f32 %v2180, %v2181
      %v2183 = vsel %vm1519, %v2051, 0.0
      %v2184 = vadd.f32 %v2182, %v2183
      %v2185 = vsel %vm1519, %v2056, 0.0
      %v2186 = vadd.f32 %v2184, %v2185
      %v2187 = vsel %vm1519, %v2061, 0.0
      %v2188 = vadd.f32 %v2186, %v2187
      %v2189 = vsel %vm1519, %v2066, 0.0
      %v2190 = vadd.f32 %v2188, %v2189
      %v2191 = vsel %vm1519, %v2071, 0.0
      %v2192 = vadd.f32 %v2190, %v2191
      %v2193 = vsel %vm1519, %v2076, 0.0
      %v2194 = vadd.f32 %v2192, %v2193
      %v2195 = vsel %vm1519, %v2081, 0.0
      %v2196 = vadd.f32 %v2194, %v2195
      %v2197 = vsel %vm1519, %v2086, 0.0
      %v2198 = vadd.f32 %v2196, %v2197
      %v2199 = vsel %vm1519, %v2091, 0.0
      %v2200 = vadd.f32 %v2198, %v2199
      %v2201 = vsel %vm1519, %v2096, 0.0
      %v2202 = vadd.f32 %v2200, %v2201
      %v2203 = vsel %vm1519, %v2101, 0.0
      %v2204 = vadd.f32 %v2202, %v2203
      %v2205 = vsel %vm1519, %v2106, 0.0
      %v2206 = vadd.f32 %v2204, %v2205
      %v2207 = vsel %vm1519, %v2111, 0.0
      %v2208 = vadd.f32 %v2206, %v2207
      %v2209 = vrot.slane %v2208, 4
      %v2210 = vadd.f32 %v2208, %v2209
      %v2211 = vrot.slane %v2210, 2
      %v2212 = vadd.f32 %v2210, %v2211
      %v2213 = vrot.slane %v2212, 1
      %v2214 = vadd.f32 %v2212, %v2213
      %v2215 = vmul.f32 %v1956, %v1956
      %v2216 = vmul.f32 %v1961, %v1961
      %v2217 = vmul.f32 %v1966, %v1966
      %v2218 = vmul.f32 %v1971, %v1971
      %v2219 = vmul.f32 %v1976, %v1976
      %v2220 = vmul.f32 %v1981, %v1981
      %v2221 = vmul.f32 %v1986, %v1986
      %v2222 = vmul.f32 %v1991, %v1991
      %v2223 = vmul.f32 %v1996, %v1996
      %v2224 = vmul.f32 %v2001, %v2001
      %v2225 = vmul.f32 %v2006, %v2006
      %v2226 = vmul.f32 %v2011, %v2011
      %v2227 = vmul.f32 %v2016, %v2016
      %v2228 = vmul.f32 %v2021, %v2021
      %v2229 = vmul.f32 %v2026, %v2026
      %v2230 = vmul.f32 %v2031, %v2031
      %v2231 = vmul.f32 %v2036, %v2036
      %v2232 = vmul.f32 %v2041, %v2041
      %v2233 = vmul.f32 %v2046, %v2046
      %v2234 = vmul.f32 %v2051, %v2051
      %v2235 = vmul.f32 %v2056, %v2056
      %v2236 = vmul.f32 %v2061, %v2061
      %v2237 = vmul.f32 %v2066, %v2066
      %v2238 = vmul.f32 %v2071, %v2071
      %v2239 = vmul.f32 %v2076, %v2076
      %v2240 = vmul.f32 %v2081, %v2081
      %v2241 = vmul.f32 %v2086, %v2086
      %v2242 = vmul.f32 %v2091, %v2091
      %v2243 = vmul.f32 %v2096, %v2096
      %v2244 = vmul.f32 %v2101, %v2101
      %v2245 = vmul.f32 %v2106, %v2106
      %v2246 = vmul.f32 %v2111, %v2111
      %v2247 = vsel %vm1519, %v2215, 0.0
      %v2248 = vsel %vm1519, %v2216, 0.0
      %v2249 = vadd.f32 %v2247, %v2248
      %v2250 = vsel %vm1519, %v2217, 0.0
      %v2251 = vadd.f32 %v2249, %v2250
      %v2252 = vsel %vm1519, %v2218, 0.0
      %v2253 = vadd.f32 %v2251, %v2252
      %v2254 = vsel %vm1519, %v2219, 0.0
      %v2255 = vadd.f32 %v2253, %v2254
      %v2256 = vsel %vm1519, %v2220, 0.0
      %v2257 = vadd.f32 %v2255, %v2256
      %v2258 = vsel %vm1519, %v2221, 0.0
      %v2259 = vadd.f32 %v2257, %v2258
      %v2260 = vsel %vm1519, %v2222, 0.0
      %v2261 = vadd.f32 %v2259, %v2260
      %v2262 = vsel %vm1519, %v2223, 0.0
      %v2263 = vadd.f32 %v2261, %v2262
      %v2264 = vsel %vm1519, %v2224, 0.0
      %v2265 = vadd.f32 %v2263, %v2264
      %v2266 = vsel %vm1519, %v2225, 0.0
      %v2267 = vadd.f32 %v2265, %v2266
      %v2268 = vsel %vm1519, %v2226, 0.0
      %v2269 = vadd.f32 %v2267, %v2268
      %v2270 = vsel %vm1519, %v2227, 0.0
      %v2271 = vadd.f32 %v2269, %v2270
      %v2272 = vsel %vm1519, %v2228, 0.0
      %v2273 = vadd.f32 %v2271, %v2272
      %v2274 = vsel %vm1519, %v2229, 0.0
      %v2275 = vadd.f32 %v2273, %v2274
      %v2276 = vsel %vm1519, %v2230, 0.0
      %v2277 = vadd.f32 %v2275, %v2276
      %v2278 = vsel %vm1519, %v2231, 0.0
      %v2279 = vadd.f32 %v2277, %v2278
      %v2280 = vsel %vm1519, %v2232, 0.0
      %v2281 = vadd.f32 %v2279, %v2280
      %v2282 = vsel %vm1519, %v2233, 0.0
      %v2283 = vadd.f32 %v2281, %v2282
      %v2284 = vsel %vm1519, %v2234, 0.0
      %v2285 = vadd.f32 %v2283, %v2284
      %v2286 = vsel %vm1519, %v2235, 0.0
      %v2287 = vadd.f32 %v2285, %v2286
      %v2288 = vsel %vm1519, %v2236, 0.0
      %v2289 = vadd.f32 %v2287, %v2288
      %v2290 = vsel %vm1519, %v2237, 0.0
      %v2291 = vadd.f32 %v2289, %v2290
      %v2292 = vsel %vm1519, %v2238, 0.0
      %v2293 = vadd.f32 %v2291, %v2292
      %v2294 = vsel %vm1519, %v2239, 0.0
      %v2295 = vadd.f32 %v2293, %v2294
      %v2296 = vsel %vm1519, %v2240, 0.0
      %v2297 = vadd.f32 %v2295, %v2296
      %v2298 = vsel %vm1519, %v2241, 0.0
      %v2299 = vadd.f32 %v2297, %v2298
      %v2300 = vsel %vm1519, %v2242, 0.0
      %v2301 = vadd.f32 %v2299, %v2300
      %v2302 = vsel %vm1519, %v2243, 0.0
      %v2303 = vadd.f32 %v2301, %v2302
      %v2304 = vsel %vm1519, %v2244, 0.0
      %v2305 = vadd.f32 %v2303, %v2304
      %v2306 = vsel %vm1519, %v2245, 0.0
      %v2307 = vadd.f32 %v2305, %v2306
      %v2308 = vsel %vm1519, %v2246, 0.0
      %v2309 = vadd.f32 %v2307, %v2308
      %v2310 = vrot.slane %v2309, 4
      %v2311 = vadd.f32 %v2309, %v2310
      %v2312 = vrot.slane %v2311, 2
      %v2313 = vadd.f32 %v2311, %v2312
      %v2314 = vrot.slane %v2313, 1
      %v2315 = vadd.f32 %v2313, %v2314
      %v2316 = vsel %vm411, %v2214, %v2315
      %vm2317 = vcmask 25600
      %2318 = vst.msk [vmem:[%s235] sm:$0x3] %vm2317, %v2316
      %p2319 = scmp.lt.s32.totalorder %s17, 1
      %s2320 = scalar_select %p2319, %s17, 1
      %s2321 = smul.addr %s2320, 32
      %s2322 = smul.addr %s2321, 8
      %s2323 = scalar_lea.vmem %s4, %s2322
      %p2324 = scmp.lt.s32.totalorder %s17, 1
      %s2325 = scalar_select %p2324, %s17, 1
      %s2326 = smul.addr %s2325, 2
      %s2327 = scalar_lea.vmem %s5, %s2326
      // Predicated region
      $region37: #{residual_block.4} parent=35 // pred_check
        %p2328 = pneg %p124
      $region38: #{residual_block.4} parent=35 // pred_check_branch
        %2330 = sbr.rel (%p2328) target = $region40
      $region39: #{residual_block.4} parent=35 // pred_region
        _
      $region40: #{residual_block.4} parent=35 // pred_fallthru
        _
      // Predicated region
      $region41: #{residual_block.4} parent=35 // pred_check
        %p2331 = pneg %p150
      $region42: #{residual_block.4} parent=35 // pred_check_branch
        %2333 = sbr.rel (%p2331) target = $region44
      $region43: #{residual_block.4} parent=35 // pred_region
        _
      $region44: #{residual_block.4} parent=35 // pred_fallthru
        _
    $region36: #{residual_block.4} parent=5 // pred_fallthru
      _
    %p2334 = scmp.le.s32.totalorder 2, %s12
    // Predicated region
    $region45: #{residual_block.4} parent=5 // pred_check
      %p2335 = pneg %p2334
    $region46: #{residual_block.4} parent=5 // pred_check_branch
      %2337 = sbr.rel (%p2335) target = $region48
    $region47: #{residual_block.4} parent=5 // pred_region
      %s2338 = ssub.s32 %s12, 2
      // Predicated region
      $region49: #{residual_block.4} parent=47 // pred_check
        %p2339 = pneg %p130
      $region50: #{residual_block.4} parent=47 // pred_check_branch
        %2341 = sbr.rel (%p2339) target = $region52
      $region51: #{residual_block.4} parent=47 // pred_region
        %p2342 = scmp.lt.s32.totalorder %s18, 1
        %s2343 = scalar_select %p2342, %s18, 1
        %s2344 = smul.addr %s2343, 32
        %s2345 = smul.addr %s2344, 8
        %s2346 = scalar_lea.vmem %s4, %s2345
      $region52: #{residual_block.4} parent=47 // pred_fallthru
        _
      // Predicated region
      $region53: #{residual_block.4} parent=47 // pred_check
        %p2347 = pneg %p156
      $region54: #{residual_block.4} parent=47 // pred_check_branch
        %2349 = sbr.rel (%p2347) target = $region56
      $region55: #{residual_block.4} parent=47 // pred_region
        %p2350 = scmp.lt.s32.totalorder %s18, 1
        %s2351 = scalar_select %p2350, %s18, 1
        %s2352 = smul.addr %s2351, 2
        %s2353 = scalar_lea.vmem %s5, %s2352
      $region56: #{residual_block.4} parent=47 // pred_fallthru
        _
    $region48: #{residual_block.4} parent=5 // pred_fallthru
      _
  $region6: #{residual_block.4} parent=0 // loop_footer
    %s16 = sadd.s32 1, %s12
  $region7: #{residual_block.4} parent=0 // loop_footer_branch
    %11 = sbr.rel target = $region3
  $region8: #{residual_block.4} parent=0 // loop_exit
    _

</llo_original>
